<compile_context>
chip_gen: v7x
topology: tpu7x:2x2x1
jax: 0.10.0
libtpu: 0.0.40
codegen_flags: <defaults>
</compile_context>

<pallas_src>
import functools

import jax
import jax.numpy as jnp
from jax.experimental import pallas as pl
from jax.experimental.pallas import tpu as pltpu

_RB = 8  # i-rows per inner step: one full sublane tile -> dense 8-row stores.
         # (Drop to 4 if a bundle dump ever shows spill vld/vst in this loop.)


def _structural_kernel(x_ref, w_ref, bias_ref, b4_ref, out_ref, a_scr, b_scr,
                       *, BB, H, F, Dh):
    """One batch-block of BB elements.

    x_ref   : [2*BB*H, F]     BB*H image rows (batch-major) then BB*H text rows
    w_ref   : [F+2*Dh, 2*Dh]  rows [0:F]=W1, [F:F+Dh]=W2 (cols :Dh), [F+Dh:]=W3cat
    bias_ref: [4, Dh]         rows = b1, b2, b3, w4
    b4_ref  : [1, 1]          SMEM scalar
    out_ref : [H, BB*H]       lane-packed adjacency, column c = b*H + j
    a_scr/b_scr: [BB*H, Dh]   VMEM scratch for the pairwise operands
    """
    BBH = BB * H

    w1 = w_ref[0:F, 0:Dh]
    w2 = w_ref[F:F + Dh, 0:Dh]
    w3 = w_ref[F + Dh:F + 2 * Dh, :]            # [Dh, 2*Dh] = [W3a | W3b]
    b1 = bias_ref[0:1, :]
    b2 = bias_ref[1:2, :]
    b3 = bias_ref[2:3, :]
    w4b = bias_ref[3, :][None, None, :]         # [1, 1, Dh], hoisted out of loops
    b4 = b4_ref[0, 0]                           # scalar from SMEM

    # --- fused feature transform on the stacked [2*BB*H, F] slab -------------
    x = x_ref[...]
    h1 = jnp.maximum(
        jnp.dot(x, w1, preferred_element_type=jnp.float32) + b1, 0.0)
    xh = jnp.dot(h1, w2, preferred_element_type=jnp.float32) + b2      # [2BBH, Dh]

    # structure_learning layer-1, W3a/W3b fused into one matmul:
    #   Linear3(cat(img_i, txt_j)) = img_i @ W3a + txt_j @ W3b + b3
    y = jnp.dot(xh, w3, preferred_element_type=jnp.float32)            # [2BBH, 2Dh]
    a_scr[...] = y[:BBH, 0:Dh] + b3          # A_b[i] = img_h_b[i] @ W3a + b3
    b_scr[...] = y[BBH:, Dh:2 * Dh]          # B_b[j] = txt_h_b[j] @ W3b

    # --- pairwise stage -------------------------------------------------------
    # out[i, b*H + j] = sigmoid(w4 . relu(A_b[i] + B_b[j]) + b4)
    # Rolled loop over 8-row i-blocks bounds vreg live ranges (an unrolled
    # Python loop would not); per-batch [RB, H, Dh] temp is consumed by the
    # fused w4 reduction before the next batch element is processed.
    @pl.loop(0, H // _RB)
    def _(t):
        row0 = pl.multiple_of(t * _RB, _RB)
        pieces = []
        for b in range(BB):                                 # static, small
            a_blk = a_scr[pl.ds(b * H + row0, _RB), :]      # [RB, Dh]
            b_all = b_scr[b * H:(b + 1) * H, :]             # [H, Dh]
            h = jnp.maximum(a_blk[:, None, :] + b_all[None, :, :], 0.0)  # [RB,H,Dh]
            pieces.append(jnp.sum(h * w4b, axis=-1))        # [RB, H]
        s = jnp.concatenate(pieces, axis=-1) + b4           # [RB, BB*H] lane-dense
        # sigmoid(s) == 0.5*(tanh(s/2)+1): EUP tanh, no per-element VPU divide.
        out_ref[pl.ds(row0, _RB), :] = 0.5 * (jnp.tanh(0.5 * s) + 1.0)


def _choose_block_batch(B, target=8):
    """Largest BB <= target dividing B while keeping >= 2 grid blocks
    (v7x has 2 TensorCores; a single grid block would idle one of them)."""
    bb = 1
    for cand in range(1, min(B, target) + 1):
        if B % cand == 0 and (B // cand >= 2 or B == 1):
            bb = cand
    return bb


@jax.jit
def structural_learning_forward(img, txt, params):
    B, H, F = img.shape
    Dh = params["w1"].shape[1]
    assert H == Dh, "forward loops over hidden_dim indexing the node axis"
    assert H % _RB == 0 and F % 8 == 0 and Dh % 8 == 0

    BB = _choose_block_batch(B)
    nblk = B // BB

    # Pre-stack image/text rows -> no in-kernel concat copy.
    # Per block: BB*H image rows (batch-major) then BB*H text rows.
    x_in = jnp.concatenate(
        [img.reshape(nblk, BB * H, F), txt.reshape(nblk, BB * H, F)], axis=1)

    # One weight slab [F + 2*Dh, 2*Dh] (W1/W2 zero-padded on columns) and one
    # bias slab [4, Dh]: fewer BlockSpecs / DMA descriptors per grid step.
    w3cat = jnp.concatenate([params["w3a"], params["w3b"]], axis=1)    # [Dh, 2Dh]
    wslab = jnp.concatenate(
        [jnp.pad(params["w1"], ((0, 0), (0, Dh))),
         jnp.pad(params["w2"], ((0, 0), (0, Dh))),
         w3cat], axis=0).astype(jnp.float32)                           # [F+2Dh, 2Dh]
    bslab = jnp.concatenate(
        [params["b1"], params["b2"], params["b3"], params["w4"]],
        axis=0).astype(jnp.float32)                                    # [4, Dh]
    b4 = params["b4"].reshape(1, 1).astype(jnp.float32)

    kernel = functools.partial(_structural_kernel, BB=BB, H=H, F=F, Dh=Dh)

    # Per-step VMEM (f32, double-buffered blocks):
    #   x: 2*2*BB*H*F + out: 2*H*BB*H + weights: (F+2Dh)*2Dh + 2 scratch BB*H*Dh
    #   ~= 100 KB at (BB=4, H=Dh=32, F=16) -> far below any generation's limit.
    # For large hidden_dim re-derive this (shrink BB or tile the j axis),
    # especially on v7x (64 MiB VMEM, 32 MiB scoped default).
    out_packed = pl.pallas_call(
        kernel,
        out_shape=jax.ShapeDtypeStruct((nblk, H, BB * H), jnp.float32),
        grid_spec=pltpu.PrefetchScalarGridSpec(
            num_scalar_prefetch=0,
            grid=(nblk,),
            in_specs=[
                pl.BlockSpec((None, 2 * BB * H, F), lambda g: (g, 0, 0)),  # img+txt
                pl.BlockSpec((F + 2 * Dh, 2 * Dh), lambda g: (0, 0)),      # weight slab
                pl.BlockSpec((4, Dh), lambda g: (0, 0)),                   # bias slab
                pl.BlockSpec(memory_space=pltpu.MemorySpace.SMEM),         # b4 scalar
            ],
            out_specs=pl.BlockSpec((None, H, BB * H), lambda g: (g, 0, 0)),
            scratch_shapes=[
                pltpu.VMEM((BB * H, Dh), jnp.float32),   # A (b3 folded in)
                pltpu.VMEM((BB * H, Dh), jnp.float32),   # B
            ]),
        compiler_params=pltpu.CompilerParams(
            dimension_semantics=("parallel",)),   # batch blocks are disjoint
    )(x_in, wslab, bslab, b4)

    # Un-pack the lane layout: out_packed[blk, i, b*H + j] -> adj[blk*BB + b, i, j]
    adj = (out_packed.reshape(nblk, H, BB, H)
           .transpose(0, 2, 1, 3)
           .reshape(B, H, H))
    return adj


def ref_forward(img, txt, p):
    """Pure-JAX reference replicating the PyTorch forward semantics."""
    def ft(x):
        return jnp.maximum(x @ p["w1"] + p["b1"][0], 0.0) @ p["w2"] + p["b2"][0]
    ih, th = ft(img), ft(txt)                          # [B, H, Dh]
    A = ih @ p["w3a"] + p["b3"][0]                     # [B, H, Dh]
    Bm = th @ p["w3b"]                                 # [B, H, Dh]
    h = jnp.maximum(A[:, :, None, :] + Bm[:, None, :, :], 0.0)   # [B, H, H, Dh]
    s = jnp.einsum("bijd,d->bij", h, p["w4"][0]) + p["b4"][0, 0]
    return jax.nn.sigmoid(s)


if __name__ == "__main__":
    B = 8               # exercises batch blocking: BB=4 per step, 2 grid blocks
    feature_dim = 16
    hidden_dim = 32
    H, F, Dh = hidden_dim, feature_dim, hidden_dim

    key = jax.random.PRNGKey(0)
    ks = jax.random.split(key, 11)
    scale = jnp.float32(0.1)
    # Deterministic synthetic parameters (nn.Linear weights stored transposed: [in, out]).
    params = {
        "w1":  scale * jax.random.normal(ks[0], (F, Dh), jnp.float32),
        "b1":  scale * jax.random.normal(ks[1], (1, Dh), jnp.float32),
        "w2":  scale * jax.random.normal(ks[2], (Dh, Dh), jnp.float32),
        "b2":  scale * jax.random.normal(ks[3], (1, Dh), jnp.float32),
        "w3a": scale * jax.random.normal(ks[4], (Dh, Dh), jnp.float32),
        "w3b": scale * jax.random.normal(ks[5], (Dh, Dh), jnp.float32),
        "b3":  scale * jax.random.normal(ks[6], (1, Dh), jnp.float32),
        "w4":  scale * jax.random.normal(ks[7], (1, Dh), jnp.float32),
        "b4":  scale * jax.random.normal(ks[8], (1, 1), jnp.float32),
    }

    image_features = jax.random.normal(ks[9], (B, H, F), jnp.float32)
    text_features = jax.random.normal(ks[10], (B, H, F), jnp.float32)

    adj = structural_learning_forward(image_features, text_features, params)
    adj = jax.block_until_ready(adj)

    ref = ref_forward(image_features, text_features, params)
    assert adj.shape == (B, hidden_dim, hidden_dim)
    assert adj.dtype == jnp.float32
    max_err = float(jnp.max(jnp.abs(adj - ref)))
    assert jnp.allclose(adj, ref, atol=2e-3, rtol=2e-3), f"max_err={max_err}"

    print("KERNEL_OK")
</pallas_src>

<mosaic_0001>
module attributes {stable_mosaic.version = 11 : i64} {
  func.func @_structural_kernel(%arg0: i32, %arg1: memref<1x256x16xf32, #tpu.memory_space<vmem>>, %arg2: memref<80x64xf32, #tpu.memory_space<vmem>>, %arg3: memref<4x32xf32, #tpu.memory_space<vmem>>, %arg4: memref<1x1xf32, #tpu.memory_space<smem>>, %arg5: memref<1x32x128xf32, #tpu.memory_space<vmem>>, %arg6: memref<128x32xf32, #tpu.memory_space<vmem>>, %arg7: memref<128x32xf32, #tpu.memory_space<vmem>>) attributes {dimension_semantics = [#tpu.dimension_semantics<parallel>], iteration_bounds = array<i64: 2>, scalar_prefetch = 0 : i64, scratch_operands = 2 : i64, tpu.core_type = #tpu.core_type<tc>, window_params = [{transform_indices = @transform_0, window_bounds = array<i64: 1, 256, 16>}, {pipeline_mode = #tpu.pipeline_mode<synchronous>, transform_indices = @transform_1, window_bounds = array<i64: 80, 64>}, {pipeline_mode = #tpu.pipeline_mode<synchronous>, transform_indices = @transform_2, window_bounds = array<i64: 4, 32>}, {transform_indices = @transform_3, window_bounds = array<i64: 1, 1>}, {transform_indices = @transform_4, window_bounds = array<i64: 1, 32, 128>}]} {
    %c0 = arith.constant 0 : index
    %c0_0 = arith.constant 0 : index
    %0 = vector.load %arg2[%c0, %c0_0] : memref<80x64xf32, #tpu.memory_space<vmem>>, vector<16x32xf32>
    %c16 = arith.constant 16 : index
    %c0_1 = arith.constant 0 : index
    %1 = vector.load %arg2[%c16, %c0_1] : memref<80x64xf32, #tpu.memory_space<vmem>>, vector<32x32xf32>
    %c48 = arith.constant 48 : index
    %c0_2 = arith.constant 0 : index
    %2 = vector.load %arg2[%c48, %c0_2] : memref<80x64xf32, #tpu.memory_space<vmem>>, vector<32x64xf32>
    %c0_3 = arith.constant 0 : index
    %c0_4 = arith.constant 0 : index
    %3 = vector.load %arg3[%c0_3, %c0_4] : memref<4x32xf32, #tpu.memory_space<vmem>>, vector<1x32xf32>
    %c1 = arith.constant 1 : index
    %c0_5 = arith.constant 0 : index
    %4 = vector.load %arg3[%c1, %c0_5] : memref<4x32xf32, #tpu.memory_space<vmem>>, vector<1x32xf32>
    %c2 = arith.constant 2 : index
    %c0_6 = arith.constant 0 : index
    %5 = vector.load %arg3[%c2, %c0_6] : memref<4x32xf32, #tpu.memory_space<vmem>>, vector<1x32xf32>
    %c3 = arith.constant 3 : index
    %c0_7 = arith.constant 0 : index
    %6 = vector.load %arg3[%c3, %c0_7] : memref<4x32xf32, #tpu.memory_space<vmem>>, vector<1x32xf32>
    %7 = vector.shape_cast %6 : vector<1x32xf32> to vector<32xf32>
    %8 = vector.shape_cast %7 : vector<32xf32> to vector<1x1x32xf32>
    %c0_8 = arith.constant 0 : index
    %c0_9 = arith.constant 0 : index
    %9 = memref.load %arg4[%c0_8, %c0_9] : memref<1x1xf32, #tpu.memory_space<smem>>
    %c0_10 = arith.constant 0 : index
    %c0_11 = arith.constant 0 : index
    %c0_12 = arith.constant 0 : index
    %10 = vector.load %arg1[%c0_10, %c0_11, %c0_12] : memref<1x256x16xf32, #tpu.memory_space<vmem>>, vector<1x256x16xf32>
    %11 = vector.shape_cast %10 : vector<1x256x16xf32> to vector<256x16xf32>
    %cst = arith.constant dense<0.000000e+00> : vector<256x32xf32>
    %12 = tpu.matmul %11, %0, %cst {dimension_numbers = #tpu.dot_dimension_numbers<[1], [0], [0], [1], [0, 0, 1, 1], [], []>} : vector<256x16xf32>, vector<16x32xf32>, vector<256x32xf32> -> vector<256x32xf32>
    %13 = vector.broadcast %3 : vector<1x32xf32> to vector<256x32xf32>
    %14 = arith.addf %12, %13 : vector<256x32xf32>
    %cst_13 = arith.constant 0.000000e+00 : f32
    %15 = vector.broadcast %cst_13 : f32 to vector<256x32xf32>
    %16 = arith.maximumf %14, %15 : vector<256x32xf32>
    %cst_14 = arith.constant dense<0.000000e+00> : vector<256x32xf32>
    %17 = tpu.matmul %16, %1, %cst_14 {dimension_numbers = #tpu.dot_dimension_numbers<[1], [0], [0], [1], [0, 0, 1, 1], [], []>} : vector<256x32xf32>, vector<32x32xf32>, vector<256x32xf32> -> vector<256x32xf32>
    %18 = vector.broadcast %4 : vector<1x32xf32> to vector<256x32xf32>
    %19 = arith.addf %17, %18 : vector<256x32xf32>
    %cst_15 = arith.constant dense<0.000000e+00> : vector<256x64xf32>
    %20 = tpu.matmul %19, %2, %cst_15 {dimension_numbers = #tpu.dot_dimension_numbers<[1], [0], [0], [1], [0, 0, 1, 1], [], []>} : vector<256x32xf32>, vector<32x64xf32>, vector<256x64xf32> -> vector<256x64xf32>
    %21 = vector.extract_strided_slice %20 {offsets = [0, 0], sizes = [128, 32], strides = [1, 1]} : vector<256x64xf32> to vector<128x32xf32>
    %22 = vector.broadcast %5 : vector<1x32xf32> to vector<128x32xf32>
    %23 = arith.addf %21, %22 : vector<128x32xf32>
    %c0_16 = arith.constant 0 : index
    %c0_17 = arith.constant 0 : index
    %24 = vector.load %arg6[%c0_16, %c0_17] : memref<128x32xf32, #tpu.memory_space<vmem>>, vector<128x32xf32>
    tpu.vector_store %arg6[%c0_16, %c0_17], %23 {strides = array<i32>} : memref<128x32xf32, #tpu.memory_space<vmem>>, vector<128x32xf32>,
    %25 = vector.extract_strided_slice %20 {offsets = [128, 32], sizes = [128, 32], strides = [1, 1]} : vector<256x64xf32> to vector<128x32xf32>
    %c0_18 = arith.constant 0 : index
    %c0_19 = arith.constant 0 : index
    %26 = vector.load %arg7[%c0_18, %c0_19] : memref<128x32xf32, #tpu.memory_space<vmem>>, vector<128x32xf32>
    tpu.vector_store %arg7[%c0_18, %c0_19], %25 {strides = array<i32>} : memref<128x32xf32, #tpu.memory_space<vmem>>, vector<128x32xf32>,
    %c0_i32 = arith.constant 0 : i32
    %c4_i32 = arith.constant 4 : i32
    %27 = arith.addi %c0_i32, %c4_i32 : i32
    %c1_i32 = arith.constant 1 : i32
    scf.for %arg8 = %c0_i32 to %27 step %c1_i32  : i32 {
      %c1_i32_21 = arith.constant 1 : i32
      %28 = arith.muli %arg8, %c1_i32_21 : i32
      %c0_i32_22 = arith.constant 0 : i32
      %29 = arith.addi %c0_i32_22, %28 : i32
      %c8_i32 = arith.constant 8 : i32
      %30 = arith.muli %29, %c8_i32 : i32
      %31 = tpu.assume_multiple %30, 8 : i32
      %c0_i32_23 = arith.constant 0 : i32
      %32 = arith.addi %c0_i32_23, %31 : i32
      %33 = arith.index_cast %32 : i32 to index
      %c0_24 = arith.constant 0 : index
      %34 = vector.load %arg6[%33, %c0_24] : memref<128x32xf32, #tpu.memory_space<vmem>>, vector<8x32xf32>
      %c0_25 = arith.constant 0 : index
      %c0_26 = arith.constant 0 : index
      %35 = vector.load %arg7[%c0_25, %c0_26] : memref<128x32xf32, #tpu.memory_space<vmem>>, vector<32x32xf32>
      %36 = vector.shape_cast %34 : vector<8x32xf32> to vector<8x1x32xf32>
      %37 = vector.shape_cast %35 : vector<32x32xf32> to vector<1x32x32xf32>
      %38 = vector.broadcast %36 : vector<8x1x32xf32> to vector<8x32x32xf32>
      %39 = vector.broadcast %37 : vector<1x32x32xf32> to vector<8x32x32xf32>
      %40 = arith.addf %38, %39 : vector<8x32x32xf32>
      %cst_27 = arith.constant 0.000000e+00 : f32
      %41 = vector.broadcast %cst_27 : f32 to vector<8x32x32xf32>
      %42 = arith.maximumf %40, %41 : vector<8x32x32xf32>
      %43 = vector.broadcast %8 : vector<1x1x32xf32> to vector<8x32x32xf32>
      %44 = arith.mulf %42, %43 : vector<8x32x32xf32>
      %cst_28 = arith.constant dense<0.000000e+00> : vector<8x32xf32>
      %45 = vector.multi_reduction <add>, %44, %cst_28 [2] : vector<8x32x32xf32> to vector<8x32xf32>
      %c32_i32 = arith.constant 32 : i32
      %46 = arith.addi %c32_i32, %31 : i32
      %47 = arith.index_cast %46 : i32 to index
      %c0_29 = arith.constant 0 : index
      %48 = vector.load %arg6[%47, %c0_29] : memref<128x32xf32, #tpu.memory_space<vmem>>, vector<8x32xf32>
      %c32 = arith.constant 32 : index
      %c0_30 = arith.constant 0 : index
      %49 = vector.load %arg7[%c32, %c0_30] : memref<128x32xf32, #tpu.memory_space<vmem>>, vector<32x32xf32>
      %50 = vector.shape_cast %48 : vector<8x32xf32> to vector<8x1x32xf32>
      %51 = vector.shape_cast %49 : vector<32x32xf32> to vector<1x32x32xf32>
      %52 = vector.broadcast %50 : vector<8x1x32xf32> to vector<8x32x32xf32>
      %53 = vector.broadcast %51 : vector<1x32x32xf32> to vector<8x32x32xf32>
      %54 = arith.addf %52, %53 : vector<8x32x32xf32>
      %cst_31 = arith.constant 0.000000e+00 : f32
      %55 = vector.broadcast %cst_31 : f32 to vector<8x32x32xf32>
      %56 = arith.maximumf %54, %55 : vector<8x32x32xf32>
      %57 = vector.broadcast %8 : vector<1x1x32xf32> to vector<8x32x32xf32>
      %58 = arith.mulf %56, %57 : vector<8x32x32xf32>
      %cst_32 = arith.constant dense<0.000000e+00> : vector<8x32xf32>
      %59 = vector.multi_reduction <add>, %58, %cst_32 [2] : vector<8x32x32xf32> to vector<8x32xf32>
      %c64_i32 = arith.constant 64 : i32
      %60 = arith.addi %c64_i32, %31 : i32
      %61 = arith.index_cast %60 : i32 to index
      %c0_33 = arith.constant 0 : index
      %62 = vector.load %arg6[%61, %c0_33] : memref<128x32xf32, #tpu.memory_space<vmem>>, vector<8x32xf32>
      %c64 = arith.constant 64 : index
      %c0_34 = arith.constant 0 : index
      %63 = vector.load %arg7[%c64, %c0_34] : memref<128x32xf32, #tpu.memory_space<vmem>>, vector<32x32xf32>
      %64 = vector.shape_cast %62 : vector<8x32xf32> to vector<8x1x32xf32>
      %65 = vector.shape_cast %63 : vector<32x32xf32> to vector<1x32x32xf32>
      %66 = vector.broadcast %64 : vector<8x1x32xf32> to vector<8x32x32xf32>
      %67 = vector.broadcast %65 : vector<1x32x32xf32> to vector<8x32x32xf32>
      %68 = arith.addf %66, %67 : vector<8x32x32xf32>
      %cst_35 = arith.constant 0.000000e+00 : f32
      %69 = vector.broadcast %cst_35 : f32 to vector<8x32x32xf32>
      %70 = arith.maximumf %68, %69 : vector<8x32x32xf32>
      %71 = vector.broadcast %8 : vector<1x1x32xf32> to vector<8x32x32xf32>
      %72 = arith.mulf %70, %71 : vector<8x32x32xf32>
      %cst_36 = arith.constant dense<0.000000e+00> : vector<8x32xf32>
      %73 = vector.multi_reduction <add>, %72, %cst_36 [2] : vector<8x32x32xf32> to vector<8x32xf32>
      %c96_i32 = arith.constant 96 : i32
      %74 = arith.addi %c96_i32, %31 : i32
      %75 = arith.index_cast %74 : i32 to index
      %c0_37 = arith.constant 0 : index
      %76 = vector.load %arg6[%75, %c0_37] : memref<128x32xf32, #tpu.memory_space<vmem>>, vector<8x32xf32>
      %c96 = arith.constant 96 : index
      %c0_38 = arith.constant 0 : index
      %77 = vector.load %arg7[%c96, %c0_38] : memref<128x32xf32, #tpu.memory_space<vmem>>, vector<32x32xf32>
      %78 = vector.shape_cast %76 : vector<8x32xf32> to vector<8x1x32xf32>
      %79 = vector.shape_cast %77 : vector<32x32xf32> to vector<1x32x32xf32>
      %80 = vector.broadcast %78 : vector<8x1x32xf32> to vector<8x32x32xf32>
      %81 = vector.broadcast %79 : vector<1x32x32xf32> to vector<8x32x32xf32>
      %82 = arith.addf %80, %81 : vector<8x32x32xf32>
      %cst_39 = arith.constant 0.000000e+00 : f32
      %83 = vector.broadcast %cst_39 : f32 to vector<8x32x32xf32>
      %84 = arith.maximumf %82, %83 : vector<8x32x32xf32>
      %85 = vector.broadcast %8 : vector<1x1x32xf32> to vector<8x32x32xf32>
      %86 = arith.mulf %84, %85 : vector<8x32x32xf32>
      %cst_40 = arith.constant dense<0.000000e+00> : vector<8x32xf32>
      %87 = vector.multi_reduction <add>, %86, %cst_40 [2] : vector<8x32x32xf32> to vector<8x32xf32>
      %88 = tpu.concatenate %45, %59, %73, %87 in 1 : vector<8x32xf32>, vector<8x32xf32>, vector<8x32xf32>, vector<8x32xf32> -> vector<8x128xf32>
      %89 = vector.broadcast %9 : f32 to vector<8x128xf32>
      %90 = arith.addf %88, %89 : vector<8x128xf32>
      %cst_41 = arith.constant 5.000000e-01 : f32
      %91 = vector.broadcast %cst_41 : f32 to vector<8x128xf32>
      %92 = arith.mulf %91, %90 : vector<8x128xf32>
      %93 = math.tanh %92 : vector<8x128xf32>
      %cst_42 = arith.constant 1.000000e+00 : f32
      %94 = vector.broadcast %cst_42 : f32 to vector<8x128xf32>
      %95 = arith.addf %93, %94 : vector<8x128xf32>
      %cst_43 = arith.constant 5.000000e-01 : f32
      %96 = vector.broadcast %cst_43 : f32 to vector<8x128xf32>
      %97 = arith.mulf %96, %95 : vector<8x128xf32>
      %c0_44 = arith.constant 0 : index
      %98 = arith.index_cast %31 : i32 to index
      %c0_45 = arith.constant 0 : index
      %99 = vector.load %arg5[%c0_44, %98, %c0_45] : memref<1x32x128xf32, #tpu.memory_space<vmem>>, vector<1x8x128xf32>
      %100 = vector.shape_cast %99 : vector<1x8x128xf32> to vector<8x128xf32>
      %101 = vector.shape_cast %97 : vector<8x128xf32> to vector<1x8x128xf32>
      tpu.vector_store %arg5[%c0_44, %98, %c0_45], %101 {strides = array<i32>} : memref<1x32x128xf32, #tpu.memory_space<vmem>>, vector<1x8x128xf32>,
    }
    %c4_i32_20 = arith.constant 4 : i32
    return
  }
  func.func @transform_0(%arg0: i32) -> (i32, i32, i32) {
    %c0_i32 = arith.constant 0 : i32
    %c0_i32_0 = arith.constant 0 : i32
    %c0_i32_1 = arith.constant 0 : i32
    return %arg0, %c0_i32, %c0_i32_0 : i32, i32, i32
  }
  func.func @transform_1(%arg0: i32) -> (i32, i32) {
    %c0_i32 = arith.constant 0 : i32
    %c0_i32_0 = arith.constant 0 : i32
    %c0_i32_1 = arith.constant 0 : i32
    return %c0_i32, %c0_i32_0 : i32, i32
  }
  func.func @transform_2(%arg0: i32) -> (i32, i32) {
    %c0_i32 = arith.constant 0 : i32
    %c0_i32_0 = arith.constant 0 : i32
    %c0_i32_1 = arith.constant 0 : i32
    return %c0_i32, %c0_i32_0 : i32, i32
  }
  func.func @transform_3(%arg0: i32) -> (i32, i32) {
    %c0_i32 = arith.constant 0 : i32
    %c0_i32_0 = arith.constant 0 : i32
    %c0_i32_1 = arith.constant 0 : i32
    return %c0_i32, %c0_i32_0 : i32, i32
  }
  func.func @transform_4(%arg0: i32) -> (i32, i32, i32) {
    %c0_i32 = arith.constant 0 : i32
    %c0_i32_0 = arith.constant 0 : i32
    %c0_i32_1 = arith.constant 0 : i32
    return %arg0, %c0_i32, %c0_i32_0 : i32, i32, i32
  }
}

</mosaic_0001>

<llo_original>
// kernel: structural_learning_forward.1
$region0: #{structural_learning_forward.1}
  #allocation0 [shape = 'u32[]', space=smem, size = 0x4, offset = 0x4, fixed_abs, tag = 'smem constant byte address 0x4 - core index']
  #allocation1 [shape = 'u32[144,128]{1,0:T(1,128)}', space=vmem, size = 0x12000, scoped, tag = 'internal scratch']
  #allocation2 [shape = 'f32[128,32]{1,0:T(8,128)}', space=vmem, size = 0x10000, scoped, tag = 'scratch operand']
  #allocation3 [shape = 'f32[128,32]{1,0:T(8,128)}', space=vmem, size = 0x10000, scoped, tag = 'scratch operand']
  #allocation4 [shape = 'f32[1,1]{1,0:T(1,128)S(6)}', space=smem, size = 0x200, scoped, tag = 'scoped memory for structural_learning_forward.1']
  %s0 = inlined_call_operand.vmem [shape: f32[2,256,16], index: 0, kind: input, shape index: {}]
  %s1 = inlined_call_operand.vmem [shape: f32[80,64], index: 1, kind: input, shape index: {}]
  %s2 = inlined_call_operand.vmem [shape: f32[4,32], index: 2, kind: input, shape index: {}]
  %s3 = inlined_call_operand.<no memory space> [shape: f32[1,1], index: 3, kind: input, shape index: {}]
  %s4 = inlined_call_operand.vmem [shape: f32[2,32,128], index: 4, kind: output, shape index: {}]
  %s5 = sld [smem:[#allocation0]]
  $region56: #{structural_learning_forward.1} parent=0
    _
  %s7 = ssub.s32 1, %s5
  %s8 = scalar_select 0, %s7, %s5
  %9 = sst [smem:[#allocation4]] %s3
  loop: start=0, step=1, limit=4
  $region2: #{structural_learning_forward.1} parent=0 // loop_pre_header
    _
  $region3: #{structural_learning_forward.1} parent=0 // loop_header
    %s11 = sphi 0, %s15
    %p12 = scmp.ge.s32.totalorder %s11, 4
    %s21 = sphi 0, %s23
    %s24 = sphi 0, %s21
    %s25 = sphi 0, %s24
    %s41 = sphi 0, %s25
    %s45 = sphi 0, %s45
    %s47 = sphi 0, %s45
    %s48 = sphi 0, %s47
    %s62 = sphi 0, %s48
    %s66 = sphi 0, %s66
    %s68 = sphi 0, %s66
    %s69 = sphi 0, %s68
    %s83 = sphi 0, %s69
    %s87 = sphi 0, %s87
    %s89 = sphi 0, %s87
    %s90 = sphi 0, %s89
    %s104 = sphi 0, %s90
    %s110 = sphi 0, %s112
    %s113 = sphi 0, %s110
    %s114 = sphi 0, %s113
    %s130 = sphi 0, %s114
  $region4: #{structural_learning_forward.1} parent=0 // loop_header_branch
    %14 = sbr.rel (%p12) target = $region8
  $region5: #{structural_learning_forward.1} parent=0 // loop_body
    %s16 = ssub.s32 %s11, 1
    %s17 = ssub.s32 %s11, 2
    %s18 = sadd.s32 %s11, 1
    %s19 = ssub.s32 %s11, %s18
    %p20 = scmp.eq.s32.totalorder %s19, 0
    %s22 = sadd.s32 %s21, 1
    %s23 = scalar_select %p20, %s21, %s22
    %p26 = pneg %p20
    %p27 = scmp.eq.s32.totalorder %s11, 1
    %p28 = por %p26, %p27
    %p29 = scmp.ne.s32.totalorder %s21, %s24
    %p30 = scmp.eq.s32.totalorder %s11, 0
    %p31 = por %p29, %p30
    %p32 = scmp.ne.s32.totalorder %s21, %s24
    %p33 = scmp.eq.s32.totalorder %s16, 1
    %p34 = por %p32, %p33
    %p35 = scmp.ne.s32.totalorder %s24, %s25
    %p36 = scmp.eq.s32.totalorder %s16, 0
    %p37 = por %p35, %p36
    %p38 = scmp.ne.s32.totalorder %s24, %s25
    %p39 = scmp.eq.s32.totalorder %s17, 1
    %p40 = por %p38, %p39
    %p42 = scmp.ne.s32.totalorder %s25, %s41
    %p43 = scmp.eq.s32.totalorder %s17, 0
    %p44 = por %p42, %p43
    %s46 = sadd.s32 %s45, 1
    %p49 = scmp.eq.s32.totalorder %s11, 1
    %p50 = scmp.ne.s32.totalorder %s45, %s47
    %p51 = scmp.eq.s32.totalorder %s11, 0
    %p52 = por %p50, %p51
    %p53 = scmp.ne.s32.totalorder %s45, %s47
    %p54 = scmp.eq.s32.totalorder %s16, 1
    %p55 = por %p53, %p54
    %p56 = scmp.ne.s32.totalorder %s47, %s48
    %p57 = scmp.eq.s32.totalorder %s16, 0
    %p58 = por %p56, %p57
    %p59 = scmp.ne.s32.totalorder %s47, %s48
    %p60 = scmp.eq.s32.totalorder %s17, 1
    %p61 = por %p59, %p60
    %p63 = scmp.ne.s32.totalorder %s48, %s62
    %p64 = scmp.eq.s32.totalorder %s17, 0
    %p65 = por %p63, %p64
    %s67 = sadd.s32 %s66, 1
    %p70 = scmp.eq.s32.totalorder %s11, 1
    %p71 = scmp.ne.s32.totalorder %s66, %s68
    %p72 = scmp.eq.s32.totalorder %s11, 0
    %p73 = por %p71, %p72
    %p74 = scmp.ne.s32.totalorder %s66, %s68
    %p75 = scmp.eq.s32.totalorder %s16, 1
    %p76 = por %p74, %p75
    %p77 = scmp.ne.s32.totalorder %s68, %s69
    %p78 = scmp.eq.s32.totalorder %s16, 0
    %p79 = por %p77, %p78
    %p80 = scmp.ne.s32.totalorder %s68, %s69
    %p81 = scmp.eq.s32.totalorder %s17, 1
    %p82 = por %p80, %p81
    %p84 = scmp.ne.s32.totalorder %s69, %s83
    %p85 = scmp.eq.s32.totalorder %s17, 0
    %p86 = por %p84, %p85
    %s88 = sadd.s32 %s87, 1
    %p91 = scmp.eq.s32.totalorder %s11, 1
    %p92 = scmp.ne.s32.totalorder %s87, %s89
    %p93 = scmp.eq.s32.totalorder %s11, 0
    %p94 = por %p92, %p93
    %p95 = scmp.ne.s32.totalorder %s87, %s89
    %p96 = scmp.eq.s32.totalorder %s16, 1
    %p97 = por %p95, %p96
    %p98 = scmp.ne.s32.totalorder %s89, %s90
    %p99 = scmp.eq.s32.totalorder %s16, 0
    %p100 = por %p98, %p99
    %p101 = scmp.ne.s32.totalorder %s89, %s90
    %p102 = scmp.eq.s32.totalorder %s17, 1
    %p103 = por %p101, %p102
    %p105 = scmp.ne.s32.totalorder %s90, %s104
    %p106 = scmp.eq.s32.totalorder %s17, 0
    %p107 = por %p105, %p106
    %s108 = ssub.s32 %s11, %s18
    %p109 = scmp.eq.s32.totalorder %s108, 0
    %s111 = sadd.s32 %s110, 1
    %s112 = scalar_select %p109, %s110, %s111
    %p115 = pneg %p109
    %p116 = scmp.eq.s32.totalorder %s11, 1
    %p117 = por %p115, %p116
    %p118 = scmp.ne.s32.totalorder %s110, %s113
    %p119 = scmp.eq.s32.totalorder %s11, 0
    %p120 = por %p118, %p119
    %p121 = scmp.ne.s32.totalorder %s110, %s113
    %p122 = scmp.eq.s32.totalorder %s16, 1
    %p123 = por %p121, %p122
    %p124 = scmp.ne.s32.totalorder %s113, %s114
    %p125 = scmp.eq.s32.totalorder %s16, 0
    %p126 = por %p124, %p125
    %p127 = scmp.ne.s32.totalorder %s113, %s114
    %p128 = scmp.eq.s32.totalorder %s17, 1
    %p129 = por %p127, %p128
    %p131 = scmp.ne.s32.totalorder %s114, %s130
    %p132 = scmp.eq.s32.totalorder %s17, 0
    %p133 = por %p131, %p132
    %p134 = scmp.le.s32.totalorder 1, %s11
    %p135 = scmp.lt.s32.totalorder %s11, 3
    %p136 = pnand %p134, %p135
    %p137 = pneg %p136
    // Predicated region
    $region9: #{structural_learning_forward.1} parent=5 // pred_check
      _
    $region10: #{structural_learning_forward.1} parent=5 // pred_check_branch
      %139 = sbr.rel (%p136) target = $region12
    $region11: #{structural_learning_forward.1} parent=5 // pred_region
      %s140 = ssub.s32 %s11, 1
      // Predicated region
      $region13: #{structural_learning_forward.1} parent=11 // pred_check
        %p141 = pneg %p58
      $region14: #{structural_learning_forward.1} parent=11 // pred_check_branch
        %143 = sbr.rel (%p141) target = $region16
      $region15: #{structural_learning_forward.1} parent=11 // pred_region
        _
      $region16: #{structural_learning_forward.1} parent=11 // pred_fallthru
        _
      // Predicated region
      $region17: #{structural_learning_forward.1} parent=11 // pred_check
        %p144 = pneg %p79
      $region18: #{structural_learning_forward.1} parent=11 // pred_check_branch
        %146 = sbr.rel (%p144) target = $region20
      $region19: #{structural_learning_forward.1} parent=11 // pred_region
        _
      $region20: #{structural_learning_forward.1} parent=11 // pred_fallthru
        _
      // Predicated region
      $region21: #{structural_learning_forward.1} parent=11 // pred_check
        %p147 = pneg %p100
      $region22: #{structural_learning_forward.1} parent=11 // pred_check_branch
        %149 = sbr.rel (%p147) target = $region24
      $region23: #{structural_learning_forward.1} parent=11 // pred_region
        _
      $region24: #{structural_learning_forward.1} parent=11 // pred_fallthru
        _
    $region12: #{structural_learning_forward.1} parent=5 // pred_fallthru
      _
    %p150 = scmp.lt.s32.totalorder %s11, 2
    // Predicated region
    $region25: #{structural_learning_forward.1} parent=5 // pred_check
      %p151 = pneg %p150
    $region26: #{structural_learning_forward.1} parent=5 // pred_check_branch
      %153 = sbr.rel (%p151) target = $region28
    $region27: #{structural_learning_forward.1} parent=5 // pred_region
      // Predicated region
      $region29: #{structural_learning_forward.1} parent=27 // pred_check
        %p154 = pneg %p31
      $region30: #{structural_learning_forward.1} parent=27 // pred_check_branch
        %156 = sbr.rel (%p154) target = $region32
      $region31: #{structural_learning_forward.1} parent=27 // pred_region
        %p157 = scmp.lt.s32.totalorder %s11, 1
        %s158 = scalar_select %p157, %s11, 1
        %s159 = smul.addr %s158, 32
        %s160 = smul.addr %s159, 8
        %s161 = scalar_lea.vmem %s0, %s160
      $region32: #{structural_learning_forward.1} parent=27 // pred_fallthru
        _
    $region28: #{structural_learning_forward.1} parent=5 // pred_fallthru
      _
    %p162 = scmp.le.s32.totalorder 1, %s11
    %p163 = scmp.lt.s32.totalorder %s11, 3
    %p164 = pnand %p162, %p163
    %p165 = pneg %p164
    // Predicated region
    $region33: #{structural_learning_forward.1} parent=5 // pred_check
      _
    $region34: #{structural_learning_forward.1} parent=5 // pred_check_branch
      %167 = sbr.rel (%p164) target = $region36
    $region35: #{structural_learning_forward.1} parent=5 // pred_region
      %s168 = ssub.s32 %s11, 1
      %p169 = scmp.lt.s32.totalorder %s16, 1
      %s170 = scalar_select %p169, %s16, 1
      %s171 = smul.addr %s170, 32
      %s172 = smul.addr %s171, 8
      %s173 = scalar_lea.vmem %s0, %s172
      %p174 = pneg %p37
      %p175 = pneg %p34
      %p176 = pneg %p58
      %p177 = pneg %p55
      %p178 = pneg %p79
      %p179 = pneg %p76
      %p180 = pneg %p100
      %p181 = pneg %p97
      %p182 = pneg %p126
      %p183 = pneg %p123
      %p184 = scmp.lt.s32.totalorder %s16, 1
      %s185 = scalar_select %p184, %s16, 1
      %s186 = smul.addr %s185, 4
      %s187 = smul.addr %s186, 8
      %s188 = scalar_lea.vmem %s4, %s187
      %p189 = scmp.lt.s32.totalorder %s16, 1
      %s190 = scalar_select %p189, %s16, 1
      %s191 = smul.addr %s190, 32
      %s192 = smul.addr %s191, 8
      %s193 = scalar_lea.vmem %s0, %s192
      %p194 = scmp.lt.s32.totalorder %s16, 1
      %s195 = scalar_select %p194, %s16, 1
      %s196 = smul.addr %s195, 4
      %s197 = smul.addr %s196, 8
      %s198 = scalar_lea.vmem %s4, %s197
      %v199 = vld [vmem:[%s1] sm:$0xff]
      %v200 = vld [vmem:[%s1 + $0x8] sm:$0xff]
      %v201 = vld [vmem:[%s1 + $0x10] sm:$0xff]
      %v202 = vld [vmem:[%s1 + $0x18] sm:$0xff]
      %v203 = vld [vmem:[%s1 + $0x20] sm:$0xff]
      %v204 = vld [vmem:[%s1 + $0x28] sm:$0xff]
      %v205 = vld [vmem:[%s1 + $0x30] sm:$0xff]
      %v206 = vld [vmem:[%s1 + $0x38] sm:$0xff]
      %v207 = vld [vmem:[%s1 + $0x40] sm:$0xff]
      %v208 = vld [vmem:[%s1 + $0x48] sm:$0xff]
      %v209 = vld [vmem:[%s2] sm:$0x1]
      %v210 = vld [vmem:[%s2 + $0x1] sm:$0x1]
      %v211 = vld [vmem:[%s2 + $0x2] sm:$0x1]
      %v212 = vld [vmem:[%s2 + $0x3] sm:$0x1]
      %s213 = sld [smem:[#allocation4]]
      %v214 = vld [vmem:[%s193] sm:$0xff]
      %v215 = vld [vmem:[%s193 + $0x8] sm:$0xff]
      %v216 = vld [vmem:[%s193 + $0x10] sm:$0xff]
      %v217 = vld [vmem:[%s193 + $0x18] sm:$0xff]
      %v218 = vld [vmem:[%s193 + $0x20] sm:$0xff]
      %v219 = vld [vmem:[%s193 + $0x28] sm:$0xff]
      %v220 = vld [vmem:[%s193 + $0x30] sm:$0xff]
      %v221 = vld [vmem:[%s193 + $0x38] sm:$0xff]
      %v222 = vld [vmem:[%s193 + $0x40] sm:$0xff]
      %v223 = vld [vmem:[%s193 + $0x48] sm:$0xff]
      %v224 = vld [vmem:[%s193 + $0x50] sm:$0xff]
      %v225 = vld [vmem:[%s193 + $0x58] sm:$0xff]
      %v226 = vld [vmem:[%s193 + $0x60] sm:$0xff]
      %v227 = vld [vmem:[%s193 + $0x68] sm:$0xff]
      %v228 = vld [vmem:[%s193 + $0x70] sm:$0xff]
      %v229 = vld [vmem:[%s193 + $0x78] sm:$0xff]
      %v230 = vld [vmem:[%s193 + $0x80] sm:$0xff]
      %v231 = vld [vmem:[%s193 + $0x88] sm:$0xff]
      %v232 = vld [vmem:[%s193 + $0x90] sm:$0xff]
      %v233 = vld [vmem:[%s193 + $0x98] sm:$0xff]
      %v234 = vld [vmem:[%s193 + $0xa0] sm:$0xff]
      %v235 = vld [vmem:[%s193 + $0xa8] sm:$0xff]
      %v236 = vld [vmem:[%s193 + $0xb0] sm:$0xff]
      %v237 = vld [vmem:[%s193 + $0xb8] sm:$0xff]
      %v238 = vld [vmem:[%s193 + $0xc0] sm:$0xff]
      %v239 = vld [vmem:[%s193 + $0xc8] sm:$0xff]
      %v240 = vld [vmem:[%s193 + $0xd0] sm:$0xff]
      %v241 = vld [vmem:[%s193 + $0xd8] sm:$0xff]
      %v242 = vld [vmem:[%s193 + $0xe0] sm:$0xff]
      %v243 = vld [vmem:[%s193 + $0xe8] sm:$0xff]
      %v244 = vld [vmem:[%s193 + $0xf0] sm:$0xff]
      %v245 = vld [vmem:[%s193 + $0xf8] sm:$0xff]
      %v246 = vlaneseq
      %v247 = vshrl.u32 %v246, 7
      %v248 = vsub.s32 0, %v247
      %v249 = vrot.slane %v209, %v248
      %vm250 = vcmask 130048
      %v252 = vsel %vm250, %v214, 0
      %v255 = vsel %vm250, %v215, 0
      %v258 = vsel %vm250, %v216, 0
      %v261 = vsel %vm250, %v217, 0
      %v264 = vsel %vm250, %v218, 0
      %v267 = vsel %vm250, %v219, 0
      %v270 = vsel %vm250, %v220, 0
      %v273 = vsel %vm250, %v221, 0
      %v276 = vsel %vm250, %v222, 0
      %v279 = vsel %vm250, %v223, 0
      %v282 = vsel %vm250, %v224, 0
      %v285 = vsel %vm250, %v225, 0
      %v288 = vsel %vm250, %v226, 0
      %v291 = vsel %vm250, %v227, 0
      %v294 = vsel %vm250, %v228, 0
      %v297 = vsel %vm250, %v229, 0
      %v300 = vsel %vm250, %v230, 0
      %v303 = vsel %vm250, %v231, 0
      %v306 = vsel %vm250, %v232, 0
      %v309 = vsel %vm250, %v233, 0
      %v312 = vsel %vm250, %v234, 0
      %v315 = vsel %vm250, %v235, 0
      %v318 = vsel %vm250, %v236, 0
      %v321 = vsel %vm250, %v237, 0
      %v324 = vsel %vm250, %v238, 0
      %v327 = vsel %vm250, %v239, 0
      %v330 = vsel %vm250, %v240, 0
      %v333 = vsel %vm250, %v241, 0
      %v336 = vsel %vm250, %v242, 0
      %v339 = vsel %vm250, %v243, 0
      %v342 = vsel %vm250, %v244, 0
      %v345 = vsel %vm250, %v245, 0
      %347 = vmatprep.subr.mxu0 0.0
      %348 = vmatpush1.msra.mxu0 %v199
      %349 = vmatprep.subr.mxu0 0.0
      %350 = vmatpush1.msra.mxu0 %v200
      %351 = vmatprep.subr.mxu0 0.0
      %352 = vmatpush1.msra.mxu0 0.0
      %353 = vmatprep.subr.mxu0 0.0
      %354 = vmatpush1.msra.mxu0 0.0
      %355 = vmatprep.subr.mxu0 0.0
      %356 = vmatpush1.msra.mxu0 0.0
      %357 = vmatprep.subr.mxu0 0.0
      %358 = vmatpush1.msra.mxu0 0.0
      %359 = vmatprep.subr.mxu0 0.0
      %360 = vmatpush1.msra.mxu0 0.0
      %361 = vmatprep.subr.mxu0 0.0
      %362 = vmatpush1.msra.mxu0 0.0
      %363 = vmatprep.subr.mxu0 0.0
      %364 = vmatpush1.msra.mxu0 0.0
      %365 = vmatprep.subr.mxu0 0.0
      %366 = vmatpush1.msra.mxu0 0.0
      %367 = vmatprep.subr.mxu0 0.0
      %368 = vmatpush1.msra.mxu0 0.0
      %369 = vmatprep.subr.mxu0 0.0
      %370 = vmatpush1.msra.mxu0 0.0
      %371 = vmatprep.subr.mxu0 0.0
      %372 = vmatpush1.msra.mxu0 0.0
      %373 = vmatprep.subr.mxu0 0.0
      %374 = vmatpush1.msra.mxu0 0.0
      %375 = vmatprep.subr.mxu0 0.0
      %376 = vmatpush1.msra.mxu0 0.0
      %377 = vmatprep.subr.mxu0 0.0
      %378 = vmatpush1.msra.mxu0 0.0
      %379 = vmatprep.subr.mxu0 0.0
      %380 = vmatpush1.msra.mxu0 0.0
      %381 = vmatprep.subr.mxu0 0.0
      %382 = vmatpush1.msra.mxu0 0.0
      %383 = vmatprep.subr.mxu0 0.0
      %384 = vmatpush1.msra.mxu0 0.0
      %385 = vmatprep.subr.mxu0 0.0
      %386 = vmatpush1.msra.mxu0 0.0
      %387 = vmatprep.subr.mxu0 0.0
      %388 = vmatpush1.msra.mxu0 0.0
      %389 = vmatprep.subr.mxu0 0.0
      %390 = vmatpush1.msra.mxu0 0.0
      %391 = vmatprep.subr.mxu0 0.0
      %392 = vmatpush1.msra.mxu0 0.0
      %393 = vmatprep.subr.mxu0 0.0
      %394 = vmatpush1.msra.mxu0 0.0
      %395 = vmatprep.subr.mxu0 0.0
      %396 = vmatpush1.msra.mxu0 0.0
      %397 = vmatprep.subr.mxu0 0.0
      %398 = vmatpush1.msra.mxu0 0.0
      %399 = vmatprep.subr.mxu0 0.0
      %400 = vmatpush1.msra.mxu0 0.0
      %401 = vmatprep.subr.mxu0 0.0
      %402 = vmatpush1.msra.mxu0 0.0
      %403 = vmatprep.subr.mxu0 0.0
      %404 = vmatpush1.msra.mxu0 0.0
      %405 = vmatprep.subr.mxu0 0.0
      %406 = vmatpush1.msra.mxu0 0.0
      %407 = vmatprep.subr.mxu0 0.0
      %408 = vmatpush1.msra.mxu0 0.0
      %409 = vmatprep.subr.mxu0 0.0
      %410 = vmatpush1.msra.mxu0 0.0
      %411 = vmatprep.mubr.f32.mxu0 0.0
      %412 = vmatmul.mubr.f32.gmra.mrb[0].mxu0 %v252
      %v413 = vpop.f32.mrb[0].mxu0
      %v414 = vadd.f32 %v249, %v413
      %v415 = vpop.f32.mrb[0].mxu0
      %416 = vmatprep.mubr.f32.mxu0 0.0
      %417 = vmatmul.mubr.f32.gmra.mrb[0].mxu0 %v255
      %v418 = vpop.f32.mrb[0].mxu0
      %v419 = vadd.f32 %v249, %v418
      %v420 = vpop.f32.mrb[0].mxu0
      %421 = vmatprep.mubr.f32.mxu0 0.0
      %422 = vmatmul.mubr.f32.gmra.mrb[0].mxu0 %v258
      %v423 = vpop.f32.mrb[0].mxu0
      %v424 = vadd.f32 %v249, %v423
      %v425 = vpop.f32.mrb[0].mxu0
      %426 = vmatprep.mubr.f32.mxu0 0.0
      %427 = vmatmul.mubr.f32.gmra.mrb[0].mxu0 %v261
      %v428 = vpop.f32.mrb[0].mxu0
      %v429 = vadd.f32 %v249, %v428
      %v430 = vpop.f32.mrb[0].mxu0
      %431 = vmatprep.mubr.f32.mxu0 0.0
      %432 = vmatmul.mubr.f32.gmra.mrb[0].mxu0 %v264
      %v433 = vpop.f32.mrb[0].mxu0
      %v434 = vadd.f32 %v249, %v433
      %v435 = vpop.f32.mrb[0].mxu0
      %436 = vmatprep.mubr.f32.mxu0 0.0
      %437 = vmatmul.mubr.f32.gmra.mrb[0].mxu0 %v267
      %v438 = vpop.f32.mrb[0].mxu0
      %v439 = vadd.f32 %v249, %v438
      %v440 = vpop.f32.mrb[0].mxu0
      %441 = vmatprep.mubr.f32.mxu0 0.0
      %442 = vmatmul.mubr.f32.gmra.mrb[0].mxu0 %v270
      %v443 = vpop.f32.mrb[0].mxu0
      %v444 = vadd.f32 %v249, %v443
      %v445 = vpop.f32.mrb[0].mxu0
      %446 = vmatprep.mubr.f32.mxu0 0.0
      %447 = vmatmul.mubr.f32.gmra.mrb[0].mxu0 %v273
      %v448 = vpop.f32.mrb[0].mxu0
      %v449 = vadd.f32 %v249, %v448
      %v450 = vpop.f32.mrb[0].mxu0
      %451 = vmatprep.mubr.f32.mxu0 0.0
      %452 = vmatmul.mubr.f32.gmra.mrb[0].mxu0 %v276
      %v453 = vpop.f32.mrb[0].mxu0
      %v454 = vadd.f32 %v249, %v453
      %v455 = vpop.f32.mrb[0].mxu0
      %456 = vmatprep.mubr.f32.mxu0 0.0
      %457 = vmatmul.mubr.f32.gmra.mrb[0].mxu0 %v279
      %v458 = vpop.f32.mrb[0].mxu0
      %v459 = vadd.f32 %v249, %v458
      %v460 = vpop.f32.mrb[0].mxu0
      %461 = vmatprep.mubr.f32.mxu0 0.0
      %462 = vmatmul.mubr.f32.gmra.mrb[0].mxu0 %v282
      %v463 = vpop.f32.mrb[0].mxu0
      %v464 = vadd.f32 %v249, %v463
      %v465 = vpop.f32.mrb[0].mxu0
      %466 = vmatprep.mubr.f32.mxu0 0.0
      %467 = vmatmul.mubr.f32.gmra.mrb[0].mxu0 %v285
      %v468 = vpop.f32.mrb[0].mxu0
      %v469 = vadd.f32 %v249, %v468
      %v470 = vpop.f32.mrb[0].mxu0
      %471 = vmatprep.mubr.f32.mxu0 0.0
      %472 = vmatmul.mubr.f32.gmra.mrb[0].mxu0 %v288
      %v473 = vpop.f32.mrb[0].mxu0
      %v474 = vadd.f32 %v249, %v473
      %v475 = vpop.f32.mrb[0].mxu0
      %476 = vmatprep.mubr.f32.mxu0 0.0
      %477 = vmatmul.mubr.f32.gmra.mrb[0].mxu0 %v291
      %v478 = vpop.f32.mrb[0].mxu0
      %v479 = vadd.f32 %v249, %v478
      %v480 = vpop.f32.mrb[0].mxu0
      %481 = vmatprep.mubr.f32.mxu0 0.0
      %482 = vmatmul.mubr.f32.gmra.mrb[0].mxu0 %v294
      %v483 = vpop.f32.mrb[0].mxu0
      %v484 = vadd.f32 %v249, %v483
      %v485 = vpop.f32.mrb[0].mxu0
      %486 = vmatprep.mubr.f32.mxu0 0.0
      %487 = vmatmul.mubr.f32.gmra.mrb[0].mxu0 %v297
      %v488 = vpop.f32.mrb[0].mxu0
      %v489 = vadd.f32 %v249, %v488
      %v490 = vpop.f32.mrb[0].mxu0
      %491 = vmatprep.mubr.f32.mxu0 0.0
      %492 = vmatmul.mubr.f32.gmra.mrb[0].mxu0 %v300
      %v493 = vpop.f32.mrb[0].mxu0
      %v494 = vadd.f32 %v249, %v493
      %v495 = vpop.f32.mrb[0].mxu0
      %496 = vmatprep.mubr.f32.mxu0 0.0
      %497 = vmatmul.mubr.f32.gmra.mrb[0].mxu0 %v303
      %v498 = vpop.f32.mrb[0].mxu0
      %v499 = vadd.f32 %v249, %v498
      %v500 = vpop.f32.mrb[0].mxu0
      %501 = vmatprep.mubr.f32.mxu0 0.0
      %502 = vmatmul.mubr.f32.gmra.mrb[0].mxu0 %v306
      %v503 = vpop.f32.mrb[0].mxu0
      %v504 = vadd.f32 %v249, %v503
      %v505 = vpop.f32.mrb[0].mxu0
      %506 = vmatprep.mubr.f32.mxu0 0.0
      %507 = vmatmul.mubr.f32.gmra.mrb[0].mxu0 %v309
      %v508 = vpop.f32.mrb[0].mxu0
      %v509 = vadd.f32 %v249, %v508
      %v510 = vpop.f32.mrb[0].mxu0
      %511 = vmatprep.mubr.f32.mxu0 0.0
      %512 = vmatmul.mubr.f32.gmra.mrb[0].mxu0 %v312
      %v513 = vpop.f32.mrb[0].mxu0
      %v514 = vadd.f32 %v249, %v513
      %v515 = vpop.f32.mrb[0].mxu0
      %516 = vmatprep.mubr.f32.mxu0 0.0
      %517 = vmatmul.mubr.f32.gmra.mrb[0].mxu0 %v315
      %v518 = vpop.f32.mrb[0].mxu0
      %v519 = vadd.f32 %v249, %v518
      %v520 = vpop.f32.mrb[0].mxu0
      %521 = vmatprep.mubr.f32.mxu0 0.0
      %522 = vmatmul.mubr.f32.gmra.mrb[0].mxu0 %v318
      %v523 = vpop.f32.mrb[0].mxu0
      %v524 = vadd.f32 %v249, %v523
      %v525 = vpop.f32.mrb[0].mxu0
      %526 = vmatprep.mubr.f32.mxu0 0.0
      %527 = vmatmul.mubr.f32.gmra.mrb[0].mxu0 %v321
      %v528 = vpop.f32.mrb[0].mxu0
      %v529 = vadd.f32 %v249, %v528
      %v530 = vpop.f32.mrb[0].mxu0
      %531 = vmatprep.mubr.f32.mxu0 0.0
      %532 = vmatmul.mubr.f32.gmra.mrb[0].mxu0 %v324
      %v533 = vpop.f32.mrb[0].mxu0
      %v534 = vadd.f32 %v249, %v533
      %v535 = vpop.f32.mrb[0].mxu0
      %536 = vmatprep.mubr.f32.mxu0 0.0
      %537 = vmatmul.mubr.f32.gmra.mrb[0].mxu0 %v327
      %v538 = vpop.f32.mrb[0].mxu0
      %v539 = vadd.f32 %v249, %v538
      %v540 = vpop.f32.mrb[0].mxu0
      %541 = vmatprep.mubr.f32.mxu0 0.0
      %542 = vmatmul.mubr.f32.gmra.mrb[0].mxu0 %v330
      %v543 = vpop.f32.mrb[0].mxu0
      %v544 = vadd.f32 %v249, %v543
      %v545 = vpop.f32.mrb[0].mxu0
      %546 = vmatprep.mubr.f32.mxu0 0.0
      %547 = vmatmul.mubr.f32.gmra.mrb[0].mxu0 %v333
      %v548 = vpop.f32.mrb[0].mxu0
      %v549 = vadd.f32 %v249, %v548
      %v550 = vpop.f32.mrb[0].mxu0
      %551 = vmatprep.mubr.f32.mxu0 0.0
      %552 = vmatmul.mubr.f32.gmra.mrb[0].mxu0 %v336
      %v553 = vpop.f32.mrb[0].mxu0
      %v554 = vadd.f32 %v249, %v553
      %v555 = vpop.f32.mrb[0].mxu0
      %556 = vmatprep.mubr.f32.mxu0 0.0
      %557 = vmatmul.mubr.f32.gmra.mrb[0].mxu0 %v339
      %v558 = vpop.f32.mrb[0].mxu0
      %v559 = vadd.f32 %v249, %v558
      %v560 = vpop.f32.mrb[0].mxu0
      %561 = vmatprep.mubr.f32.mxu0 0.0
      %562 = vmatmul.mubr.f32.gmra.mrb[0].mxu0 %v342
      %v563 = vpop.f32.mrb[0].mxu0
      %v564 = vadd.f32 %v249, %v563
      %v565 = vpop.f32.mrb[0].mxu0
      %566 = vmatprep.mubr.f32.mxu0 0.0
      %567 = vmatmul.mubr.f32.gmra.mrb[0].mxu0 %v345
      %v568 = vpop.f32.mrb[0].mxu0
      %v569 = vadd.f32 %v249, %v568
      %v570 = vpop.f32.mrb[0].mxu0
      %571 = vdwg.mxu0
      %v572 = vmax.f32 %v414, 0.0
      %v573 = vmax.f32 %v419, 0.0
      %v574 = vmax.f32 %v424, 0.0
      %v575 = vmax.f32 %v429, 0.0
      %v576 = vmax.f32 %v434, 0.0
      %v577 = vmax.f32 %v439, 0.0
      %v578 = vmax.f32 %v444, 0.0
      %v579 = vmax.f32 %v449, 0.0
      %v580 = vmax.f32 %v454, 0.0
      %v581 = vmax.f32 %v459, 0.0
      %v582 = vmax.f32 %v464, 0.0
      %v583 = vmax.f32 %v469, 0.0
      %v584 = vmax.f32 %v474, 0.0
      %v585 = vmax.f32 %v479, 0.0
      %v586 = vmax.f32 %v484, 0.0
      %v587 = vmax.f32 %v489, 0.0
      %v588 = vmax.f32 %v494, 0.0
      %v589 = vmax.f32 %v499, 0.0
      %v590 = vmax.f32 %v504, 0.0
      %v591 = vmax.f32 %v509, 0.0
      %v592 = vmax.f32 %v514, 0.0
      %v593 = vmax.f32 %v519, 0.0
      %v594 = vmax.f32 %v524, 0.0
      %v595 = vmax.f32 %v529, 0.0
      %v596 = vmax.f32 %v534, 0.0
      %v597 = vmax.f32 %v539, 0.0
      %v598 = vmax.f32 %v544, 0.0
      %v599 = vmax.f32 %v549, 0.0
      %v600 = vmax.f32 %v554, 0.0
      %v601 = vmax.f32 %v559, 0.0
      %v602 = vmax.f32 %v564, 0.0
      %v603 = vmax.f32 %v569, 0.0
      %v604 = vlaneseq
      %v605 = vshrl.u32 %v604, 7
      %v606 = vsub.s32 0, %v605
      %v607 = vrot.slane %v210, %v606
      %vm608 = vcmask 261120
      %v610 = vsel %vm608, %v572, 0
      %v613 = vsel %vm608, %v573, 0
      %v616 = vsel %vm608, %v574, 0
      %v619 = vsel %vm608, %v575, 0
      %v622 = vsel %vm608, %v576, 0
      %v625 = vsel %vm608, %v577, 0
      %v628 = vsel %vm608, %v578, 0
      %v631 = vsel %vm608, %v579, 0
      %v634 = vsel %vm608, %v580, 0
      %v637 = vsel %vm608, %v581, 0
      %v640 = vsel %vm608, %v582, 0
      %v643 = vsel %vm608, %v583, 0
      %v646 = vsel %vm608, %v584, 0
      %v649 = vsel %vm608, %v585, 0
      %v652 = vsel %vm608, %v586, 0
      %v655 = vsel %vm608, %v587, 0
      %v658 = vsel %vm608, %v588, 0
      %v661 = vsel %vm608, %v589, 0
      %v664 = vsel %vm608, %v590, 0
      %v667 = vsel %vm608, %v591, 0
      %v670 = vsel %vm608, %v592, 0
      %v673 = vsel %vm608, %v593, 0
      %v676 = vsel %vm608, %v594, 0
      %v679 = vsel %vm608, %v595, 0
      %v682 = vsel %vm608, %v596, 0
      %v685 = vsel %vm608, %v597, 0
      %v688 = vsel %vm608, %v598, 0
      %v691 = vsel %vm608, %v599, 0
      %v694 = vsel %vm608, %v600, 0
      %v697 = vsel %vm608, %v601, 0
      %v700 = vsel %vm608, %v602, 0
      %v703 = vsel %vm608, %v603, 0
      %705 = vmatprep.subr.mxu0 0.0
      %706 = vmatpush1.msra.mxu0 %v201
      %707 = vmatprep.subr.mxu0 0.0
      %708 = vmatpush1.msra.mxu0 %v202
      %709 = vmatprep.subr.mxu0 0.0
      %710 = vmatpush1.msra.mxu0 %v203
      %711 = vmatprep.subr.mxu0 0.0
      %712 = vmatpush1.msra.mxu0 %v204
      %713 = vmatprep.subr.mxu0 0.0
      %714 = vmatpush1.msra.mxu0 0.0
      %715 = vmatprep.subr.mxu0 0.0
      %716 = vmatpush1.msra.mxu0 0.0
      %717 = vmatprep.subr.mxu0 0.0
      %718 = vmatpush1.msra.mxu0 0.0
      %719 = vmatprep.subr.mxu0 0.0
      %720 = vmatpush1.msra.mxu0 0.0
      %721 = vmatprep.subr.mxu0 0.0
      %722 = vmatpush1.msra.mxu0 0.0
      %723 = vmatprep.subr.mxu0 0.0
      %724 = vmatpush1.msra.mxu0 0.0
      %725 = vmatprep.subr.mxu0 0.0
      %726 = vmatpush1.msra.mxu0 0.0
      %727 = vmatprep.subr.mxu0 0.0
      %728 = vmatpush1.msra.mxu0 0.0
      %729 = vmatprep.subr.mxu0 0.0
      %730 = vmatpush1.msra.mxu0 0.0
      %731 = vmatprep.subr.mxu0 0.0
      %732 = vmatpush1.msra.mxu0 0.0
      %733 = vmatprep.subr.mxu0 0.0
      %734 = vmatpush1.msra.mxu0 0.0
      %735 = vmatprep.subr.mxu0 0.0
      %736 = vmatpush1.msra.mxu0 0.0
      %737 = vmatprep.subr.mxu0 0.0
      %738 = vmatpush1.msra.mxu0 0.0
      %739 = vmatprep.subr.mxu0 0.0
      %740 = vmatpush1.msra.mxu0 0.0
      %741 = vmatprep.subr.mxu0 0.0
      %742 = vmatpush1.msra.mxu0 0.0
      %743 = vmatprep.subr.mxu0 0.0
      %744 = vmatpush1.msra.mxu0 0.0
      %745 = vmatprep.subr.mxu0 0.0
      %746 = vmatpush1.msra.mxu0 0.0
      %747 = vmatprep.subr.mxu0 0.0
      %748 = vmatpush1.msra.mxu0 0.0
      %749 = vmatprep.subr.mxu0 0.0
      %750 = vmatpush1.msra.mxu0 0.0
      %751 = vmatprep.subr.mxu0 0.0
      %752 = vmatpush1.msra.mxu0 0.0
      %753 = vmatprep.subr.mxu0 0.0
      %754 = vmatpush1.msra.mxu0 0.0
      %755 = vmatprep.subr.mxu0 0.0
      %756 = vmatpush1.msra.mxu0 0.0
      %757 = vmatprep.subr.mxu0 0.0
      %758 = vmatpush1.msra.mxu0 0.0
      %759 = vmatprep.subr.mxu0 0.0
      %760 = vmatpush1.msra.mxu0 0.0
      %761 = vmatprep.subr.mxu0 0.0
      %762 = vmatpush1.msra.mxu0 0.0
      %763 = vmatprep.subr.mxu0 0.0
      %764 = vmatpush1.msra.mxu0 0.0
      %765 = vmatprep.subr.mxu0 0.0
      %766 = vmatpush1.msra.mxu0 0.0
      %767 = vmatprep.subr.mxu0 0.0
      %768 = vmatpush1.msra.mxu0 0.0
      %769 = vmatprep.mubr.f32.mxu0 0.0
      %770 = vmatmul.mubr.f32.gmra.mrb[0].mxu0 %v610
      %v771 = vpop.f32.mrb[0].mxu0
      %v772 = vadd.f32 %v607, %v771
      %v773 = vpop.f32.mrb[0].mxu0
      %774 = vmatprep.mubr.f32.mxu0 0.0
      %775 = vmatmul.mubr.f32.gmra.mrb[0].mxu0 %v613
      %v776 = vpop.f32.mrb[0].mxu0
      %v777 = vadd.f32 %v607, %v776
      %v778 = vpop.f32.mrb[0].mxu0
      %779 = vmatprep.mubr.f32.mxu0 0.0
      %780 = vmatmul.mubr.f32.gmra.mrb[0].mxu0 %v616
      %v781 = vpop.f32.mrb[0].mxu0
      %v782 = vadd.f32 %v607, %v781
      %v783 = vpop.f32.mrb[0].mxu0
      %784 = vmatprep.mubr.f32.mxu0 0.0
      %785 = vmatmul.mubr.f32.gmra.mrb[0].mxu0 %v619
      %v786 = vpop.f32.mrb[0].mxu0
      %v787 = vadd.f32 %v607, %v786
      %v788 = vpop.f32.mrb[0].mxu0
      %789 = vmatprep.mubr.f32.mxu0 0.0
      %790 = vmatmul.mubr.f32.gmra.mrb[0].mxu0 %v622
      %v791 = vpop.f32.mrb[0].mxu0
      %v792 = vadd.f32 %v607, %v791
      %v793 = vpop.f32.mrb[0].mxu0
      %794 = vmatprep.mubr.f32.mxu0 0.0
      %795 = vmatmul.mubr.f32.gmra.mrb[0].mxu0 %v625
      %v796 = vpop.f32.mrb[0].mxu0
      %v797 = vadd.f32 %v607, %v796
      %v798 = vpop.f32.mrb[0].mxu0
      %799 = vmatprep.mubr.f32.mxu0 0.0
      %800 = vmatmul.mubr.f32.gmra.mrb[0].mxu0 %v628
      %v801 = vpop.f32.mrb[0].mxu0
      %v802 = vadd.f32 %v607, %v801
      %v803 = vpop.f32.mrb[0].mxu0
      %804 = vmatprep.mubr.f32.mxu0 0.0
      %805 = vmatmul.mubr.f32.gmra.mrb[0].mxu0 %v631
      %v806 = vpop.f32.mrb[0].mxu0
      %v807 = vadd.f32 %v607, %v806
      %v808 = vpop.f32.mrb[0].mxu0
      %809 = vmatprep.mubr.f32.mxu0 0.0
      %810 = vmatmul.mubr.f32.gmra.mrb[0].mxu0 %v634
      %v811 = vpop.f32.mrb[0].mxu0
      %v812 = vadd.f32 %v607, %v811
      %v813 = vpop.f32.mrb[0].mxu0
      %814 = vmatprep.mubr.f32.mxu0 0.0
      %815 = vmatmul.mubr.f32.gmra.mrb[0].mxu0 %v637
      %v816 = vpop.f32.mrb[0].mxu0
      %v817 = vadd.f32 %v607, %v816
      %v818 = vpop.f32.mrb[0].mxu0
      %819 = vmatprep.mubr.f32.mxu0 0.0
      %820 = vmatmul.mubr.f32.gmra.mrb[0].mxu0 %v640
      %v821 = vpop.f32.mrb[0].mxu0
      %v822 = vadd.f32 %v607, %v821
      %v823 = vpop.f32.mrb[0].mxu0
      %824 = vmatprep.mubr.f32.mxu0 0.0
      %825 = vmatmul.mubr.f32.gmra.mrb[0].mxu0 %v643
      %v826 = vpop.f32.mrb[0].mxu0
      %v827 = vadd.f32 %v607, %v826
      %v828 = vpop.f32.mrb[0].mxu0
      %829 = vmatprep.mubr.f32.mxu0 0.0
      %830 = vmatmul.mubr.f32.gmra.mrb[0].mxu0 %v646
      %v831 = vpop.f32.mrb[0].mxu0
      %v832 = vadd.f32 %v607, %v831
      %v833 = vpop.f32.mrb[0].mxu0
      %834 = vmatprep.mubr.f32.mxu0 0.0
      %835 = vmatmul.mubr.f32.gmra.mrb[0].mxu0 %v649
      %v836 = vpop.f32.mrb[0].mxu0
      %v837 = vadd.f32 %v607, %v836
      %v838 = vpop.f32.mrb[0].mxu0
      %839 = vmatprep.mubr.f32.mxu0 0.0
      %840 = vmatmul.mubr.f32.gmra.mrb[0].mxu0 %v652
      %v841 = vpop.f32.mrb[0].mxu0
      %v842 = vadd.f32 %v607, %v841
      %v843 = vpop.f32.mrb[0].mxu0
      %844 = vmatprep.mubr.f32.mxu0 0.0
      %845 = vmatmul.mubr.f32.gmra.mrb[0].mxu0 %v655
      %v846 = vpop.f32.mrb[0].mxu0
      %v847 = vadd.f32 %v607, %v846
      %v848 = vpop.f32.mrb[0].mxu0
      %849 = vmatprep.mubr.f32.mxu0 0.0
      %850 = vmatmul.mubr.f32.gmra.mrb[0].mxu0 %v658
      %v851 = vpop.f32.mrb[0].mxu0
      %v852 = vadd.f32 %v607, %v851
      %v853 = vpop.f32.mrb[0].mxu0
      %854 = vmatprep.mubr.f32.mxu0 0.0
      %855 = vmatmul.mubr.f32.gmra.mrb[0].mxu0 %v661
      %v856 = vpop.f32.mrb[0].mxu0
      %v857 = vadd.f32 %v607, %v856
      %v858 = vpop.f32.mrb[0].mxu0
      %859 = vmatprep.mubr.f32.mxu0 0.0
      %860 = vmatmul.mubr.f32.gmra.mrb[0].mxu0 %v664
      %v861 = vpop.f32.mrb[0].mxu0
      %v862 = vadd.f32 %v607, %v861
      %v863 = vpop.f32.mrb[0].mxu0
      %864 = vmatprep.mubr.f32.mxu0 0.0
      %865 = vmatmul.mubr.f32.gmra.mrb[0].mxu0 %v667
      %v866 = vpop.f32.mrb[0].mxu0
      %v867 = vadd.f32 %v607, %v866
      %v868 = vpop.f32.mrb[0].mxu0
      %869 = vmatprep.mubr.f32.mxu0 0.0
      %870 = vmatmul.mubr.f32.gmra.mrb[0].mxu0 %v670
      %v871 = vpop.f32.mrb[0].mxu0
      %v872 = vadd.f32 %v607, %v871
      %v873 = vpop.f32.mrb[0].mxu0
      %874 = vmatprep.mubr.f32.mxu0 0.0
      %875 = vmatmul.mubr.f32.gmra.mrb[0].mxu0 %v673
      %v876 = vpop.f32.mrb[0].mxu0
      %v877 = vadd.f32 %v607, %v876
      %v878 = vpop.f32.mrb[0].mxu0
      %879 = vmatprep.mubr.f32.mxu0 0.0
      %880 = vmatmul.mubr.f32.gmra.mrb[0].mxu0 %v676
      %v881 = vpop.f32.mrb[0].mxu0
      %v882 = vadd.f32 %v607, %v881
      %v883 = vpop.f32.mrb[0].mxu0
      %884 = vmatprep.mubr.f32.mxu0 0.0
      %885 = vmatmul.mubr.f32.gmra.mrb[0].mxu0 %v679
      %v886 = vpop.f32.mrb[0].mxu0
      %v887 = vadd.f32 %v607, %v886
      %v888 = vpop.f32.mrb[0].mxu0
      %889 = vmatprep.mubr.f32.mxu0 0.0
      %890 = vmatmul.mubr.f32.gmra.mrb[0].mxu0 %v682
      %v891 = vpop.f32.mrb[0].mxu0
      %v892 = vadd.f32 %v607, %v891
      %v893 = vpop.f32.mrb[0].mxu0
      %894 = vmatprep.mubr.f32.mxu0 0.0
      %895 = vmatmul.mubr.f32.gmra.mrb[0].mxu0 %v685
      %v896 = vpop.f32.mrb[0].mxu0
      %v897 = vadd.f32 %v607, %v896
      %v898 = vpop.f32.mrb[0].mxu0
      %899 = vmatprep.mubr.f32.mxu0 0.0
      %900 = vmatmul.mubr.f32.gmra.mrb[0].mxu0 %v688
      %v901 = vpop.f32.mrb[0].mxu0
      %v902 = vadd.f32 %v607, %v901
      %v903 = vpop.f32.mrb[0].mxu0
      %904 = vmatprep.mubr.f32.mxu0 0.0
      %905 = vmatmul.mubr.f32.gmra.mrb[0].mxu0 %v691
      %v906 = vpop.f32.mrb[0].mxu0
      %v907 = vadd.f32 %v607, %v906
      %v908 = vpop.f32.mrb[0].mxu0
      %909 = vmatprep.mubr.f32.mxu0 0.0
      %910 = vmatmul.mubr.f32.gmra.mrb[0].mxu0 %v694
      %v911 = vpop.f32.mrb[0].mxu0
      %v912 = vadd.f32 %v607, %v911
      %v913 = vpop.f32.mrb[0].mxu0
      %914 = vmatprep.mubr.f32.mxu0 0.0
      %915 = vmatmul.mubr.f32.gmra.mrb[0].mxu0 %v697
      %v916 = vpop.f32.mrb[0].mxu0
      %v917 = vadd.f32 %v607, %v916
      %v918 = vpop.f32.mrb[0].mxu0
      %919 = vmatprep.mubr.f32.mxu0 0.0
      %920 = vmatmul.mubr.f32.gmra.mrb[0].mxu0 %v700
      %v921 = vpop.f32.mrb[0].mxu0
      %v922 = vadd.f32 %v607, %v921
      %v923 = vpop.f32.mrb[0].mxu0
      %924 = vmatprep.mubr.f32.mxu0 0.0
      %925 = vmatmul.mubr.f32.gmra.mrb[0].mxu0 %v703
      %v926 = vpop.f32.mrb[0].mxu0
      %v927 = vadd.f32 %v607, %v926
      %v928 = vpop.f32.mrb[0].mxu0
      %929 = vdwg.mxu0
      %v931 = vsel %vm608, %v772, 0
      %v934 = vsel %vm608, %v777, 0
      %v937 = vsel %vm608, %v782, 0
      %v940 = vsel %vm608, %v787, 0
      %v943 = vsel %vm608, %v792, 0
      %v946 = vsel %vm608, %v797, 0
      %v949 = vsel %vm608, %v802, 0
      %v952 = vsel %vm608, %v807, 0
      %v955 = vsel %vm608, %v812, 0
      %v958 = vsel %vm608, %v817, 0
      %v961 = vsel %vm608, %v822, 0
      %v964 = vsel %vm608, %v827, 0
      %v967 = vsel %vm608, %v832, 0
      %v970 = vsel %vm608, %v837, 0
      %v973 = vsel %vm608, %v842, 0
      %v976 = vsel %vm608, %v847, 0
      %v979 = vsel %vm608, %v852, 0
      %v982 = vsel %vm608, %v857, 0
      %v985 = vsel %vm608, %v862, 0
      %v988 = vsel %vm608, %v867, 0
      %v991 = vsel %vm608, %v872, 0
      %v994 = vsel %vm608, %v877, 0
      %v997 = vsel %vm608, %v882, 0
      %v1000 = vsel %vm608, %v887, 0
      %v1003 = vsel %vm608, %v892, 0
      %v1006 = vsel %vm608, %v897, 0
      %v1009 = vsel %vm608, %v902, 0
      %v1012 = vsel %vm608, %v907, 0
      %v1015 = vsel %vm608, %v912, 0
      %v1018 = vsel %vm608, %v917, 0
      %v1021 = vsel %vm608, %v922, 0
      %v1024 = vsel %vm608, %v927, 0
      %1026 = vmatprep.subr.mxu0 0.0
      %1027 = vmatpush1.msra.mxu0 %v205
      %1028 = vmatprep.subr.mxu0 0.0
      %1029 = vmatpush1.msra.mxu0 %v206
      %1030 = vmatprep.subr.mxu0 0.0
      %1031 = vmatpush1.msra.mxu0 %v207
      %1032 = vmatprep.subr.mxu0 0.0
      %1033 = vmatpush1.msra.mxu0 %v208
      %1034 = vmatprep.subr.mxu0 0.0
      %1035 = vmatpush1.msra.mxu0 0.0
      %1036 = vmatprep.subr.mxu0 0.0
      %1037 = vmatpush1.msra.mxu0 0.0
      %1038 = vmatprep.subr.mxu0 0.0
      %1039 = vmatpush1.msra.mxu0 0.0
      %1040 = vmatprep.subr.mxu0 0.0
      %1041 = vmatpush1.msra.mxu0 0.0
      %1042 = vmatprep.subr.mxu0 0.0
      %1043 = vmatpush1.msra.mxu0 0.0
      %1044 = vmatprep.subr.mxu0 0.0
      %1045 = vmatpush1.msra.mxu0 0.0
      %1046 = vmatprep.subr.mxu0 0.0
      %1047 = vmatpush1.msra.mxu0 0.0
      %1048 = vmatprep.subr.mxu0 0.0
      %1049 = vmatpush1.msra.mxu0 0.0
      %1050 = vmatprep.subr.mxu0 0.0
      %1051 = vmatpush1.msra.mxu0 0.0
      %1052 = vmatprep.subr.mxu0 0.0
      %1053 = vmatpush1.msra.mxu0 0.0
      %1054 = vmatprep.subr.mxu0 0.0
      %1055 = vmatpush1.msra.mxu0 0.0
      %1056 = vmatprep.subr.mxu0 0.0
      %1057 = vmatpush1.msra.mxu0 0.0
      %1058 = vmatprep.subr.mxu0 0.0
      %1059 = vmatpush1.msra.mxu0 0.0
      %1060 = vmatprep.subr.mxu0 0.0
      %1061 = vmatpush1.msra.mxu0 0.0
      %1062 = vmatprep.subr.mxu0 0.0
      %1063 = vmatpush1.msra.mxu0 0.0
      %1064 = vmatprep.subr.mxu0 0.0
      %1065 = vmatpush1.msra.mxu0 0.0
      %1066 = vmatprep.subr.mxu0 0.0
      %1067 = vmatpush1.msra.mxu0 0.0
      %1068 = vmatprep.subr.mxu0 0.0
      %1069 = vmatpush1.msra.mxu0 0.0
      %1070 = vmatprep.subr.mxu0 0.0
      %1071 = vmatpush1.msra.mxu0 0.0
      %1072 = vmatprep.subr.mxu0 0.0
      %1073 = vmatpush1.msra.mxu0 0.0
      %1074 = vmatprep.subr.mxu0 0.0
      %1075 = vmatpush1.msra.mxu0 0.0
      %1076 = vmatprep.subr.mxu0 0.0
      %1077 = vmatpush1.msra.mxu0 0.0
      %1078 = vmatprep.subr.mxu0 0.0
      %1079 = vmatpush1.msra.mxu0 0.0
      %1080 = vmatprep.subr.mxu0 0.0
      %1081 = vmatpush1.msra.mxu0 0.0
      %1082 = vmatprep.subr.mxu0 0.0
      %1083 = vmatpush1.msra.mxu0 0.0
      %1084 = vmatprep.subr.mxu0 0.0
      %1085 = vmatpush1.msra.mxu0 0.0
      %1086 = vmatprep.subr.mxu0 0.0
      %1087 = vmatpush1.msra.mxu0 0.0
      %1088 = vmatprep.subr.mxu0 0.0
      %1089 = vmatpush1.msra.mxu0 0.0
      %1090 = vmatprep.mubr.f32.mxu0 0.0
      %1091 = vmatmul.mubr.f32.gmra.mrb[0].mxu0 %v931
      %v1092 = vpop.f32.mrb[0].mxu0
      %v1093 = vadd.f32 0.0, %v1092
      %v1094 = vpop.f32.mrb[0].mxu0
      %1095 = vmatprep.mubr.f32.mxu0 0.0
      %1096 = vmatmul.mubr.f32.gmra.mrb[0].mxu0 %v934
      %v1097 = vpop.f32.mrb[0].mxu0
      %v1098 = vadd.f32 0.0, %v1097
      %v1099 = vpop.f32.mrb[0].mxu0
      %1100 = vmatprep.mubr.f32.mxu0 0.0
      %1101 = vmatmul.mubr.f32.gmra.mrb[0].mxu0 %v937
      %v1102 = vpop.f32.mrb[0].mxu0
      %v1103 = vadd.f32 0.0, %v1102
      %v1104 = vpop.f32.mrb[0].mxu0
      %1105 = vmatprep.mubr.f32.mxu0 0.0
      %1106 = vmatmul.mubr.f32.gmra.mrb[0].mxu0 %v940
      %v1107 = vpop.f32.mrb[0].mxu0
      %v1108 = vadd.f32 0.0, %v1107
      %v1109 = vpop.f32.mrb[0].mxu0
      %1110 = vmatprep.mubr.f32.mxu0 0.0
      %1111 = vmatmul.mubr.f32.gmra.mrb[0].mxu0 %v943
      %v1112 = vpop.f32.mrb[0].mxu0
      %v1113 = vadd.f32 0.0, %v1112
      %v1114 = vpop.f32.mrb[0].mxu0
      %1115 = vmatprep.mubr.f32.mxu0 0.0
      %1116 = vmatmul.mubr.f32.gmra.mrb[0].mxu0 %v946
      %v1117 = vpop.f32.mrb[0].mxu0
      %v1118 = vadd.f32 0.0, %v1117
      %v1119 = vpop.f32.mrb[0].mxu0
      %1120 = vmatprep.mubr.f32.mxu0 0.0
      %1121 = vmatmul.mubr.f32.gmra.mrb[0].mxu0 %v949
      %v1122 = vpop.f32.mrb[0].mxu0
      %v1123 = vadd.f32 0.0, %v1122
      %v1124 = vpop.f32.mrb[0].mxu0
      %1125 = vmatprep.mubr.f32.mxu0 0.0
      %1126 = vmatmul.mubr.f32.gmra.mrb[0].mxu0 %v952
      %v1127 = vpop.f32.mrb[0].mxu0
      %v1128 = vadd.f32 0.0, %v1127
      %v1129 = vpop.f32.mrb[0].mxu0
      %1130 = vmatprep.mubr.f32.mxu0 0.0
      %1131 = vmatmul.mubr.f32.gmra.mrb[0].mxu0 %v955
      %v1132 = vpop.f32.mrb[0].mxu0
      %v1133 = vadd.f32 0.0, %v1132
      %v1134 = vpop.f32.mrb[0].mxu0
      %1135 = vmatprep.mubr.f32.mxu0 0.0
      %1136 = vmatmul.mubr.f32.gmra.mrb[0].mxu0 %v958
      %v1137 = vpop.f32.mrb[0].mxu0
      %v1138 = vadd.f32 0.0, %v1137
      %v1139 = vpop.f32.mrb[0].mxu0
      %1140 = vmatprep.mubr.f32.mxu0 0.0
      %1141 = vmatmul.mubr.f32.gmra.mrb[0].mxu0 %v961
      %v1142 = vpop.f32.mrb[0].mxu0
      %v1143 = vadd.f32 0.0, %v1142
      %v1144 = vpop.f32.mrb[0].mxu0
      %1145 = vmatprep.mubr.f32.mxu0 0.0
      %1146 = vmatmul.mubr.f32.gmra.mrb[0].mxu0 %v964
      %v1147 = vpop.f32.mrb[0].mxu0
      %v1148 = vadd.f32 0.0, %v1147
      %v1149 = vpop.f32.mrb[0].mxu0
      %1150 = vmatprep.mubr.f32.mxu0 0.0
      %1151 = vmatmul.mubr.f32.gmra.mrb[0].mxu0 %v967
      %v1152 = vpop.f32.mrb[0].mxu0
      %v1153 = vadd.f32 0.0, %v1152
      %v1154 = vpop.f32.mrb[0].mxu0
      %1155 = vmatprep.mubr.f32.mxu0 0.0
      %1156 = vmatmul.mubr.f32.gmra.mrb[0].mxu0 %v970
      %v1157 = vpop.f32.mrb[0].mxu0
      %v1158 = vadd.f32 0.0, %v1157
      %v1159 = vpop.f32.mrb[0].mxu0
      %1160 = vmatprep.mubr.f32.mxu0 0.0
      %1161 = vmatmul.mubr.f32.gmra.mrb[0].mxu0 %v973
      %v1162 = vpop.f32.mrb[0].mxu0
      %v1163 = vadd.f32 0.0, %v1162
      %v1164 = vpop.f32.mrb[0].mxu0
      %1165 = vmatprep.mubr.f32.mxu0 0.0
      %1166 = vmatmul.mubr.f32.gmra.mrb[0].mxu0 %v976
      %v1167 = vpop.f32.mrb[0].mxu0
      %v1168 = vadd.f32 0.0, %v1167
      %v1169 = vpop.f32.mrb[0].mxu0
      %1170 = vmatprep.mubr.f32.mxu0 0.0
      %1171 = vmatmul.mubr.f32.gmra.mrb[0].mxu0 %v979
      %v1172 = vpop.f32.mrb[0].mxu0
      %v1173 = vadd.f32 0.0, %v1172
      %v1174 = vpop.f32.mrb[0].mxu0
      %1175 = vmatprep.mubr.f32.mxu0 0.0
      %1176 = vmatmul.mubr.f32.gmra.mrb[0].mxu0 %v982
      %v1177 = vpop.f32.mrb[0].mxu0
      %v1178 = vadd.f32 0.0, %v1177
      %v1179 = vpop.f32.mrb[0].mxu0
      %1180 = vmatprep.mubr.f32.mxu0 0.0
      %1181 = vmatmul.mubr.f32.gmra.mrb[0].mxu0 %v985
      %v1182 = vpop.f32.mrb[0].mxu0
      %v1183 = vadd.f32 0.0, %v1182
      %v1184 = vpop.f32.mrb[0].mxu0
      %1185 = vmatprep.mubr.f32.mxu0 0.0
      %1186 = vmatmul.mubr.f32.gmra.mrb[0].mxu0 %v988
      %v1187 = vpop.f32.mrb[0].mxu0
      %v1188 = vadd.f32 0.0, %v1187
      %v1189 = vpop.f32.mrb[0].mxu0
      %1190 = vmatprep.mubr.f32.mxu0 0.0
      %1191 = vmatmul.mubr.f32.gmra.mrb[0].mxu0 %v991
      %v1192 = vpop.f32.mrb[0].mxu0
      %v1193 = vadd.f32 0.0, %v1192
      %v1194 = vpop.f32.mrb[0].mxu0
      %1195 = vmatprep.mubr.f32.mxu0 0.0
      %1196 = vmatmul.mubr.f32.gmra.mrb[0].mxu0 %v994
      %v1197 = vpop.f32.mrb[0].mxu0
      %v1198 = vadd.f32 0.0, %v1197
      %v1199 = vpop.f32.mrb[0].mxu0
      %1200 = vmatprep.mubr.f32.mxu0 0.0
      %1201 = vmatmul.mubr.f32.gmra.mrb[0].mxu0 %v997
      %v1202 = vpop.f32.mrb[0].mxu0
      %v1203 = vadd.f32 0.0, %v1202
      %v1204 = vpop.f32.mrb[0].mxu0
      %1205 = vmatprep.mubr.f32.mxu0 0.0
      %1206 = vmatmul.mubr.f32.gmra.mrb[0].mxu0 %v1000
      %v1207 = vpop.f32.mrb[0].mxu0
      %v1208 = vadd.f32 0.0, %v1207
      %v1209 = vpop.f32.mrb[0].mxu0
      %1210 = vmatprep.mubr.f32.mxu0 0.0
      %1211 = vmatmul.mubr.f32.gmra.mrb[0].mxu0 %v1003
      %v1212 = vpop.f32.mrb[0].mxu0
      %v1213 = vadd.f32 0.0, %v1212
      %v1214 = vpop.f32.mrb[0].mxu0
      %1215 = vmatprep.mubr.f32.mxu0 0.0
      %1216 = vmatmul.mubr.f32.gmra.mrb[0].mxu0 %v1006
      %v1217 = vpop.f32.mrb[0].mxu0
      %v1218 = vadd.f32 0.0, %v1217
      %v1219 = vpop.f32.mrb[0].mxu0
      %1220 = vmatprep.mubr.f32.mxu0 0.0
      %1221 = vmatmul.mubr.f32.gmra.mrb[0].mxu0 %v1009
      %v1222 = vpop.f32.mrb[0].mxu0
      %v1223 = vadd.f32 0.0, %v1222
      %v1224 = vpop.f32.mrb[0].mxu0
      %1225 = vmatprep.mubr.f32.mxu0 0.0
      %1226 = vmatmul.mubr.f32.gmra.mrb[0].mxu0 %v1012
      %v1227 = vpop.f32.mrb[0].mxu0
      %v1228 = vadd.f32 0.0, %v1227
      %v1229 = vpop.f32.mrb[0].mxu0
      %1230 = vmatprep.mubr.f32.mxu0 0.0
      %1231 = vmatmul.mubr.f32.gmra.mrb[0].mxu0 %v1015
      %v1232 = vpop.f32.mrb[0].mxu0
      %v1233 = vadd.f32 0.0, %v1232
      %v1234 = vpop.f32.mrb[0].mxu0
      %1235 = vmatprep.mubr.f32.mxu0 0.0
      %1236 = vmatmul.mubr.f32.gmra.mrb[0].mxu0 %v1018
      %v1237 = vpop.f32.mrb[0].mxu0
      %v1238 = vadd.f32 0.0, %v1237
      %v1239 = vpop.f32.mrb[0].mxu0
      %1240 = vmatprep.mubr.f32.mxu0 0.0
      %1241 = vmatmul.mubr.f32.gmra.mrb[0].mxu0 %v1021
      %v1242 = vpop.f32.mrb[0].mxu0
      %v1243 = vadd.f32 0.0, %v1242
      %v1244 = vpop.f32.mrb[0].mxu0
      %1245 = vmatprep.mubr.f32.mxu0 0.0
      %1246 = vmatmul.mubr.f32.gmra.mrb[0].mxu0 %v1024
      %v1247 = vpop.f32.mrb[0].mxu0
      %v1248 = vadd.f32 0.0, %v1247
      %v1249 = vpop.f32.mrb[0].mxu0
      %1250 = vdwg.mxu0
      %v1251 = vlaneseq
      %v1252 = vshrl.u32 %v1251, 7
      %v1253 = vsub.s32 0, %v1252
      %v1254 = vrot.slane %v211, %v1253
      %v1255 = vadd.f32 %v1093, %v1254
      %v1256 = vadd.f32 %v1098, %v1254
      %v1257 = vadd.f32 %v1103, %v1254
      %v1258 = vadd.f32 %v1108, %v1254
      %v1259 = vadd.f32 %v1113, %v1254
      %v1260 = vadd.f32 %v1118, %v1254
      %v1261 = vadd.f32 %v1123, %v1254
      %v1262 = vadd.f32 %v1128, %v1254
      %v1263 = vadd.f32 %v1133, %v1254
      %v1264 = vadd.f32 %v1138, %v1254
      %v1265 = vadd.f32 %v1143, %v1254
      %v1266 = vadd.f32 %v1148, %v1254
      %v1267 = vadd.f32 %v1153, %v1254
      %v1268 = vadd.f32 %v1158, %v1254
      %v1269 = vadd.f32 %v1163, %v1254
      %v1270 = vadd.f32 %v1168, %v1254
      %1271 = vst.msk [vmem:[#allocation2] sm:$0xff] %vm608, %v1255
      %1272 = vst.msk [vmem:[#allocation2 + $0x8] sm:$0xff] %vm608, %v1256
      %1273 = vst.msk [vmem:[#allocation2 + $0x10] sm:$0xff] %vm608, %v1257
      %1274 = vst.msk [vmem:[#allocation2 + $0x18] sm:$0xff] %vm608, %v1258
      %1275 = vst.msk [vmem:[#allocation2 + $0x20] sm:$0xff] %vm608, %v1259
      %1276 = vst.msk [vmem:[#allocation2 + $0x28] sm:$0xff] %vm608, %v1260
      %1277 = vst.msk [vmem:[#allocation2 + $0x30] sm:$0xff] %vm608, %v1261
      %1278 = vst.msk [vmem:[#allocation2 + $0x38] sm:$0xff] %vm608, %v1262
      %1279 = vst.msk [vmem:[#allocation2 + $0x40] sm:$0xff] %vm608, %v1263
      %1280 = vst.msk [vmem:[#allocation2 + $0x48] sm:$0xff] %vm608, %v1264
      %1281 = vst.msk [vmem:[#allocation2 + $0x50] sm:$0xff] %vm608, %v1265
      %1282 = vst.msk [vmem:[#allocation2 + $0x58] sm:$0xff] %vm608, %v1266
      %1283 = vst.msk [vmem:[#allocation2 + $0x60] sm:$0xff] %vm608, %v1267
      %1284 = vst.msk [vmem:[#allocation2 + $0x68] sm:$0xff] %vm608, %v1268
      %1285 = vst.msk [vmem:[#allocation2 + $0x70] sm:$0xff] %vm608, %v1269
      %1286 = vst.msk [vmem:[#allocation2 + $0x78] sm:$0xff] %vm608, %v1270
      %1303 = vrot.lane.b32.xlu0 %v1173, 96
      %v1304 = vpop.permute.xlu0 %1303
      %1305 = vrot.lane.b32.xlu0 %v1178, 96
      %v1306 = vpop.permute.xlu0 %1305
      %1307 = vrot.lane.b32.xlu0 %v1183, 96
      %v1308 = vpop.permute.xlu0 %1307
      %1309 = vrot.lane.b32.xlu0 %v1188, 96
      %v1310 = vpop.permute.xlu0 %1309
      %1311 = vrot.lane.b32.xlu0 %v1193, 96
      %v1312 = vpop.permute.xlu0 %1311
      %1313 = vrot.lane.b32.xlu0 %v1198, 96
      %v1314 = vpop.permute.xlu0 %1313
      %1315 = vrot.lane.b32.xlu0 %v1203, 96
      %v1316 = vpop.permute.xlu0 %1315
      %1317 = vrot.lane.b32.xlu0 %v1208, 96
      %v1318 = vpop.permute.xlu0 %1317
      %1319 = vrot.lane.b32.xlu0 %v1213, 96
      %v1320 = vpop.permute.xlu0 %1319
      %1321 = vrot.lane.b32.xlu0 %v1218, 96
      %v1322 = vpop.permute.xlu0 %1321
      %1323 = vrot.lane.b32.xlu0 %v1223, 96
      %v1324 = vpop.permute.xlu0 %1323
      %1325 = vrot.lane.b32.xlu0 %v1228, 96
      %v1326 = vpop.permute.xlu0 %1325
      %1327 = vrot.lane.b32.xlu0 %v1233, 96
      %v1328 = vpop.permute.xlu0 %1327
      %1329 = vrot.lane.b32.xlu0 %v1238, 96
      %v1330 = vpop.permute.xlu0 %1329
      %1331 = vrot.lane.b32.xlu0 %v1243, 96
      %v1332 = vpop.permute.xlu0 %1331
      %1333 = vrot.lane.b32.xlu0 %v1248, 96
      %v1334 = vpop.permute.xlu0 %1333
      %1351 = vst.msk [vmem:[#allocation3] sm:$0xff] %vm608, %v1304
      %1352 = vst.msk [vmem:[#allocation3 + $0x8] sm:$0xff] %vm608, %v1306
      %1353 = vst.msk [vmem:[#allocation3 + $0x10] sm:$0xff] %vm608, %v1308
      %1354 = vst.msk [vmem:[#allocation3 + $0x18] sm:$0xff] %vm608, %v1310
      %1355 = vst.msk [vmem:[#allocation3 + $0x20] sm:$0xff] %vm608, %v1312
      %1356 = vst.msk [vmem:[#allocation3 + $0x28] sm:$0xff] %vm608, %v1314
      %1357 = vst.msk [vmem:[#allocation3 + $0x30] sm:$0xff] %vm608, %v1316
      %1358 = vst.msk [vmem:[#allocation3 + $0x38] sm:$0xff] %vm608, %v1318
      %1359 = vst.msk [vmem:[#allocation3 + $0x40] sm:$0xff] %vm608, %v1320
      %1360 = vst.msk [vmem:[#allocation3 + $0x48] sm:$0xff] %vm608, %v1322
      %1361 = vst.msk [vmem:[#allocation3 + $0x50] sm:$0xff] %vm608, %v1324
      %1362 = vst.msk [vmem:[#allocation3 + $0x58] sm:$0xff] %vm608, %v1326
      %1363 = vst.msk [vmem:[#allocation3 + $0x60] sm:$0xff] %vm608, %v1328
      %1364 = vst.msk [vmem:[#allocation3 + $0x68] sm:$0xff] %vm608, %v1330
      %1365 = vst.msk [vmem:[#allocation3 + $0x70] sm:$0xff] %vm608, %v1332
      %1366 = vst.msk [vmem:[#allocation3 + $0x78] sm:$0xff] %vm608, %v1334
      loop: start=0, step=1, limit=4
      $region37: #{structural_learning_forward.1} parent=35 // loop_pre_header
        _
      $region38: #{structural_learning_forward.1} parent=35 // loop_header
        %s1368 = sphi 0, %s1372
        %p1369 = scmp.ge.s32.totalorder %s1368, 4
      $region39: #{structural_learning_forward.1} parent=35 // loop_header_branch
        %1371 = sbr.rel (%p1369) target = $region43
      $region40: #{structural_learning_forward.1} parent=35 // loop_body
        %s1373 = smul.u32 %s1368, 8
        %s1374 = scalar_lea.vmem [#allocation2], %s1373
        %v1375 = vld [vmem:[%s1374] sm:$0xff]
        %v1376 = vld [vmem:[#allocation3] sm:$0xff]
        %v1377 = vld [vmem:[#allocation3 + $0x8] sm:$0xff]
        %v1378 = vld [vmem:[#allocation3 + $0x10] sm:$0xff]
        %v1379 = vld [vmem:[#allocation3 + $0x18] sm:$0xff]
        %v1381 = vcombine.high %v1375, %v1375
        %v1383 = vunpack.c.l.s4 1966171168
        %v1384 = vunpack.c.0.s8 %v1383
        %v1385 = vlaneseq
        %v1386 = vshrl.u32 %v1385, 7
        %v1387 = vsub.s32 %v1384, %v1386
        %v1388 = vrot.slane %v1375, %v1387
        %v1390 = vunpack.c.l.s4 1966171168
        %v1391 = vunpack.c.0.s8 %v1390
        %v1392 = vlaneseq
        %v1393 = vshrl.u32 %v1392, 7
        %v1394 = vsub.s32 %v1391, %v1393
        %v1395 = vrot.slane %v1381, %v1394
        %v1396 = vcombine.high %v1388, %v1388
        %v1397 = vcombine.high %v1395, %v1395
        %v1399 = vunpack.c.l.s4 1966171168
        %v1400 = vunpack.c.0.s8 %v1399
        %v1401 = vlaneseq
        %v1402 = vshrl.u32 %v1401, 7
        %v1403 = vsub.s32 %v1400, %v1402
        %v1404 = vrot.slane %v1388, %v1403
        %v1406 = vunpack.c.l.s4 1966171168
        %v1407 = vunpack.c.0.s8 %v1406
        %v1408 = vlaneseq
        %v1409 = vshrl.u32 %v1408, 7
        %v1410 = vsub.s32 %v1407, %v1409
        %v1411 = vrot.slane %v1395, %v1410
        %v1413 = vunpack.c.l.s4 1966171168
        %v1414 = vunpack.c.0.s8 %v1413
        %v1415 = vlaneseq
        %v1416 = vshrl.u32 %v1415, 7
        %v1417 = vsub.s32 %v1414, %v1416
        %v1418 = vrot.slane %v1396, %v1417
        %v1420 = vunpack.c.l.s4 1966171168
        %v1421 = vunpack.c.0.s8 %v1420
        %v1422 = vlaneseq
        %v1423 = vshrl.u32 %v1422, 7
        %v1424 = vsub.s32 %v1421, %v1423
        %v1425 = vrot.slane %v1397, %v1424
        %v1426 = vcombine.high %v1404, %v1404
        %v1427 = vcombine.high %v1411, %v1411
        %v1428 = vcombine.high %v1418, %v1418
        %v1429 = vcombine.high %v1425, %v1425
        %v1430 = vlaneseq
        %v1431 = vshrl.u32 %v1430, 7
        %v1432 = vsub.s32 0, %v1431
        %v1433 = vrot.slane %v1404, %v1432
        %v1434 = vlaneseq
        %v1435 = vshrl.u32 %v1434, 7
        %v1436 = vsub.s32 0, %v1435
        %v1437 = vrot.slane %v1418, %v1436
        %v1438 = vlaneseq
        %v1439 = vshrl.u32 %v1438, 7
        %v1440 = vsub.s32 0, %v1439
        %v1441 = vrot.slane %v1426, %v1440
        %v1442 = vlaneseq
        %v1443 = vshrl.u32 %v1442, 7
        %v1444 = vsub.s32 0, %v1443
        %v1445 = vrot.slane %v1428, %v1444
        %v1446 = vlaneseq
        %v1447 = vshrl.u32 %v1446, 7
        %v1448 = vsub.s32 0, %v1447
        %v1449 = vrot.slane %v1411, %v1448
        %v1450 = vlaneseq
        %v1451 = vshrl.u32 %v1450, 7
        %v1452 = vsub.s32 0, %v1451
        %v1453 = vrot.slane %v1425, %v1452
        %v1454 = vlaneseq
        %v1455 = vshrl.u32 %v1454, 7
        %v1456 = vsub.s32 0, %v1455
        %v1457 = vrot.slane %v1427, %v1456
        %v1458 = vlaneseq
        %v1459 = vshrl.u32 %v1458, 7
        %v1460 = vsub.s32 0, %v1459
        %v1461 = vrot.slane %v1429, %v1460
        %v1470 = vadd.f32 %v1433, %v1376
        %v1471 = vadd.f32 %v1433, %v1377
        %v1472 = vadd.f32 %v1433, %v1378
        %v1473 = vadd.f32 %v1433, %v1379
        %v1474 = vadd.f32 %v1437, %v1376
        %v1475 = vadd.f32 %v1437, %v1377
        %v1476 = vadd.f32 %v1437, %v1378
        %v1477 = vadd.f32 %v1437, %v1379
        %v1478 = vadd.f32 %v1441, %v1376
        %v1479 = vadd.f32 %v1441, %v1377
        %v1480 = vadd.f32 %v1441, %v1378
        %v1481 = vadd.f32 %v1441, %v1379
        %v1482 = vadd.f32 %v1445, %v1376
        %v1483 = vadd.f32 %v1445, %v1377
        %v1484 = vadd.f32 %v1445, %v1378
        %v1485 = vadd.f32 %v1445, %v1379
        %v1486 = vadd.f32 %v1449, %v1376
        %v1487 = vadd.f32 %v1449, %v1377
        %v1488 = vadd.f32 %v1449, %v1378
        %v1489 = vadd.f32 %v1449, %v1379
        %v1490 = vadd.f32 %v1453, %v1376
        %v1491 = vadd.f32 %v1453, %v1377
        %v1492 = vadd.f32 %v1453, %v1378
        %v1493 = vadd.f32 %v1453, %v1379
        %v1494 = vadd.f32 %v1457, %v1376
        %v1495 = vadd.f32 %v1457, %v1377
        %v1496 = vadd.f32 %v1457, %v1378
        %v1497 = vadd.f32 %v1457, %v1379
        %v1498 = vadd.f32 %v1461, %v1376
        %v1499 = vadd.f32 %v1461, %v1377
        %v1500 = vadd.f32 %v1461, %v1378
        %v1501 = vadd.f32 %v1461, %v1379
        %v1502 = vmax.f32 %v1470, 0.0
        %v1503 = vmax.f32 %v1471, 0.0
        %v1504 = vmax.f32 %v1472, 0.0
        %v1505 = vmax.f32 %v1473, 0.0
        %v1506 = vmax.f32 %v1474, 0.0
        %v1507 = vmax.f32 %v1475, 0.0
        %v1508 = vmax.f32 %v1476, 0.0
        %v1509 = vmax.f32 %v1477, 0.0
        %v1510 = vmax.f32 %v1478, 0.0
        %v1511 = vmax.f32 %v1479, 0.0
        %v1512 = vmax.f32 %v1480, 0.0
        %v1513 = vmax.f32 %v1481, 0.0
        %v1514 = vmax.f32 %v1482, 0.0
        %v1515 = vmax.f32 %v1483, 0.0
        %v1516 = vmax.f32 %v1484, 0.0
        %v1517 = vmax.f32 %v1485, 0.0
        %v1518 = vmax.f32 %v1486, 0.0
        %v1519 = vmax.f32 %v1487, 0.0
        %v1520 = vmax.f32 %v1488, 0.0
        %v1521 = vmax.f32 %v1489, 0.0
        %v1522 = vmax.f32 %v1490, 0.0
        %v1523 = vmax.f32 %v1491, 0.0
        %v1524 = vmax.f32 %v1492, 0.0
        %v1525 = vmax.f32 %v1493, 0.0
        %v1526 = vmax.f32 %v1494, 0.0
        %v1527 = vmax.f32 %v1495, 0.0
        %v1528 = vmax.f32 %v1496, 0.0
        %v1529 = vmax.f32 %v1497, 0.0
        %v1530 = vmax.f32 %v1498, 0.0
        %v1531 = vmax.f32 %v1499, 0.0
        %v1532 = vmax.f32 %v1500, 0.0
        %v1533 = vmax.f32 %v1501, 0.0
        %v1534 = vlaneseq
        %v1535 = vshrl.u32 %v1534, 7
        %v1536 = vsub.s32 0, %v1535
        %v1537 = vrot.slane %v212, %v1536
        %v1538 = vmul.f32 %v1502, %v1537
        %v1539 = vmul.f32 %v1503, %v1537
        %v1540 = vmul.f32 %v1504, %v1537
        %v1541 = vmul.f32 %v1505, %v1537
        %v1542 = vmul.f32 %v1506, %v1537
        %v1543 = vmul.f32 %v1507, %v1537
        %v1544 = vmul.f32 %v1508, %v1537
        %v1545 = vmul.f32 %v1509, %v1537
        %v1546 = vmul.f32 %v1510, %v1537
        %v1547 = vmul.f32 %v1511, %v1537
        %v1548 = vmul.f32 %v1512, %v1537
        %v1549 = vmul.f32 %v1513, %v1537
        %v1550 = vmul.f32 %v1514, %v1537
        %v1551 = vmul.f32 %v1515, %v1537
        %v1552 = vmul.f32 %v1516, %v1537
        %v1553 = vmul.f32 %v1517, %v1537
        %v1554 = vmul.f32 %v1518, %v1537
        %v1555 = vmul.f32 %v1519, %v1537
        %v1556 = vmul.f32 %v1520, %v1537
        %v1557 = vmul.f32 %v1521, %v1537
        %v1558 = vmul.f32 %v1522, %v1537
        %v1559 = vmul.f32 %v1523, %v1537
        %v1560 = vmul.f32 %v1524, %v1537
        %v1561 = vmul.f32 %v1525, %v1537
        %v1562 = vmul.f32 %v1526, %v1537
        %v1563 = vmul.f32 %v1527, %v1537
        %v1564 = vmul.f32 %v1528, %v1537
        %v1565 = vmul.f32 %v1529, %v1537
        %v1566 = vmul.f32 %v1530, %v1537
        %v1567 = vmul.f32 %v1531, %v1537
        %v1568 = vmul.f32 %v1532, %v1537
        %v1569 = vmul.f32 %v1533, %v1537
        %v1570 = vsel %vm608, %v1538, 0.0
        %1571 = vadd.xlane.f32.xlu0 %v1570
        %v1572 = vpop.xlane.xlu0 %1571
        %v1573 = vsel %vm608, %v1539, 0.0
        %1574 = vadd.xlane.f32.xlu0 %v1573
        %v1575 = vpop.xlane.xlu0 %1574
        %v1576 = vsel %vm608, %v1540, 0.0
        %1577 = vadd.xlane.f32.xlu0 %v1576
        %v1578 = vpop.xlane.xlu0 %1577
        %v1579 = vsel %vm608, %v1541, 0.0
        %1580 = vadd.xlane.f32.xlu0 %v1579
        %v1581 = vpop.xlane.xlu0 %1580
        %v1582 = vsel %vm608, %v1542, 0.0
        %1583 = vadd.xlane.f32.xlu0 %v1582
        %v1584 = vpop.xlane.xlu0 %1583
        %v1585 = vsel %vm608, %v1543, 0.0
        %1586 = vadd.xlane.f32.xlu0 %v1585
        %v1587 = vpop.xlane.xlu0 %1586
        %v1588 = vsel %vm608, %v1544, 0.0
        %1589 = vadd.xlane.f32.xlu0 %v1588
        %v1590 = vpop.xlane.xlu0 %1589
        %v1591 = vsel %vm608, %v1545, 0.0
        %1592 = vadd.xlane.f32.xlu0 %v1591
        %v1593 = vpop.xlane.xlu0 %1592
        %v1594 = vsel %vm608, %v1546, 0.0
        %1595 = vadd.xlane.f32.xlu0 %v1594
        %v1596 = vpop.xlane.xlu0 %1595
        %v1597 = vsel %vm608, %v1547, 0.0
        %1598 = vadd.xlane.f32.xlu0 %v1597
        %v1599 = vpop.xlane.xlu0 %1598
        %v1600 = vsel %vm608, %v1548, 0.0
        %1601 = vadd.xlane.f32.xlu0 %v1600
        %v1602 = vpop.xlane.xlu0 %1601
        %v1603 = vsel %vm608, %v1549, 0.0
        %1604 = vadd.xlane.f32.xlu0 %v1603
        %v1605 = vpop.xlane.xlu0 %1604
        %v1606 = vsel %vm608, %v1550, 0.0
        %1607 = vadd.xlane.f32.xlu0 %v1606
        %v1608 = vpop.xlane.xlu0 %1607
        %v1609 = vsel %vm608, %v1551, 0.0
        %1610 = vadd.xlane.f32.xlu0 %v1609
        %v1611 = vpop.xlane.xlu0 %1610
        %v1612 = vsel %vm608, %v1552, 0.0
        %1613 = vadd.xlane.f32.xlu0 %v1612
        %v1614 = vpop.xlane.xlu0 %1613
        %v1615 = vsel %vm608, %v1553, 0.0
        %1616 = vadd.xlane.f32.xlu0 %v1615
        %v1617 = vpop.xlane.xlu0 %1616
        %v1618 = vsel %vm608, %v1554, 0.0
        %1619 = vadd.xlane.f32.xlu0 %v1618
        %v1620 = vpop.xlane.xlu0 %1619
        %v1621 = vsel %vm608, %v1555, 0.0
        %1622 = vadd.xlane.f32.xlu0 %v1621
        %v1623 = vpop.xlane.xlu0 %1622
        %v1624 = vsel %vm608, %v1556, 0.0
        %1625 = vadd.xlane.f32.xlu0 %v1624
        %v1626 = vpop.xlane.xlu0 %1625
        %v1627 = vsel %vm608, %v1557, 0.0
        %1628 = vadd.xlane.f32.xlu0 %v1627
        %v1629 = vpop.xlane.xlu0 %1628
        %v1630 = vsel %vm608, %v1558, 0.0
        %1631 = vadd.xlane.f32.xlu0 %v1630
        %v1632 = vpop.xlane.xlu0 %1631
        %v1633 = vsel %vm608, %v1559, 0.0
        %1634 = vadd.xlane.f32.xlu0 %v1633
        %v1635 = vpop.xlane.xlu0 %1634
        %v1636 = vsel %vm608, %v1560, 0.0
        %1637 = vadd.xlane.f32.xlu0 %v1636
        %v1638 = vpop.xlane.xlu0 %1637
        %v1639 = vsel %vm608, %v1561, 0.0
        %1640 = vadd.xlane.f32.xlu0 %v1639
        %v1641 = vpop.xlane.xlu0 %1640
        %v1642 = vsel %vm608, %v1562, 0.0
        %1643 = vadd.xlane.f32.xlu0 %v1642
        %v1644 = vpop.xlane.xlu0 %1643
        %v1645 = vsel %vm608, %v1563, 0.0
        %1646 = vadd.xlane.f32.xlu0 %v1645
        %v1647 = vpop.xlane.xlu0 %1646
        %v1648 = vsel %vm608, %v1564, 0.0
        %1649 = vadd.xlane.f32.xlu0 %v1648
        %v1650 = vpop.xlane.xlu0 %1649
        %v1651 = vsel %vm608, %v1565, 0.0
        %1652 = vadd.xlane.f32.xlu0 %v1651
        %v1653 = vpop.xlane.xlu0 %1652
        %v1654 = vsel %vm608, %v1566, 0.0
        %1655 = vadd.xlane.f32.xlu0 %v1654
        %v1656 = vpop.xlane.xlu0 %1655
        %v1657 = vsel %vm608, %v1567, 0.0
        %1658 = vadd.xlane.f32.xlu0 %v1657
        %v1659 = vpop.xlane.xlu0 %1658
        %v1660 = vsel %vm608, %v1568, 0.0
        %1661 = vadd.xlane.f32.xlu0 %v1660
        %v1662 = vpop.xlane.xlu0 %1661
        %v1663 = vsel %vm608, %v1569, 0.0
        %1664 = vadd.xlane.f32.xlu0 %v1663
        %v1665 = vpop.xlane.xlu0 %1664
        %s1666 = sadd.s32 %s1373, 32
        %s1667 = scalar_lea.vmem [#allocation2], %s1666
        %v1668 = vld [vmem:[%s1667] sm:$0xff]
        %v1669 = vld [vmem:[#allocation3 + $0x20] sm:$0xff]
        %v1670 = vld [vmem:[#allocation3 + $0x28] sm:$0xff]
        %v1671 = vld [vmem:[#allocation3 + $0x30] sm:$0xff]
        %v1672 = vld [vmem:[#allocation3 + $0x38] sm:$0xff]
        %v1674 = vcombine.high %v1668, %v1668
        %v1676 = vunpack.c.l.s4 1966171168
        %v1677 = vunpack.c.0.s8 %v1676
        %v1678 = vlaneseq
        %v1679 = vshrl.u32 %v1678, 7
        %v1680 = vsub.s32 %v1677, %v1679
        %v1681 = vrot.slane %v1668, %v1680
        %v1683 = vunpack.c.l.s4 1966171168
        %v1684 = vunpack.c.0.s8 %v1683
        %v1685 = vlaneseq
        %v1686 = vshrl.u32 %v1685, 7
        %v1687 = vsub.s32 %v1684, %v1686
        %v1688 = vrot.slane %v1674, %v1687
        %v1689 = vcombine.high %v1681, %v1681
        %v1690 = vcombine.high %v1688, %v1688
        %v1692 = vunpack.c.l.s4 1966171168
        %v1693 = vunpack.c.0.s8 %v1692
        %v1694 = vlaneseq
        %v1695 = vshrl.u32 %v1694, 7
        %v1696 = vsub.s32 %v1693, %v1695
        %v1697 = vrot.slane %v1681, %v1696
        %v1699 = vunpack.c.l.s4 1966171168
        %v1700 = vunpack.c.0.s8 %v1699
        %v1701 = vlaneseq
        %v1702 = vshrl.u32 %v1701, 7
        %v1703 = vsub.s32 %v1700, %v1702
        %v1704 = vrot.slane %v1688, %v1703
        %v1706 = vunpack.c.l.s4 1966171168
        %v1707 = vunpack.c.0.s8 %v1706
        %v1708 = vlaneseq
        %v1709 = vshrl.u32 %v1708, 7
        %v1710 = vsub.s32 %v1707, %v1709
        %v1711 = vrot.slane %v1689, %v1710
        %v1713 = vunpack.c.l.s4 1966171168
        %v1714 = vunpack.c.0.s8 %v1713
        %v1715 = vlaneseq
        %v1716 = vshrl.u32 %v1715, 7
        %v1717 = vsub.s32 %v1714, %v1716
        %v1718 = vrot.slane %v1690, %v1717
        %v1719 = vcombine.high %v1697, %v1697
        %v1720 = vcombine.high %v1704, %v1704
        %v1721 = vcombine.high %v1711, %v1711
        %v1722 = vcombine.high %v1718, %v1718
        %v1723 = vlaneseq
        %v1724 = vshrl.u32 %v1723, 7
        %v1725 = vsub.s32 0, %v1724
        %v1726 = vrot.slane %v1697, %v1725
        %v1727 = vlaneseq
        %v1728 = vshrl.u32 %v1727, 7
        %v1729 = vsub.s32 0, %v1728
        %v1730 = vrot.slane %v1711, %v1729
        %v1731 = vlaneseq
        %v1732 = vshrl.u32 %v1731, 7
        %v1733 = vsub.s32 0, %v1732
        %v1734 = vrot.slane %v1719, %v1733
        %v1735 = vlaneseq
        %v1736 = vshrl.u32 %v1735, 7
        %v1737 = vsub.s32 0, %v1736
        %v1738 = vrot.slane %v1721, %v1737
        %v1739 = vlaneseq
        %v1740 = vshrl.u32 %v1739, 7
        %v1741 = vsub.s32 0, %v1740
        %v1742 = vrot.slane %v1704, %v1741
        %v1743 = vlaneseq
        %v1744 = vshrl.u32 %v1743, 7
        %v1745 = vsub.s32 0, %v1744
        %v1746 = vrot.slane %v1718, %v1745
        %v1747 = vlaneseq
        %v1748 = vshrl.u32 %v1747, 7
        %v1749 = vsub.s32 0, %v1748
        %v1750 = vrot.slane %v1720, %v1749
        %v1751 = vlaneseq
        %v1752 = vshrl.u32 %v1751, 7
        %v1753 = vsub.s32 0, %v1752
        %v1754 = vrot.slane %v1722, %v1753
        %v1763 = vadd.f32 %v1726, %v1669
        %v1764 = vadd.f32 %v1726, %v1670
        %v1765 = vadd.f32 %v1726, %v1671
        %v1766 = vadd.f32 %v1726, %v1672
        %v1767 = vadd.f32 %v1730, %v1669
        %v1768 = vadd.f32 %v1730, %v1670
        %v1769 = vadd.f32 %v1730, %v1671
        %v1770 = vadd.f32 %v1730, %v1672
        %v1771 = vadd.f32 %v1734, %v1669
        %v1772 = vadd.f32 %v1734, %v1670
        %v1773 = vadd.f32 %v1734, %v1671
        %v1774 = vadd.f32 %v1734, %v1672
        %v1775 = vadd.f32 %v1738, %v1669
        %v1776 = vadd.f32 %v1738, %v1670
        %v1777 = vadd.f32 %v1738, %v1671
        %v1778 = vadd.f32 %v1738, %v1672
        %v1779 = vadd.f32 %v1742, %v1669
        %v1780 = vadd.f32 %v1742, %v1670
        %v1781 = vadd.f32 %v1742, %v1671
        %v1782 = vadd.f32 %v1742, %v1672
        %v1783 = vadd.f32 %v1746, %v1669
        %v1784 = vadd.f32 %v1746, %v1670
        %v1785 = vadd.f32 %v1746, %v1671
        %v1786 = vadd.f32 %v1746, %v1672
        %v1787 = vadd.f32 %v1750, %v1669
        %v1788 = vadd.f32 %v1750, %v1670
        %v1789 = vadd.f32 %v1750, %v1671
        %v1790 = vadd.f32 %v1750, %v1672
        %v1791 = vadd.f32 %v1754, %v1669
        %v1792 = vadd.f32 %v1754, %v1670
        %v1793 = vadd.f32 %v1754, %v1671
        %v1794 = vadd.f32 %v1754, %v1672
        %v1795 = vmax.f32 %v1763, 0.0
        %v1796 = vmax.f32 %v1764, 0.0
        %v1797 = vmax.f32 %v1765, 0.0
        %v1798 = vmax.f32 %v1766, 0.0
        %v1799 = vmax.f32 %v1767, 0.0
        %v1800 = vmax.f32 %v1768, 0.0
        %v1801 = vmax.f32 %v1769, 0.0
        %v1802 = vmax.f32 %v1770, 0.0
        %v1803 = vmax.f32 %v1771, 0.0
        %v1804 = vmax.f32 %v1772, 0.0
        %v1805 = vmax.f32 %v1773, 0.0
        %v1806 = vmax.f32 %v1774, 0.0
        %v1807 = vmax.f32 %v1775, 0.0
        %v1808 = vmax.f32 %v1776, 0.0
        %v1809 = vmax.f32 %v1777, 0.0
        %v1810 = vmax.f32 %v1778, 0.0
        %v1811 = vmax.f32 %v1779, 0.0
        %v1812 = vmax.f32 %v1780, 0.0
        %v1813 = vmax.f32 %v1781, 0.0
        %v1814 = vmax.f32 %v1782, 0.0
        %v1815 = vmax.f32 %v1783, 0.0
        %v1816 = vmax.f32 %v1784, 0.0
        %v1817 = vmax.f32 %v1785, 0.0
        %v1818 = vmax.f32 %v1786, 0.0
        %v1819 = vmax.f32 %v1787, 0.0
        %v1820 = vmax.f32 %v1788, 0.0
        %v1821 = vmax.f32 %v1789, 0.0
        %v1822 = vmax.f32 %v1790, 0.0
        %v1823 = vmax.f32 %v1791, 0.0
        %v1824 = vmax.f32 %v1792, 0.0
        %v1825 = vmax.f32 %v1793, 0.0
        %v1826 = vmax.f32 %v1794, 0.0
        %v1827 = vmul.f32 %v1795, %v1537
        %v1828 = vmul.f32 %v1796, %v1537
        %v1829 = vmul.f32 %v1797, %v1537
        %v1830 = vmul.f32 %v1798, %v1537
        %v1831 = vmul.f32 %v1799, %v1537
        %v1832 = vmul.f32 %v1800, %v1537
        %v1833 = vmul.f32 %v1801, %v1537
        %v1834 = vmul.f32 %v1802, %v1537
        %v1835 = vmul.f32 %v1803, %v1537
        %v1836 = vmul.f32 %v1804, %v1537
        %v1837 = vmul.f32 %v1805, %v1537
        %v1838 = vmul.f32 %v1806, %v1537
        %v1839 = vmul.f32 %v1807, %v1537
        %v1840 = vmul.f32 %v1808, %v1537
        %v1841 = vmul.f32 %v1809, %v1537
        %v1842 = vmul.f32 %v1810, %v1537
        %v1843 = vmul.f32 %v1811, %v1537
        %v1844 = vmul.f32 %v1812, %v1537
        %v1845 = vmul.f32 %v1813, %v1537
        %v1846 = vmul.f32 %v1814, %v1537
        %v1847 = vmul.f32 %v1815, %v1537
        %v1848 = vmul.f32 %v1816, %v1537
        %v1849 = vmul.f32 %v1817, %v1537
        %v1850 = vmul.f32 %v1818, %v1537
        %v1851 = vmul.f32 %v1819, %v1537
        %v1852 = vmul.f32 %v1820, %v1537
        %v1853 = vmul.f32 %v1821, %v1537
        %v1854 = vmul.f32 %v1822, %v1537
        %v1855 = vmul.f32 %v1823, %v1537
        %v1856 = vmul.f32 %v1824, %v1537
        %v1857 = vmul.f32 %v1825, %v1537
        %v1858 = vmul.f32 %v1826, %v1537
        %v1859 = vsel %vm608, %v1827, 0.0
        %1860 = vadd.xlane.f32.xlu0 %v1859
        %v1861 = vpop.xlane.xlu0 %1860
        %v1862 = vsel %vm608, %v1828, 0.0
        %1863 = vadd.xlane.f32.xlu0 %v1862
        %v1864 = vpop.xlane.xlu0 %1863
        %v1865 = vsel %vm608, %v1829, 0.0
        %1866 = vadd.xlane.f32.xlu0 %v1865
        %v1867 = vpop.xlane.xlu0 %1866
        %v1868 = vsel %vm608, %v1830, 0.0
        %1869 = vadd.xlane.f32.xlu0 %v1868
        %v1870 = vpop.xlane.xlu0 %1869
        %v1871 = vsel %vm608, %v1831, 0.0
        %1872 = vadd.xlane.f32.xlu0 %v1871
        %v1873 = vpop.xlane.xlu0 %1872
        %v1874 = vsel %vm608, %v1832, 0.0
        %1875 = vadd.xlane.f32.xlu0 %v1874
        %v1876 = vpop.xlane.xlu0 %1875
        %v1877 = vsel %vm608, %v1833, 0.0
        %1878 = vadd.xlane.f32.xlu0 %v1877
        %v1879 = vpop.xlane.xlu0 %1878
        %v1880 = vsel %vm608, %v1834, 0.0
        %1881 = vadd.xlane.f32.xlu0 %v1880
        %v1882 = vpop.xlane.xlu0 %1881
        %v1883 = vsel %vm608, %v1835, 0.0
        %1884 = vadd.xlane.f32.xlu0 %v1883
        %v1885 = vpop.xlane.xlu0 %1884
        %v1886 = vsel %vm608, %v1836, 0.0
        %1887 = vadd.xlane.f32.xlu0 %v1886
        %v1888 = vpop.xlane.xlu0 %1887
        %v1889 = vsel %vm608, %v1837, 0.0
        %1890 = vadd.xlane.f32.xlu0 %v1889
        %v1891 = vpop.xlane.xlu0 %1890
        %v1892 = vsel %vm608, %v1838, 0.0
        %1893 = vadd.xlane.f32.xlu0 %v1892
        %v1894 = vpop.xlane.xlu0 %1893
        %v1895 = vsel %vm608, %v1839, 0.0
        %1896 = vadd.xlane.f32.xlu0 %v1895
        %v1897 = vpop.xlane.xlu0 %1896
        %v1898 = vsel %vm608, %v1840, 0.0
        %1899 = vadd.xlane.f32.xlu0 %v1898
        %v1900 = vpop.xlane.xlu0 %1899
        %v1901 = vsel %vm608, %v1841, 0.0
        %1902 = vadd.xlane.f32.xlu0 %v1901
        %v1903 = vpop.xlane.xlu0 %1902
        %v1904 = vsel %vm608, %v1842, 0.0
        %1905 = vadd.xlane.f32.xlu0 %v1904
        %v1906 = vpop.xlane.xlu0 %1905
        %v1907 = vsel %vm608, %v1843, 0.0
        %1908 = vadd.xlane.f32.xlu0 %v1907
        %v1909 = vpop.xlane.xlu0 %1908
        %v1910 = vsel %vm608, %v1844, 0.0
        %1911 = vadd.xlane.f32.xlu0 %v1910
        %v1912 = vpop.xlane.xlu0 %1911
        %v1913 = vsel %vm608, %v1845, 0.0
        %1914 = vadd.xlane.f32.xlu0 %v1913
        %v1915 = vpop.xlane.xlu0 %1914
        %v1916 = vsel %vm608, %v1846, 0.0
        %1917 = vadd.xlane.f32.xlu0 %v1916
        %v1918 = vpop.xlane.xlu0 %1917
        %v1919 = vsel %vm608, %v1847, 0.0
        %1920 = vadd.xlane.f32.xlu0 %v1919
        %v1921 = vpop.xlane.xlu0 %1920
        %v1922 = vsel %vm608, %v1848, 0.0
        %1923 = vadd.xlane.f32.xlu0 %v1922
        %v1924 = vpop.xlane.xlu0 %1923
        %v1925 = vsel %vm608, %v1849, 0.0
        %1926 = vadd.xlane.f32.xlu0 %v1925
        %v1927 = vpop.xlane.xlu0 %1926
        %v1928 = vsel %vm608, %v1850, 0.0
        %1929 = vadd.xlane.f32.xlu0 %v1928
        %v1930 = vpop.xlane.xlu0 %1929
        %v1931 = vsel %vm608, %v1851, 0.0
        %1932 = vadd.xlane.f32.xlu0 %v1931
        %v1933 = vpop.xlane.xlu0 %1932
        %v1934 = vsel %vm608, %v1852, 0.0
        %1935 = vadd.xlane.f32.xlu0 %v1934
        %v1936 = vpop.xlane.xlu0 %1935
        %v1937 = vsel %vm608, %v1853, 0.0
        %1938 = vadd.xlane.f32.xlu0 %v1937
        %v1939 = vpop.xlane.xlu0 %1938
        %v1940 = vsel %vm608, %v1854, 0.0
        %1941 = vadd.xlane.f32.xlu0 %v1940
        %v1942 = vpop.xlane.xlu0 %1941
        %v1943 = vsel %vm608, %v1855, 0.0
        %1944 = vadd.xlane.f32.xlu0 %v1943
        %v1945 = vpop.xlane.xlu0 %1944
        %v1946 = vsel %vm608, %v1856, 0.0
        %1947 = vadd.xlane.f32.xlu0 %v1946
        %v1948 = vpop.xlane.xlu0 %1947
        %v1949 = vsel %vm608, %v1857, 0.0
        %1950 = vadd.xlane.f32.xlu0 %v1949
        %v1951 = vpop.xlane.xlu0 %1950
        %v1952 = vsel %vm608, %v1858, 0.0
        %1953 = vadd.xlane.f32.xlu0 %v1952
        %v1954 = vpop.xlane.xlu0 %1953
        %s1955 = sadd.s32 %s1373, 64
        %s1956 = scalar_lea.vmem [#allocation2], %s1955
        %v1957 = vld [vmem:[%s1956] sm:$0xff]
        %v1958 = vld [vmem:[#allocation3 + $0x40] sm:$0xff]
        %v1959 = vld [vmem:[#allocation3 + $0x48] sm:$0xff]
        %v1960 = vld [vmem:[#allocation3 + $0x50] sm:$0xff]
        %v1961 = vld [vmem:[#allocation3 + $0x58] sm:$0xff]
        %v1963 = vcombine.high %v1957, %v1957
        %v1965 = vunpack.c.l.s4 1966171168
        %v1966 = vunpack.c.0.s8 %v1965
        %v1967 = vlaneseq
        %v1968 = vshrl.u32 %v1967, 7
        %v1969 = vsub.s32 %v1966, %v1968
        %v1970 = vrot.slane %v1957, %v1969
        %v1972 = vunpack.c.l.s4 1966171168
        %v1973 = vunpack.c.0.s8 %v1972
        %v1974 = vlaneseq
        %v1975 = vshrl.u32 %v1974, 7
        %v1976 = vsub.s32 %v1973, %v1975
        %v1977 = vrot.slane %v1963, %v1976
        %v1978 = vcombine.high %v1970, %v1970
        %v1979 = vcombine.high %v1977, %v1977
        %v1981 = vunpack.c.l.s4 1966171168
        %v1982 = vunpack.c.0.s8 %v1981
        %v1983 = vlaneseq
        %v1984 = vshrl.u32 %v1983, 7
        %v1985 = vsub.s32 %v1982, %v1984
        %v1986 = vrot.slane %v1970, %v1985
        %v1988 = vunpack.c.l.s4 1966171168
        %v1989 = vunpack.c.0.s8 %v1988
        %v1990 = vlaneseq
        %v1991 = vshrl.u32 %v1990, 7
        %v1992 = vsub.s32 %v1989, %v1991
        %v1993 = vrot.slane %v1977, %v1992
        %v1995 = vunpack.c.l.s4 1966171168
        %v1996 = vunpack.c.0.s8 %v1995
        %v1997 = vlaneseq
        %v1998 = vshrl.u32 %v1997, 7
        %v1999 = vsub.s32 %v1996, %v1998
        %v2000 = vrot.slane %v1978, %v1999
        %v2002 = vunpack.c.l.s4 1966171168
        %v2003 = vunpack.c.0.s8 %v2002
        %v2004 = vlaneseq
        %v2005 = vshrl.u32 %v2004, 7
        %v2006 = vsub.s32 %v2003, %v2005
        %v2007 = vrot.slane %v1979, %v2006
        %v2008 = vcombine.high %v1986, %v1986
        %v2009 = vcombine.high %v1993, %v1993
        %v2010 = vcombine.high %v2000, %v2000
        %v2011 = vcombine.high %v2007, %v2007
        %v2012 = vlaneseq
        %v2013 = vshrl.u32 %v2012, 7
        %v2014 = vsub.s32 0, %v2013
        %v2015 = vrot.slane %v1986, %v2014
        %v2016 = vlaneseq
        %v2017 = vshrl.u32 %v2016, 7
        %v2018 = vsub.s32 0, %v2017
        %v2019 = vrot.slane %v2000, %v2018
        %v2020 = vlaneseq
        %v2021 = vshrl.u32 %v2020, 7
        %v2022 = vsub.s32 0, %v2021
        %v2023 = vrot.slane %v2008, %v2022
        %v2024 = vlaneseq
        %v2025 = vshrl.u32 %v2024, 7
        %v2026 = vsub.s32 0, %v2025
        %v2027 = vrot.slane %v2010, %v2026
        %v2028 = vlaneseq
        %v2029 = vshrl.u32 %v2028, 7
        %v2030 = vsub.s32 0, %v2029
        %v2031 = vrot.slane %v1993, %v2030
        %v2032 = vlaneseq
        %v2033 = vshrl.u32 %v2032, 7
        %v2034 = vsub.s32 0, %v2033
        %v2035 = vrot.slane %v2007, %v2034
        %v2036 = vlaneseq
        %v2037 = vshrl.u32 %v2036, 7
        %v2038 = vsub.s32 0, %v2037
        %v2039 = vrot.slane %v2009, %v2038
        %v2040 = vlaneseq
        %v2041 = vshrl.u32 %v2040, 7
        %v2042 = vsub.s32 0, %v2041
        %v2043 = vrot.slane %v2011, %v2042
        %v2052 = vadd.f32 %v2015, %v1958
        %v2053 = vadd.f32 %v2015, %v1959
        %v2054 = vadd.f32 %v2015, %v1960
        %v2055 = vadd.f32 %v2015, %v1961
        %v2056 = vadd.f32 %v2019, %v1958
        %v2057 = vadd.f32 %v2019, %v1959
        %v2058 = vadd.f32 %v2019, %v1960
        %v2059 = vadd.f32 %v2019, %v1961
        %v2060 = vadd.f32 %v2023, %v1958
        %v2061 = vadd.f32 %v2023, %v1959
        %v2062 = vadd.f32 %v2023, %v1960
        %v2063 = vadd.f32 %v2023, %v1961
        %v2064 = vadd.f32 %v2027, %v1958
        %v2065 = vadd.f32 %v2027, %v1959
        %v2066 = vadd.f32 %v2027, %v1960
        %v2067 = vadd.f32 %v2027, %v1961
        %v2068 = vadd.f32 %v2031, %v1958
        %v2069 = vadd.f32 %v2031, %v1959
        %v2070 = vadd.f32 %v2031, %v1960
        %v2071 = vadd.f32 %v2031, %v1961
        %v2072 = vadd.f32 %v2035, %v1958
        %v2073 = vadd.f32 %v2035, %v1959
        %v2074 = vadd.f32 %v2035, %v1960
        %v2075 = vadd.f32 %v2035, %v1961
        %v2076 = vadd.f32 %v2039, %v1958
        %v2077 = vadd.f32 %v2039, %v1959
        %v2078 = vadd.f32 %v2039, %v1960
        %v2079 = vadd.f32 %v2039, %v1961
        %v2080 = vadd.f32 %v2043, %v1958
        %v2081 = vadd.f32 %v2043, %v1959
        %v2082 = vadd.f32 %v2043, %v1960
        %v2083 = vadd.f32 %v2043, %v1961
        %v2084 = vmax.f32 %v2052, 0.0
        %v2085 = vmax.f32 %v2053, 0.0
        %v2086 = vmax.f32 %v2054, 0.0
        %v2087 = vmax.f32 %v2055, 0.0
        %v2088 = vmax.f32 %v2056, 0.0
        %v2089 = vmax.f32 %v2057, 0.0
        %v2090 = vmax.f32 %v2058, 0.0
        %v2091 = vmax.f32 %v2059, 0.0
        %v2092 = vmax.f32 %v2060, 0.0
        %v2093 = vmax.f32 %v2061, 0.0
        %v2094 = vmax.f32 %v2062, 0.0
        %v2095 = vmax.f32 %v2063, 0.0
        %v2096 = vmax.f32 %v2064, 0.0
        %v2097 = vmax.f32 %v2065, 0.0
        %v2098 = vmax.f32 %v2066, 0.0
        %v2099 = vmax.f32 %v2067, 0.0
        %v2100 = vmax.f32 %v2068, 0.0
        %v2101 = vmax.f32 %v2069, 0.0
        %v2102 = vmax.f32 %v2070, 0.0
        %v2103 = vmax.f32 %v2071, 0.0
        %v2104 = vmax.f32 %v2072, 0.0
        %v2105 = vmax.f32 %v2073, 0.0
        %v2106 = vmax.f32 %v2074, 0.0
        %v2107 = vmax.f32 %v2075, 0.0
        %v2108 = vmax.f32 %v2076, 0.0
        %v2109 = vmax.f32 %v2077, 0.0
        %v2110 = vmax.f32 %v2078, 0.0
        %v2111 = vmax.f32 %v2079, 0.0
        %v2112 = vmax.f32 %v2080, 0.0
        %v2113 = vmax.f32 %v2081, 0.0
        %v2114 = vmax.f32 %v2082, 0.0
        %v2115 = vmax.f32 %v2083, 0.0
        %v2116 = vmul.f32 %v2084, %v1537
        %v2117 = vmul.f32 %v2085, %v1537
        %v2118 = vmul.f32 %v2086, %v1537
        %v2119 = vmul.f32 %v2087, %v1537
        %v2120 = vmul.f32 %v2088, %v1537
        %v2121 = vmul.f32 %v2089, %v1537
        %v2122 = vmul.f32 %v2090, %v1537
        %v2123 = vmul.f32 %v2091, %v1537
        %v2124 = vmul.f32 %v2092, %v1537
        %v2125 = vmul.f32 %v2093, %v1537
        %v2126 = vmul.f32 %v2094, %v1537
        %v2127 = vmul.f32 %v2095, %v1537
        %v2128 = vmul.f32 %v2096, %v1537
        %v2129 = vmul.f32 %v2097, %v1537
        %v2130 = vmul.f32 %v2098, %v1537
        %v2131 = vmul.f32 %v2099, %v1537
        %v2132 = vmul.f32 %v2100, %v1537
        %v2133 = vmul.f32 %v2101, %v1537
        %v2134 = vmul.f32 %v2102, %v1537
        %v2135 = vmul.f32 %v2103, %v1537
        %v2136 = vmul.f32 %v2104, %v1537
        %v2137 = vmul.f32 %v2105, %v1537
        %v2138 = vmul.f32 %v2106, %v1537
        %v2139 = vmul.f32 %v2107, %v1537
        %v2140 = vmul.f32 %v2108, %v1537
        %v2141 = vmul.f32 %v2109, %v1537
        %v2142 = vmul.f32 %v2110, %v1537
        %v2143 = vmul.f32 %v2111, %v1537
        %v2144 = vmul.f32 %v2112, %v1537
        %v2145 = vmul.f32 %v2113, %v1537
        %v2146 = vmul.f32 %v2114, %v1537
        %v2147 = vmul.f32 %v2115, %v1537
        %v2148 = vsel %vm608, %v2116, 0.0
        %2149 = vadd.xlane.f32.xlu0 %v2148
        %v2150 = vpop.xlane.xlu0 %2149
        %v2151 = vsel %vm608, %v2117, 0.0
        %2152 = vadd.xlane.f32.xlu0 %v2151
        %v2153 = vpop.xlane.xlu0 %2152
        %v2154 = vsel %vm608, %v2118, 0.0
        %2155 = vadd.xlane.f32.xlu0 %v2154
        %v2156 = vpop.xlane.xlu0 %2155
        %v2157 = vsel %vm608, %v2119, 0.0
        %2158 = vadd.xlane.f32.xlu0 %v2157
        %v2159 = vpop.xlane.xlu0 %2158
        %v2160 = vsel %vm608, %v2120, 0.0
        %2161 = vadd.xlane.f32.xlu0 %v2160
        %v2162 = vpop.xlane.xlu0 %2161
        %v2163 = vsel %vm608, %v2121, 0.0
        %2164 = vadd.xlane.f32.xlu0 %v2163
        %v2165 = vpop.xlane.xlu0 %2164
        %v2166 = vsel %vm608, %v2122, 0.0
        %2167 = vadd.xlane.f32.xlu0 %v2166
        %v2168 = vpop.xlane.xlu0 %2167
        %v2169 = vsel %vm608, %v2123, 0.0
        %2170 = vadd.xlane.f32.xlu0 %v2169
        %v2171 = vpop.xlane.xlu0 %2170
        %v2172 = vsel %vm608, %v2124, 0.0
        %2173 = vadd.xlane.f32.xlu0 %v2172
        %v2174 = vpop.xlane.xlu0 %2173
        %v2175 = vsel %vm608, %v2125, 0.0
        %2176 = vadd.xlane.f32.xlu0 %v2175
        %v2177 = vpop.xlane.xlu0 %2176
        %v2178 = vsel %vm608, %v2126, 0.0
        %2179 = vadd.xlane.f32.xlu0 %v2178
        %v2180 = vpop.xlane.xlu0 %2179
        %v2181 = vsel %vm608, %v2127, 0.0
        %2182 = vadd.xlane.f32.xlu0 %v2181
        %v2183 = vpop.xlane.xlu0 %2182
        %v2184 = vsel %vm608, %v2128, 0.0
        %2185 = vadd.xlane.f32.xlu0 %v2184
        %v2186 = vpop.xlane.xlu0 %2185
        %v2187 = vsel %vm608, %v2129, 0.0
        %2188 = vadd.xlane.f32.xlu0 %v2187
        %v2189 = vpop.xlane.xlu0 %2188
        %v2190 = vsel %vm608, %v2130, 0.0
        %2191 = vadd.xlane.f32.xlu0 %v2190
        %v2192 = vpop.xlane.xlu0 %2191
        %v2193 = vsel %vm608, %v2131, 0.0
        %2194 = vadd.xlane.f32.xlu0 %v2193
        %v2195 = vpop.xlane.xlu0 %2194
        %v2196 = vsel %vm608, %v2132, 0.0
        %2197 = vadd.xlane.f32.xlu0 %v2196
        %v2198 = vpop.xlane.xlu0 %2197
        %v2199 = vsel %vm608, %v2133, 0.0
        %2200 = vadd.xlane.f32.xlu0 %v2199
        %v2201 = vpop.xlane.xlu0 %2200
        %v2202 = vsel %vm608, %v2134, 0.0
        %2203 = vadd.xlane.f32.xlu0 %v2202
        %v2204 = vpop.xlane.xlu0 %2203
        %v2205 = vsel %vm608, %v2135, 0.0
        %2206 = vadd.xlane.f32.xlu0 %v2205
        %v2207 = vpop.xlane.xlu0 %2206
        %v2208 = vsel %vm608, %v2136, 0.0
        %2209 = vadd.xlane.f32.xlu0 %v2208
        %v2210 = vpop.xlane.xlu0 %2209
        %v2211 = vsel %vm608, %v2137, 0.0
        %2212 = vadd.xlane.f32.xlu0 %v2211
        %v2213 = vpop.xlane.xlu0 %2212
        %v2214 = vsel %vm608, %v2138, 0.0
        %2215 = vadd.xlane.f32.xlu0 %v2214
        %v2216 = vpop.xlane.xlu0 %2215
        %v2217 = vsel %vm608, %v2139, 0.0
        %2218 = vadd.xlane.f32.xlu0 %v2217
        %v2219 = vpop.xlane.xlu0 %2218
        %v2220 = vsel %vm608, %v2140, 0.0
        %2221 = vadd.xlane.f32.xlu0 %v2220
        %v2222 = vpop.xlane.xlu0 %2221
        %v2223 = vsel %vm608, %v2141, 0.0
        %2224 = vadd.xlane.f32.xlu0 %v2223
        %v2225 = vpop.xlane.xlu0 %2224
        %v2226 = vsel %vm608, %v2142, 0.0
        %2227 = vadd.xlane.f32.xlu0 %v2226
        %v2228 = vpop.xlane.xlu0 %2227
        %v2229 = vsel %vm608, %v2143, 0.0
        %2230 = vadd.xlane.f32.xlu0 %v2229
        %v2231 = vpop.xlane.xlu0 %2230
        %v2232 = vsel %vm608, %v2144, 0.0
        %2233 = vadd.xlane.f32.xlu0 %v2232
        %v2234 = vpop.xlane.xlu0 %2233
        %v2235 = vsel %vm608, %v2145, 0.0
        %2236 = vadd.xlane.f32.xlu0 %v2235
        %v2237 = vpop.xlane.xlu0 %2236
        %v2238 = vsel %vm608, %v2146, 0.0
        %2239 = vadd.xlane.f32.xlu0 %v2238
        %v2240 = vpop.xlane.xlu0 %2239
        %v2241 = vsel %vm608, %v2147, 0.0
        %2242 = vadd.xlane.f32.xlu0 %v2241
        %v2243 = vpop.xlane.xlu0 %2242
        %s2244 = sadd.s32 %s1373, 96
        %s2245 = scalar_lea.vmem [#allocation2], %s2244
        %v2246 = vld [vmem:[%s2245] sm:$0xff]
        %v2247 = vld [vmem:[#allocation3 + $0x60] sm:$0xff]
        %v2248 = vld [vmem:[#allocation3 + $0x68] sm:$0xff]
        %v2249 = vld [vmem:[#allocation3 + $0x70] sm:$0xff]
        %v2250 = vld [vmem:[#allocation3 + $0x78] sm:$0xff]
        %v2252 = vcombine.high %v2246, %v2246
        %v2254 = vunpack.c.l.s4 1966171168
        %v2255 = vunpack.c.0.s8 %v2254
        %v2256 = vlaneseq
        %v2257 = vshrl.u32 %v2256, 7
        %v2258 = vsub.s32 %v2255, %v2257
        %v2259 = vrot.slane %v2246, %v2258
        %v2261 = vunpack.c.l.s4 1966171168
        %v2262 = vunpack.c.0.s8 %v2261
        %v2263 = vlaneseq
        %v2264 = vshrl.u32 %v2263, 7
        %v2265 = vsub.s32 %v2262, %v2264
        %v2266 = vrot.slane %v2252, %v2265
        %v2267 = vcombine.high %v2259, %v2259
        %v2268 = vcombine.high %v2266, %v2266
        %v2270 = vunpack.c.l.s4 1966171168
        %v2271 = vunpack.c.0.s8 %v2270
        %v2272 = vlaneseq
        %v2273 = vshrl.u32 %v2272, 7
        %v2274 = vsub.s32 %v2271, %v2273
        %v2275 = vrot.slane %v2259, %v2274
        %v2277 = vunpack.c.l.s4 1966171168
        %v2278 = vunpack.c.0.s8 %v2277
        %v2279 = vlaneseq
        %v2280 = vshrl.u32 %v2279, 7
        %v2281 = vsub.s32 %v2278, %v2280
        %v2282 = vrot.slane %v2266, %v2281
        %v2284 = vunpack.c.l.s4 1966171168
        %v2285 = vunpack.c.0.s8 %v2284
        %v2286 = vlaneseq
        %v2287 = vshrl.u32 %v2286, 7
        %v2288 = vsub.s32 %v2285, %v2287
        %v2289 = vrot.slane %v2267, %v2288
        %v2291 = vunpack.c.l.s4 1966171168
        %v2292 = vunpack.c.0.s8 %v2291
        %v2293 = vlaneseq
        %v2294 = vshrl.u32 %v2293, 7
        %v2295 = vsub.s32 %v2292, %v2294
        %v2296 = vrot.slane %v2268, %v2295
        %v2297 = vcombine.high %v2275, %v2275
        %v2298 = vcombine.high %v2282, %v2282
        %v2299 = vcombine.high %v2289, %v2289
        %v2300 = vcombine.high %v2296, %v2296
        %v2301 = vlaneseq
        %v2302 = vshrl.u32 %v2301, 7
        %v2303 = vsub.s32 0, %v2302
        %v2304 = vrot.slane %v2275, %v2303
        %v2305 = vlaneseq
        %v2306 = vshrl.u32 %v2305, 7
        %v2307 = vsub.s32 0, %v2306
        %v2308 = vrot.slane %v2289, %v2307
        %v2309 = vlaneseq
        %v2310 = vshrl.u32 %v2309, 7
        %v2311 = vsub.s32 0, %v2310
        %v2312 = vrot.slane %v2297, %v2311
        %v2313 = vlaneseq
        %v2314 = vshrl.u32 %v2313, 7
        %v2315 = vsub.s32 0, %v2314
        %v2316 = vrot.slane %v2299, %v2315
        %v2317 = vlaneseq
        %v2318 = vshrl.u32 %v2317, 7
        %v2319 = vsub.s32 0, %v2318
        %v2320 = vrot.slane %v2282, %v2319
        %v2321 = vlaneseq
        %v2322 = vshrl.u32 %v2321, 7
        %v2323 = vsub.s32 0, %v2322
        %v2324 = vrot.slane %v2296, %v2323
        %v2325 = vlaneseq
        %v2326 = vshrl.u32 %v2325, 7
        %v2327 = vsub.s32 0, %v2326
        %v2328 = vrot.slane %v2298, %v2327
        %v2329 = vlaneseq
        %v2330 = vshrl.u32 %v2329, 7
        %v2331 = vsub.s32 0, %v2330
        %v2332 = vrot.slane %v2300, %v2331
        %v2341 = vadd.f32 %v2304, %v2247
        %v2342 = vadd.f32 %v2304, %v2248
        %v2343 = vadd.f32 %v2304, %v2249
        %v2344 = vadd.f32 %v2304, %v2250
        %v2345 = vadd.f32 %v2308, %v2247
        %v2346 = vadd.f32 %v2308, %v2248
        %v2347 = vadd.f32 %v2308, %v2249
        %v2348 = vadd.f32 %v2308, %v2250
        %v2349 = vadd.f32 %v2312, %v2247
        %v2350 = vadd.f32 %v2312, %v2248
        %v2351 = vadd.f32 %v2312, %v2249
        %v2352 = vadd.f32 %v2312, %v2250
        %v2353 = vadd.f32 %v2316, %v2247
        %v2354 = vadd.f32 %v2316, %v2248
        %v2355 = vadd.f32 %v2316, %v2249
        %v2356 = vadd.f32 %v2316, %v2250
        %v2357 = vadd.f32 %v2320, %v2247
        %v2358 = vadd.f32 %v2320, %v2248
        %v2359 = vadd.f32 %v2320, %v2249
        %v2360 = vadd.f32 %v2320, %v2250
        %v2361 = vadd.f32 %v2324, %v2247
        %v2362 = vadd.f32 %v2324, %v2248
        %v2363 = vadd.f32 %v2324, %v2249
        %v2364 = vadd.f32 %v2324, %v2250
        %v2365 = vadd.f32 %v2328, %v2247
        %v2366 = vadd.f32 %v2328, %v2248
        %v2367 = vadd.f32 %v2328, %v2249
        %v2368 = vadd.f32 %v2328, %v2250
        %v2369 = vadd.f32 %v2332, %v2247
        %v2370 = vadd.f32 %v2332, %v2248
        %v2371 = vadd.f32 %v2332, %v2249
        %v2372 = vadd.f32 %v2332, %v2250
        %v2373 = vmax.f32 %v2341, 0.0
        %v2374 = vmax.f32 %v2342, 0.0
        %v2375 = vmax.f32 %v2343, 0.0
        %v2376 = vmax.f32 %v2344, 0.0
        %v2377 = vmax.f32 %v2345, 0.0
        %v2378 = vmax.f32 %v2346, 0.0
        %v2379 = vmax.f32 %v2347, 0.0
        %v2380 = vmax.f32 %v2348, 0.0
        %v2381 = vmax.f32 %v2349, 0.0
        %v2382 = vmax.f32 %v2350, 0.0
        %v2383 = vmax.f32 %v2351, 0.0
        %v2384 = vmax.f32 %v2352, 0.0
        %v2385 = vmax.f32 %v2353, 0.0
        %v2386 = vmax.f32 %v2354, 0.0
        %v2387 = vmax.f32 %v2355, 0.0
        %v2388 = vmax.f32 %v2356, 0.0
        %v2389 = vmax.f32 %v2357, 0.0
        %v2390 = vmax.f32 %v2358, 0.0
        %v2391 = vmax.f32 %v2359, 0.0
        %v2392 = vmax.f32 %v2360, 0.0
        %v2393 = vmax.f32 %v2361, 0.0
        %v2394 = vmax.f32 %v2362, 0.0
        %v2395 = vmax.f32 %v2363, 0.0
        %v2396 = vmax.f32 %v2364, 0.0
        %v2397 = vmax.f32 %v2365, 0.0
        %v2398 = vmax.f32 %v2366, 0.0
        %v2399 = vmax.f32 %v2367, 0.0
        %v2400 = vmax.f32 %v2368, 0.0
        %v2401 = vmax.f32 %v2369, 0.0
        %v2402 = vmax.f32 %v2370, 0.0
        %v2403 = vmax.f32 %v2371, 0.0
        %v2404 = vmax.f32 %v2372, 0.0
        %v2405 = vmul.f32 %v2373, %v1537
        %v2406 = vmul.f32 %v2374, %v1537
        %v2407 = vmul.f32 %v2375, %v1537
        %v2408 = vmul.f32 %v2376, %v1537
        %v2409 = vmul.f32 %v2377, %v1537
        %v2410 = vmul.f32 %v2378, %v1537
        %v2411 = vmul.f32 %v2379, %v1537
        %v2412 = vmul.f32 %v2380, %v1537
        %v2413 = vmul.f32 %v2381, %v1537
        %v2414 = vmul.f32 %v2382, %v1537
        %v2415 = vmul.f32 %v2383, %v1537
        %v2416 = vmul.f32 %v2384, %v1537
        %v2417 = vmul.f32 %v2385, %v1537
        %v2418 = vmul.f32 %v2386, %v1537
        %v2419 = vmul.f32 %v2387, %v1537
        %v2420 = vmul.f32 %v2388, %v1537
        %v2421 = vmul.f32 %v2389, %v1537
        %v2422 = vmul.f32 %v2390, %v1537
        %v2423 = vmul.f32 %v2391, %v1537
        %v2424 = vmul.f32 %v2392, %v1537
        %v2425 = vmul.f32 %v2393, %v1537
        %v2426 = vmul.f32 %v2394, %v1537
        %v2427 = vmul.f32 %v2395, %v1537
        %v2428 = vmul.f32 %v2396, %v1537
        %v2429 = vmul.f32 %v2397, %v1537
        %v2430 = vmul.f32 %v2398, %v1537
        %v2431 = vmul.f32 %v2399, %v1537
        %v2432 = vmul.f32 %v2400, %v1537
        %v2433 = vmul.f32 %v2401, %v1537
        %v2434 = vmul.f32 %v2402, %v1537
        %v2435 = vmul.f32 %v2403, %v1537
        %v2436 = vmul.f32 %v2404, %v1537
        %v2437 = vsel %vm608, %v2405, 0.0
        %2438 = vadd.xlane.f32.xlu0 %v2437
        %v2439 = vpop.xlane.xlu0 %2438
        %v2440 = vsel %vm608, %v2406, 0.0
        %2441 = vadd.xlane.f32.xlu0 %v2440
        %v2442 = vpop.xlane.xlu0 %2441
        %v2443 = vsel %vm608, %v2407, 0.0
        %2444 = vadd.xlane.f32.xlu0 %v2443
        %v2445 = vpop.xlane.xlu0 %2444
        %v2446 = vsel %vm608, %v2408, 0.0
        %2447 = vadd.xlane.f32.xlu0 %v2446
        %v2448 = vpop.xlane.xlu0 %2447
        %v2449 = vsel %vm608, %v2409, 0.0
        %2450 = vadd.xlane.f32.xlu0 %v2449
        %v2451 = vpop.xlane.xlu0 %2450
        %v2452 = vsel %vm608, %v2410, 0.0
        %2453 = vadd.xlane.f32.xlu0 %v2452
        %v2454 = vpop.xlane.xlu0 %2453
        %v2455 = vsel %vm608, %v2411, 0.0
        %2456 = vadd.xlane.f32.xlu0 %v2455
        %v2457 = vpop.xlane.xlu0 %2456
        %v2458 = vsel %vm608, %v2412, 0.0
        %2459 = vadd.xlane.f32.xlu0 %v2458
        %v2460 = vpop.xlane.xlu0 %2459
        %v2461 = vsel %vm608, %v2413, 0.0
        %2462 = vadd.xlane.f32.xlu0 %v2461
        %v2463 = vpop.xlane.xlu0 %2462
        %v2464 = vsel %vm608, %v2414, 0.0
        %2465 = vadd.xlane.f32.xlu0 %v2464
        %v2466 = vpop.xlane.xlu0 %2465
        %v2467 = vsel %vm608, %v2415, 0.0
        %2468 = vadd.xlane.f32.xlu0 %v2467
        %v2469 = vpop.xlane.xlu0 %2468
        %v2470 = vsel %vm608, %v2416, 0.0
        %2471 = vadd.xlane.f32.xlu0 %v2470
        %v2472 = vpop.xlane.xlu0 %2471
        %v2473 = vsel %vm608, %v2417, 0.0
        %2474 = vadd.xlane.f32.xlu0 %v2473
        %v2475 = vpop.xlane.xlu0 %2474
        %v2476 = vsel %vm608, %v2418, 0.0
        %2477 = vadd.xlane.f32.xlu0 %v2476
        %v2478 = vpop.xlane.xlu0 %2477
        %v2479 = vsel %vm608, %v2419, 0.0
        %2480 = vadd.xlane.f32.xlu0 %v2479
        %v2481 = vpop.xlane.xlu0 %2480
        %v2482 = vsel %vm608, %v2420, 0.0
        %2483 = vadd.xlane.f32.xlu0 %v2482
        %v2484 = vpop.xlane.xlu0 %2483
        %v2485 = vsel %vm608, %v2421, 0.0
        %2486 = vadd.xlane.f32.xlu0 %v2485
        %v2487 = vpop.xlane.xlu0 %2486
        %v2488 = vsel %vm608, %v2422, 0.0
        %2489 = vadd.xlane.f32.xlu0 %v2488
        %v2490 = vpop.xlane.xlu0 %2489
        %v2491 = vsel %vm608, %v2423, 0.0
        %2492 = vadd.xlane.f32.xlu0 %v2491
        %v2493 = vpop.xlane.xlu0 %2492
        %v2494 = vsel %vm608, %v2424, 0.0
        %2495 = vadd.xlane.f32.xlu0 %v2494
        %v2496 = vpop.xlane.xlu0 %2495
        %v2497 = vsel %vm608, %v2425, 0.0
        %2498 = vadd.xlane.f32.xlu0 %v2497
        %v2499 = vpop.xlane.xlu0 %2498
        %v2500 = vsel %vm608, %v2426, 0.0
        %2501 = vadd.xlane.f32.xlu0 %v2500
        %v2502 = vpop.xlane.xlu0 %2501
        %v2503 = vsel %vm608, %v2427, 0.0
        %2504 = vadd.xlane.f32.xlu0 %v2503
        %v2505 = vpop.xlane.xlu0 %2504
        %v2506 = vsel %vm608, %v2428, 0.0
        %2507 = vadd.xlane.f32.xlu0 %v2506
        %v2508 = vpop.xlane.xlu0 %2507
        %v2509 = vsel %vm608, %v2429, 0.0
        %2510 = vadd.xlane.f32.xlu0 %v2509
        %v2511 = vpop.xlane.xlu0 %2510
        %v2512 = vsel %vm608, %v2430, 0.0
        %2513 = vadd.xlane.f32.xlu0 %v2512
        %v2514 = vpop.xlane.xlu0 %2513
        %v2515 = vsel %vm608, %v2431, 0.0
        %2516 = vadd.xlane.f32.xlu0 %v2515
        %v2517 = vpop.xlane.xlu0 %2516
        %v2518 = vsel %vm608, %v2432, 0.0
        %2519 = vadd.xlane.f32.xlu0 %v2518
        %v2520 = vpop.xlane.xlu0 %2519
        %v2521 = vsel %vm608, %v2433, 0.0
        %2522 = vadd.xlane.f32.xlu0 %v2521
        %v2523 = vpop.xlane.xlu0 %2522
        %v2524 = vsel %vm608, %v2434, 0.0
        %2525 = vadd.xlane.f32.xlu0 %v2524
        %v2526 = vpop.xlane.xlu0 %2525
        %v2527 = vsel %vm608, %v2435, 0.0
        %2528 = vadd.xlane.f32.xlu0 %v2527
        %v2529 = vpop.xlane.xlu0 %2528
        %v2530 = vsel %vm608, %v2436, 0.0
        %2531 = vadd.xlane.f32.xlu0 %v2530
        %v2532 = vpop.xlane.xlu0 %2531
        %v2565 = vlaneseq
        %v2566 = vand.u32 %v2565, 127
        %v2567 = vlaneseq
        %v2568 = vshrl.u32 %v2567, 7
        %v2569 = vsub.s32 %v2566, %v2568
        %v2570 = vrot.slane %v1572, %v2569
        %v2571 = vadd.s32 %v2566, 4294967288
        %v2572 = vlaneseq
        %v2573 = vshrl.u32 %v2572, 7
        %v2574 = vsub.s32 %v2571, %v2573
        %v2575 = vrot.slane %v1575, %v2574
        %vm2576 = vcmask 130112
        %v2577 = vsel %vm2576, %v2575, %v2570
        %v2578 = vadd.s32 %v2566, 4294967280
        %v2579 = vlaneseq
        %v2580 = vshrl.u32 %v2579, 7
        %v2581 = vsub.s32 %v2578, %v2580
        %v2582 = vrot.slane %v1578, %v2581
        %vm2583 = vcmask 195712
        %v2584 = vsel %vm2583, %v2582, %v2577
        %v2585 = vadd.s32 %v2566, 4294967272
        %v2586 = vlaneseq
        %v2587 = vshrl.u32 %v2586, 7
        %v2588 = vsub.s32 %v2585, %v2587
        %v2589 = vrot.slane %v1581, %v2588
        %vm2590 = vcmask 261312
        %v2591 = vsel %vm2590, %v2589, %v2584
        %v2592 = vlaneseq
        %v2593 = vshrl.u32 %v2592, 7
        %v2594 = vsub.s32 %v2566, %v2593
        %v2595 = vrot.slane %v1584, %v2594
        %v2596 = vlaneseq
        %v2597 = vshrl.u32 %v2596, 7
        %v2598 = vsub.s32 %v2571, %v2597
        %v2599 = vrot.slane %v1587, %v2598
        %v2600 = vsel %vm2576, %v2599, %v2595
        %v2601 = vlaneseq
        %v2602 = vshrl.u32 %v2601, 7
        %v2603 = vsub.s32 %v2578, %v2602
        %v2604 = vrot.slane %v1590, %v2603
        %v2605 = vsel %vm2583, %v2604, %v2600
        %v2606 = vlaneseq
        %v2607 = vshrl.u32 %v2606, 7
        %v2608 = vsub.s32 %v2585, %v2607
        %v2609 = vrot.slane %v1593, %v2608
        %v2610 = vsel %vm2590, %v2609, %v2605
        %v2611 = vlaneseq
        %v2612 = vshrl.u32 %v2611, 7
        %v2613 = vsub.s32 %v2566, %v2612
        %v2614 = vrot.slane %v1596, %v2613
        %v2615 = vlaneseq
        %v2616 = vshrl.u32 %v2615, 7
        %v2617 = vsub.s32 %v2571, %v2616
        %v2618 = vrot.slane %v1599, %v2617
        %v2619 = vsel %vm2576, %v2618, %v2614
        %v2620 = vlaneseq
        %v2621 = vshrl.u32 %v2620, 7
        %v2622 = vsub.s32 %v2578, %v2621
        %v2623 = vrot.slane %v1602, %v2622
        %v2624 = vsel %vm2583, %v2623, %v2619
        %v2625 = vlaneseq
        %v2626 = vshrl.u32 %v2625, 7
        %v2627 = vsub.s32 %v2585, %v2626
        %v2628 = vrot.slane %v1605, %v2627
        %v2629 = vsel %vm2590, %v2628, %v2624
        %v2630 = vlaneseq
        %v2631 = vshrl.u32 %v2630, 7
        %v2632 = vsub.s32 %v2566, %v2631
        %v2633 = vrot.slane %v1608, %v2632
        %v2634 = vlaneseq
        %v2635 = vshrl.u32 %v2634, 7
        %v2636 = vsub.s32 %v2571, %v2635
        %v2637 = vrot.slane %v1611, %v2636
        %v2638 = vsel %vm2576, %v2637, %v2633
        %v2639 = vlaneseq
        %v2640 = vshrl.u32 %v2639, 7
        %v2641 = vsub.s32 %v2578, %v2640
        %v2642 = vrot.slane %v1614, %v2641
        %v2643 = vsel %vm2583, %v2642, %v2638
        %v2644 = vlaneseq
        %v2645 = vshrl.u32 %v2644, 7
        %v2646 = vsub.s32 %v2585, %v2645
        %v2647 = vrot.slane %v1617, %v2646
        %v2648 = vsel %vm2590, %v2647, %v2643
        %v2649 = vlaneseq
        %v2650 = vshrl.u32 %v2649, 7
        %v2651 = vsub.s32 %v2566, %v2650
        %v2652 = vrot.slane %v1620, %v2651
        %v2653 = vlaneseq
        %v2654 = vshrl.u32 %v2653, 7
        %v2655 = vsub.s32 %v2571, %v2654
        %v2656 = vrot.slane %v1623, %v2655
        %v2657 = vsel %vm2576, %v2656, %v2652
        %v2658 = vlaneseq
        %v2659 = vshrl.u32 %v2658, 7
        %v2660 = vsub.s32 %v2578, %v2659
        %v2661 = vrot.slane %v1626, %v2660
        %v2662 = vsel %vm2583, %v2661, %v2657
        %v2663 = vlaneseq
        %v2664 = vshrl.u32 %v2663, 7
        %v2665 = vsub.s32 %v2585, %v2664
        %v2666 = vrot.slane %v1629, %v2665
        %v2667 = vsel %vm2590, %v2666, %v2662
        %v2668 = vlaneseq
        %v2669 = vshrl.u32 %v2668, 7
        %v2670 = vsub.s32 %v2566, %v2669
        %v2671 = vrot.slane %v1632, %v2670
        %v2672 = vlaneseq
        %v2673 = vshrl.u32 %v2672, 7
        %v2674 = vsub.s32 %v2571, %v2673
        %v2675 = vrot.slane %v1635, %v2674
        %v2676 = vsel %vm2576, %v2675, %v2671
        %v2677 = vlaneseq
        %v2678 = vshrl.u32 %v2677, 7
        %v2679 = vsub.s32 %v2578, %v2678
        %v2680 = vrot.slane %v1638, %v2679
        %v2681 = vsel %vm2583, %v2680, %v2676
        %v2682 = vlaneseq
        %v2683 = vshrl.u32 %v2682, 7
        %v2684 = vsub.s32 %v2585, %v2683
        %v2685 = vrot.slane %v1641, %v2684
        %v2686 = vsel %vm2590, %v2685, %v2681
        %v2687 = vlaneseq
        %v2688 = vshrl.u32 %v2687, 7
        %v2689 = vsub.s32 %v2566, %v2688
        %v2690 = vrot.slane %v1644, %v2689
        %v2691 = vlaneseq
        %v2692 = vshrl.u32 %v2691, 7
        %v2693 = vsub.s32 %v2571, %v2692
        %v2694 = vrot.slane %v1647, %v2693
        %v2695 = vsel %vm2576, %v2694, %v2690
        %v2696 = vlaneseq
        %v2697 = vshrl.u32 %v2696, 7
        %v2698 = vsub.s32 %v2578, %v2697
        %v2699 = vrot.slane %v1650, %v2698
        %v2700 = vsel %vm2583, %v2699, %v2695
        %v2701 = vlaneseq
        %v2702 = vshrl.u32 %v2701, 7
        %v2703 = vsub.s32 %v2585, %v2702
        %v2704 = vrot.slane %v1653, %v2703
        %v2705 = vsel %vm2590, %v2704, %v2700
        %v2706 = vlaneseq
        %v2707 = vshrl.u32 %v2706, 7
        %v2708 = vsub.s32 %v2566, %v2707
        %v2709 = vrot.slane %v1656, %v2708
        %v2710 = vlaneseq
        %v2711 = vshrl.u32 %v2710, 7
        %v2712 = vsub.s32 %v2571, %v2711
        %v2713 = vrot.slane %v1659, %v2712
        %v2714 = vsel %vm2576, %v2713, %v2709
        %v2715 = vlaneseq
        %v2716 = vshrl.u32 %v2715, 7
        %v2717 = vsub.s32 %v2578, %v2716
        %v2718 = vrot.slane %v1662, %v2717
        %v2719 = vsel %vm2583, %v2718, %v2714
        %v2720 = vlaneseq
        %v2721 = vshrl.u32 %v2720, 7
        %v2722 = vsub.s32 %v2585, %v2721
        %v2723 = vrot.slane %v1665, %v2722
        %v2724 = vsel %vm2590, %v2723, %v2719
        %vm2725 = vcmask 1041409
        %v2726 = vsel %vm2725, %v2610, %v2591
        %vm2727 = vcmask 1042434
        %v2728 = vsel %vm2727, %v2629, %v2726
        %vm2729 = vcmask 1043459
        %v2730 = vsel %vm2729, %v2648, %v2728
        %vm2731 = vcmask 1044484
        %v2732 = vsel %vm2731, %v2667, %v2730
        %vm2733 = vcmask 1045509
        %v2734 = vsel %vm2733, %v2686, %v2732
        %vm2735 = vcmask 1046534
        %v2736 = vsel %vm2735, %v2705, %v2734
        %vm2737 = vcmask 1047559
        %v2738 = vsel %vm2737, %v2724, %v2736
        %v2772 = vadd.s32 %v2566, 4294967264
        %v2773 = vlaneseq
        %v2774 = vshrl.u32 %v2773, 7
        %v2775 = vsub.s32 %v2772, %v2774
        %v2776 = vrot.slane %v1861, %v2775
        %v2777 = vadd.s32 %v2566, 4294967256
        %v2778 = vlaneseq
        %v2779 = vshrl.u32 %v2778, 7
        %v2780 = vsub.s32 %v2777, %v2779
        %v2781 = vrot.slane %v1864, %v2780
        %vm2782 = vcmask 392512
        %v2783 = vsel %vm2782, %v2781, %v2776
        %v2784 = vadd.s32 %v2566, 4294967248
        %v2785 = vlaneseq
        %v2786 = vshrl.u32 %v2785, 7
        %v2787 = vsub.s32 %v2784, %v2786
        %v2788 = vrot.slane %v1867, %v2787
        %vm2789 = vcmask 458112
        %v2790 = vsel %vm2789, %v2788, %v2783
        %v2791 = vadd.s32 %v2566, 4294967240
        %v2792 = vlaneseq
        %v2793 = vshrl.u32 %v2792, 7
        %v2794 = vsub.s32 %v2791, %v2793
        %v2795 = vrot.slane %v1870, %v2794
        %vm2796 = vcmask 523712
        %v2797 = vsel %vm2796, %v2795, %v2790
        %v2798 = vlaneseq
        %v2799 = vshrl.u32 %v2798, 7
        %v2800 = vsub.s32 %v2772, %v2799
        %v2801 = vrot.slane %v1873, %v2800
        %v2802 = vlaneseq
        %v2803 = vshrl.u32 %v2802, 7
        %v2804 = vsub.s32 %v2777, %v2803
        %v2805 = vrot.slane %v1876, %v2804
        %v2806 = vsel %vm2782, %v2805, %v2801
        %v2807 = vlaneseq
        %v2808 = vshrl.u32 %v2807, 7
        %v2809 = vsub.s32 %v2784, %v2808
        %v2810 = vrot.slane %v1879, %v2809
        %v2811 = vsel %vm2789, %v2810, %v2806
        %v2812 = vlaneseq
        %v2813 = vshrl.u32 %v2812, 7
        %v2814 = vsub.s32 %v2791, %v2813
        %v2815 = vrot.slane %v1882, %v2814
        %v2816 = vsel %vm2796, %v2815, %v2811
        %v2817 = vlaneseq
        %v2818 = vshrl.u32 %v2817, 7
        %v2819 = vsub.s32 %v2772, %v2818
        %v2820 = vrot.slane %v1885, %v2819
        %v2821 = vlaneseq
        %v2822 = vshrl.u32 %v2821, 7
        %v2823 = vsub.s32 %v2777, %v2822
        %v2824 = vrot.slane %v1888, %v2823
        %v2825 = vsel %vm2782, %v2824, %v2820
        %v2826 = vlaneseq
        %v2827 = vshrl.u32 %v2826, 7
        %v2828 = vsub.s32 %v2784, %v2827
        %v2829 = vrot.slane %v1891, %v2828
        %v2830 = vsel %vm2789, %v2829, %v2825
        %v2831 = vlaneseq
        %v2832 = vshrl.u32 %v2831, 7
        %v2833 = vsub.s32 %v2791, %v2832
        %v2834 = vrot.slane %v1894, %v2833
        %v2835 = vsel %vm2796, %v2834, %v2830
        %v2836 = vlaneseq
        %v2837 = vshrl.u32 %v2836, 7
        %v2838 = vsub.s32 %v2772, %v2837
        %v2839 = vrot.slane %v1897, %v2838
        %v2840 = vlaneseq
        %v2841 = vshrl.u32 %v2840, 7
        %v2842 = vsub.s32 %v2777, %v2841
        %v2843 = vrot.slane %v1900, %v2842
        %v2844 = vsel %vm2782, %v2843, %v2839
        %v2845 = vlaneseq
        %v2846 = vshrl.u32 %v2845, 7
        %v2847 = vsub.s32 %v2784, %v2846
        %v2848 = vrot.slane %v1903, %v2847
        %v2849 = vsel %vm2789, %v2848, %v2844
        %v2850 = vlaneseq
        %v2851 = vshrl.u32 %v2850, 7
        %v2852 = vsub.s32 %v2791, %v2851
        %v2853 = vrot.slane %v1906, %v2852
        %v2854 = vsel %vm2796, %v2853, %v2849
        %v2855 = vlaneseq
        %v2856 = vshrl.u32 %v2855, 7
        %v2857 = vsub.s32 %v2772, %v2856
        %v2858 = vrot.slane %v1909, %v2857
        %v2859 = vlaneseq
        %v2860 = vshrl.u32 %v2859, 7
        %v2861 = vsub.s32 %v2777, %v2860
        %v2862 = vrot.slane %v1912, %v2861
        %v2863 = vsel %vm2782, %v2862, %v2858
        %v2864 = vlaneseq
        %v2865 = vshrl.u32 %v2864, 7
        %v2866 = vsub.s32 %v2784, %v2865
        %v2867 = vrot.slane %v1915, %v2866
        %v2868 = vsel %vm2789, %v2867, %v2863
        %v2869 = vlaneseq
        %v2870 = vshrl.u32 %v2869, 7
        %v2871 = vsub.s32 %v2791, %v2870
        %v2872 = vrot.slane %v1918, %v2871
        %v2873 = vsel %vm2796, %v2872, %v2868
        %v2874 = vlaneseq
        %v2875 = vshrl.u32 %v2874, 7
        %v2876 = vsub.s32 %v2772, %v2875
        %v2877 = vrot.slane %v1921, %v2876
        %v2878 = vlaneseq
        %v2879 = vshrl.u32 %v2878, 7
        %v2880 = vsub.s32 %v2777, %v2879
        %v2881 = vrot.slane %v1924, %v2880
        %v2882 = vsel %vm2782, %v2881, %v2877
        %v2883 = vlaneseq
        %v2884 = vshrl.u32 %v2883, 7
        %v2885 = vsub.s32 %v2784, %v2884
        %v2886 = vrot.slane %v1927, %v2885
        %v2887 = vsel %vm2789, %v2886, %v2882
        %v2888 = vlaneseq
        %v2889 = vshrl.u32 %v2888, 7
        %v2890 = vsub.s32 %v2791, %v2889
        %v2891 = vrot.slane %v1930, %v2890
        %v2892 = vsel %vm2796, %v2891, %v2887
        %v2893 = vlaneseq
        %v2894 = vshrl.u32 %v2893, 7
        %v2895 = vsub.s32 %v2772, %v2894
        %v2896 = vrot.slane %v1933, %v2895
        %v2897 = vlaneseq
        %v2898 = vshrl.u32 %v2897, 7
        %v2899 = vsub.s32 %v2777, %v2898
        %v2900 = vrot.slane %v1936, %v2899
        %v2901 = vsel %vm2782, %v2900, %v2896
        %v2902 = vlaneseq
        %v2903 = vshrl.u32 %v2902, 7
        %v2904 = vsub.s32 %v2784, %v2903
        %v2905 = vrot.slane %v1939, %v2904
        %v2906 = vsel %vm2789, %v2905, %v2901
        %v2907 = vlaneseq
        %v2908 = vshrl.u32 %v2907, 7
        %v2909 = vsub.s32 %v2791, %v2908
        %v2910 = vrot.slane %v1942, %v2909
        %v2911 = vsel %vm2796, %v2910, %v2906
        %v2912 = vlaneseq
        %v2913 = vshrl.u32 %v2912, 7
        %v2914 = vsub.s32 %v2772, %v2913
        %v2915 = vrot.slane %v1945, %v2914
        %v2916 = vlaneseq
        %v2917 = vshrl.u32 %v2916, 7
        %v2918 = vsub.s32 %v2777, %v2917
        %v2919 = vrot.slane %v1948, %v2918
        %v2920 = vsel %vm2782, %v2919, %v2915
        %v2921 = vlaneseq
        %v2922 = vshrl.u32 %v2921, 7
        %v2923 = vsub.s32 %v2784, %v2922
        %v2924 = vrot.slane %v1951, %v2923
        %v2925 = vsel %vm2789, %v2924, %v2920
        %v2926 = vlaneseq
        %v2927 = vshrl.u32 %v2926, 7
        %v2928 = vsub.s32 %v2791, %v2927
        %v2929 = vrot.slane %v1954, %v2928
        %v2930 = vsel %vm2796, %v2929, %v2925
        %v2931 = vsel %vm2725, %v2816, %v2797
        %v2932 = vsel %vm2727, %v2835, %v2931
        %v2933 = vsel %vm2729, %v2854, %v2932
        %v2934 = vsel %vm2731, %v2873, %v2933
        %v2935 = vsel %vm2733, %v2892, %v2934
        %v2936 = vsel %vm2735, %v2911, %v2935
        %v2937 = vsel %vm2737, %v2930, %v2936
        %v2971 = vadd.s32 %v2566, 4294967232
        %v2972 = vlaneseq
        %v2973 = vshrl.u32 %v2972, 7
        %v2974 = vsub.s32 %v2971, %v2973
        %v2975 = vrot.slane %v2150, %v2974
        %v2976 = vadd.s32 %v2566, 4294967224
        %v2977 = vlaneseq
        %v2978 = vshrl.u32 %v2977, 7
        %v2979 = vsub.s32 %v2976, %v2978
        %v2980 = vrot.slane %v2153, %v2979
        %vm2981 = vcmask 654912
        %v2982 = vsel %vm2981, %v2980, %v2975
        %v2983 = vadd.s32 %v2566, 4294967216
        %v2984 = vlaneseq
        %v2985 = vshrl.u32 %v2984, 7
        %v2986 = vsub.s32 %v2983, %v2985
        %v2987 = vrot.slane %v2156, %v2986
        %vm2988 = vcmask 720512
        %v2989 = vsel %vm2988, %v2987, %v2982
        %v2990 = vadd.s32 %v2566, 4294967208
        %v2991 = vlaneseq
        %v2992 = vshrl.u32 %v2991, 7
        %v2993 = vsub.s32 %v2990, %v2992
        %v2994 = vrot.slane %v2159, %v2993
        %vm2995 = vcmask 786112
        %v2996 = vsel %vm2995, %v2994, %v2989
        %v2997 = vlaneseq
        %v2998 = vshrl.u32 %v2997, 7
        %v2999 = vsub.s32 %v2971, %v2998
        %v3000 = vrot.slane %v2162, %v2999
        %v3001 = vlaneseq
        %v3002 = vshrl.u32 %v3001, 7
        %v3003 = vsub.s32 %v2976, %v3002
        %v3004 = vrot.slane %v2165, %v3003
        %v3005 = vsel %vm2981, %v3004, %v3000
        %v3006 = vlaneseq
        %v3007 = vshrl.u32 %v3006, 7
        %v3008 = vsub.s32 %v2983, %v3007
        %v3009 = vrot.slane %v2168, %v3008
        %v3010 = vsel %vm2988, %v3009, %v3005
        %v3011 = vlaneseq
        %v3012 = vshrl.u32 %v3011, 7
        %v3013 = vsub.s32 %v2990, %v3012
        %v3014 = vrot.slane %v2171, %v3013
        %v3015 = vsel %vm2995, %v3014, %v3010
        %v3016 = vlaneseq
        %v3017 = vshrl.u32 %v3016, 7
        %v3018 = vsub.s32 %v2971, %v3017
        %v3019 = vrot.slane %v2174, %v3018
        %v3020 = vlaneseq
        %v3021 = vshrl.u32 %v3020, 7
        %v3022 = vsub.s32 %v2976, %v3021
        %v3023 = vrot.slane %v2177, %v3022
        %v3024 = vsel %vm2981, %v3023, %v3019
        %v3025 = vlaneseq
        %v3026 = vshrl.u32 %v3025, 7
        %v3027 = vsub.s32 %v2983, %v3026
        %v3028 = vrot.slane %v2180, %v3027
        %v3029 = vsel %vm2988, %v3028, %v3024
        %v3030 = vlaneseq
        %v3031 = vshrl.u32 %v3030, 7
        %v3032 = vsub.s32 %v2990, %v3031
        %v3033 = vrot.slane %v2183, %v3032
        %v3034 = vsel %vm2995, %v3033, %v3029
        %v3035 = vlaneseq
        %v3036 = vshrl.u32 %v3035, 7
        %v3037 = vsub.s32 %v2971, %v3036
        %v3038 = vrot.slane %v2186, %v3037
        %v3039 = vlaneseq
        %v3040 = vshrl.u32 %v3039, 7
        %v3041 = vsub.s32 %v2976, %v3040
        %v3042 = vrot.slane %v2189, %v3041
        %v3043 = vsel %vm2981, %v3042, %v3038
        %v3044 = vlaneseq
        %v3045 = vshrl.u32 %v3044, 7
        %v3046 = vsub.s32 %v2983, %v3045
        %v3047 = vrot.slane %v2192, %v3046
        %v3048 = vsel %vm2988, %v3047, %v3043
        %v3049 = vlaneseq
        %v3050 = vshrl.u32 %v3049, 7
        %v3051 = vsub.s32 %v2990, %v3050
        %v3052 = vrot.slane %v2195, %v3051
        %v3053 = vsel %vm2995, %v3052, %v3048
        %v3054 = vlaneseq
        %v3055 = vshrl.u32 %v3054, 7
        %v3056 = vsub.s32 %v2971, %v3055
        %v3057 = vrot.slane %v2198, %v3056
        %v3058 = vlaneseq
        %v3059 = vshrl.u32 %v3058, 7
        %v3060 = vsub.s32 %v2976, %v3059
        %v3061 = vrot.slane %v2201, %v3060
        %v3062 = vsel %vm2981, %v3061, %v3057
        %v3063 = vlaneseq
        %v3064 = vshrl.u32 %v3063, 7
        %v3065 = vsub.s32 %v2983, %v3064
        %v3066 = vrot.slane %v2204, %v3065
        %v3067 = vsel %vm2988, %v3066, %v3062
        %v3068 = vlaneseq
        %v3069 = vshrl.u32 %v3068, 7
        %v3070 = vsub.s32 %v2990, %v3069
        %v3071 = vrot.slane %v2207, %v3070
        %v3072 = vsel %vm2995, %v3071, %v3067
        %v3073 = vlaneseq
        %v3074 = vshrl.u32 %v3073, 7
        %v3075 = vsub.s32 %v2971, %v3074
        %v3076 = vrot.slane %v2210, %v3075
        %v3077 = vlaneseq
        %v3078 = vshrl.u32 %v3077, 7
        %v3079 = vsub.s32 %v2976, %v3078
        %v3080 = vrot.slane %v2213, %v3079
        %v3081 = vsel %vm2981, %v3080, %v3076
        %v3082 = vlaneseq
        %v3083 = vshrl.u32 %v3082, 7
        %v3084 = vsub.s32 %v2983, %v3083
        %v3085 = vrot.slane %v2216, %v3084
        %v3086 = vsel %vm2988, %v3085, %v3081
        %v3087 = vlaneseq
        %v3088 = vshrl.u32 %v3087, 7
        %v3089 = vsub.s32 %v2990, %v3088
        %v3090 = vrot.slane %v2219, %v3089
        %v3091 = vsel %vm2995, %v3090, %v3086
        %v3092 = vlaneseq
        %v3093 = vshrl.u32 %v3092, 7
        %v3094 = vsub.s32 %v2971, %v3093
        %v3095 = vrot.slane %v2222, %v3094
        %v3096 = vlaneseq
        %v3097 = vshrl.u32 %v3096, 7
        %v3098 = vsub.s32 %v2976, %v3097
        %v3099 = vrot.slane %v2225, %v3098
        %v3100 = vsel %vm2981, %v3099, %v3095
        %v3101 = vlaneseq
        %v3102 = vshrl.u32 %v3101, 7
        %v3103 = vsub.s32 %v2983, %v3102
        %v3104 = vrot.slane %v2228, %v3103
        %v3105 = vsel %vm2988, %v3104, %v3100
        %v3106 = vlaneseq
        %v3107 = vshrl.u32 %v3106, 7
        %v3108 = vsub.s32 %v2990, %v3107
        %v3109 = vrot.slane %v2231, %v3108
        %v3110 = vsel %vm2995, %v3109, %v3105
        %v3111 = vlaneseq
        %v3112 = vshrl.u32 %v3111, 7
        %v3113 = vsub.s32 %v2971, %v3112
        %v3114 = vrot.slane %v2234, %v3113
        %v3115 = vlaneseq
        %v3116 = vshrl.u32 %v3115, 7
        %v3117 = vsub.s32 %v2976, %v3116
        %v3118 = vrot.slane %v2237, %v3117
        %v3119 = vsel %vm2981, %v3118, %v3114
        %v3120 = vlaneseq
        %v3121 = vshrl.u32 %v3120, 7
        %v3122 = vsub.s32 %v2983, %v3121
        %v3123 = vrot.slane %v2240, %v3122
        %v3124 = vsel %vm2988, %v3123, %v3119
        %v3125 = vlaneseq
        %v3126 = vshrl.u32 %v3125, 7
        %v3127 = vsub.s32 %v2990, %v3126
        %v3128 = vrot.slane %v2243, %v3127
        %v3129 = vsel %vm2995, %v3128, %v3124
        %v3130 = vsel %vm2725, %v3015, %v2996
        %v3131 = vsel %vm2727, %v3034, %v3130
        %v3132 = vsel %vm2729, %v3053, %v3131
        %v3133 = vsel %vm2731, %v3072, %v3132
        %v3134 = vsel %vm2733, %v3091, %v3133
        %v3135 = vsel %vm2735, %v3110, %v3134
        %v3136 = vsel %vm2737, %v3129, %v3135
        %v3170 = vadd.s32 %v2566, 4294967200
        %v3171 = vlaneseq
        %v3172 = vshrl.u32 %v3171, 7
        %v3173 = vsub.s32 %v3170, %v3172
        %v3174 = vrot.slane %v2439, %v3173
        %v3175 = vadd.s32 %v2566, 4294967192
        %v3176 = vlaneseq
        %v3177 = vshrl.u32 %v3176, 7
        %v3178 = vsub.s32 %v3175, %v3177
        %v3179 = vrot.slane %v2442, %v3178
        %vm3180 = vcmask 917312
        %v3181 = vsel %vm3180, %v3179, %v3174
        %v3182 = vadd.s32 %v2566, 4294967184
        %v3183 = vlaneseq
        %v3184 = vshrl.u32 %v3183, 7
        %v3185 = vsub.s32 %v3182, %v3184
        %v3186 = vrot.slane %v2445, %v3185
        %vm3187 = vcmask 982912
        %v3188 = vsel %vm3187, %v3186, %v3181
        %v3189 = vadd.s32 %v2566, 4294967176
        %v3190 = vlaneseq
        %v3191 = vshrl.u32 %v3190, 7
        %v3192 = vsub.s32 %v3189, %v3191
        %v3193 = vrot.slane %v2448, %v3192
        %vm3194 = vcmask 1048512
        %v3195 = vsel %vm3194, %v3193, %v3188
        %v3196 = vlaneseq
        %v3197 = vshrl.u32 %v3196, 7
        %v3198 = vsub.s32 %v3170, %v3197
        %v3199 = vrot.slane %v2451, %v3198
        %v3200 = vlaneseq
        %v3201 = vshrl.u32 %v3200, 7
        %v3202 = vsub.s32 %v3175, %v3201
        %v3203 = vrot.slane %v2454, %v3202
        %v3204 = vsel %vm3180, %v3203, %v3199
        %v3205 = vlaneseq
        %v3206 = vshrl.u32 %v3205, 7
        %v3207 = vsub.s32 %v3182, %v3206
        %v3208 = vrot.slane %v2457, %v3207
        %v3209 = vsel %vm3187, %v3208, %v3204
        %v3210 = vlaneseq
        %v3211 = vshrl.u32 %v3210, 7
        %v3212 = vsub.s32 %v3189, %v3211
        %v3213 = vrot.slane %v2460, %v3212
        %v3214 = vsel %vm3194, %v3213, %v3209
        %v3215 = vlaneseq
        %v3216 = vshrl.u32 %v3215, 7
        %v3217 = vsub.s32 %v3170, %v3216
        %v3218 = vrot.slane %v2463, %v3217
        %v3219 = vlaneseq
        %v3220 = vshrl.u32 %v3219, 7
        %v3221 = vsub.s32 %v3175, %v3220
        %v3222 = vrot.slane %v2466, %v3221
        %v3223 = vsel %vm3180, %v3222, %v3218
        %v3224 = vlaneseq
        %v3225 = vshrl.u32 %v3224, 7
        %v3226 = vsub.s32 %v3182, %v3225
        %v3227 = vrot.slane %v2469, %v3226
        %v3228 = vsel %vm3187, %v3227, %v3223
        %v3229 = vlaneseq
        %v3230 = vshrl.u32 %v3229, 7
        %v3231 = vsub.s32 %v3189, %v3230
        %v3232 = vrot.slane %v2472, %v3231
        %v3233 = vsel %vm3194, %v3232, %v3228
        %v3234 = vlaneseq
        %v3235 = vshrl.u32 %v3234, 7
        %v3236 = vsub.s32 %v3170, %v3235
        %v3237 = vrot.slane %v2475, %v3236
        %v3238 = vlaneseq
        %v3239 = vshrl.u32 %v3238, 7
        %v3240 = vsub.s32 %v3175, %v3239
        %v3241 = vrot.slane %v2478, %v3240
        %v3242 = vsel %vm3180, %v3241, %v3237
        %v3243 = vlaneseq
        %v3244 = vshrl.u32 %v3243, 7
        %v3245 = vsub.s32 %v3182, %v3244
        %v3246 = vrot.slane %v2481, %v3245
        %v3247 = vsel %vm3187, %v3246, %v3242
        %v3248 = vlaneseq
        %v3249 = vshrl.u32 %v3248, 7
        %v3250 = vsub.s32 %v3189, %v3249
        %v3251 = vrot.slane %v2484, %v3250
        %v3252 = vsel %vm3194, %v3251, %v3247
        %v3253 = vlaneseq
        %v3254 = vshrl.u32 %v3253, 7
        %v3255 = vsub.s32 %v3170, %v3254
        %v3256 = vrot.slane %v2487, %v3255
        %v3257 = vlaneseq
        %v3258 = vshrl.u32 %v3257, 7
        %v3259 = vsub.s32 %v3175, %v3258
        %v3260 = vrot.slane %v2490, %v3259
        %v3261 = vsel %vm3180, %v3260, %v3256
        %v3262 = vlaneseq
        %v3263 = vshrl.u32 %v3262, 7
        %v3264 = vsub.s32 %v3182, %v3263
        %v3265 = vrot.slane %v2493, %v3264
        %v3266 = vsel %vm3187, %v3265, %v3261
        %v3267 = vlaneseq
        %v3268 = vshrl.u32 %v3267, 7
        %v3269 = vsub.s32 %v3189, %v3268
        %v3270 = vrot.slane %v2496, %v3269
        %v3271 = vsel %vm3194, %v3270, %v3266
        %v3272 = vlaneseq
        %v3273 = vshrl.u32 %v3272, 7
        %v3274 = vsub.s32 %v3170, %v3273
        %v3275 = vrot.slane %v2499, %v3274
        %v3276 = vlaneseq
        %v3277 = vshrl.u32 %v3276, 7
        %v3278 = vsub.s32 %v3175, %v3277
        %v3279 = vrot.slane %v2502, %v3278
        %v3280 = vsel %vm3180, %v3279, %v3275
        %v3281 = vlaneseq
        %v3282 = vshrl.u32 %v3281, 7
        %v3283 = vsub.s32 %v3182, %v3282
        %v3284 = vrot.slane %v2505, %v3283
        %v3285 = vsel %vm3187, %v3284, %v3280
        %v3286 = vlaneseq
        %v3287 = vshrl.u32 %v3286, 7
        %v3288 = vsub.s32 %v3189, %v3287
        %v3289 = vrot.slane %v2508, %v3288
        %v3290 = vsel %vm3194, %v3289, %v3285
        %v3291 = vlaneseq
        %v3292 = vshrl.u32 %v3291, 7
        %v3293 = vsub.s32 %v3170, %v3292
        %v3294 = vrot.slane %v2511, %v3293
        %v3295 = vlaneseq
        %v3296 = vshrl.u32 %v3295, 7
        %v3297 = vsub.s32 %v3175, %v3296
        %v3298 = vrot.slane %v2514, %v3297
        %v3299 = vsel %vm3180, %v3298, %v3294
        %v3300 = vlaneseq
        %v3301 = vshrl.u32 %v3300, 7
        %v3302 = vsub.s32 %v3182, %v3301
        %v3303 = vrot.slane %v2517, %v3302
        %v3304 = vsel %vm3187, %v3303, %v3299
        %v3305 = vlaneseq
        %v3306 = vshrl.u32 %v3305, 7
        %v3307 = vsub.s32 %v3189, %v3306
        %v3308 = vrot.slane %v2520, %v3307
        %v3309 = vsel %vm3194, %v3308, %v3304
        %v3310 = vlaneseq
        %v3311 = vshrl.u32 %v3310, 7
        %v3312 = vsub.s32 %v3170, %v3311
        %v3313 = vrot.slane %v2523, %v3312
        %v3314 = vlaneseq
        %v3315 = vshrl.u32 %v3314, 7
        %v3316 = vsub.s32 %v3175, %v3315
        %v3317 = vrot.slane %v2526, %v3316
        %v3318 = vsel %vm3180, %v3317, %v3313
        %v3319 = vlaneseq
        %v3320 = vshrl.u32 %v3319, 7
        %v3321 = vsub.s32 %v3182, %v3320
        %v3322 = vrot.slane %v2529, %v3321
        %v3323 = vsel %vm3187, %v3322, %v3318
        %v3324 = vlaneseq
        %v3325 = vshrl.u32 %v3324, 7
        %v3326 = vsub.s32 %v3189, %v3325
        %v3327 = vrot.slane %v2532, %v3326
        %v3328 = vsel %vm3194, %v3327, %v3323
        %v3329 = vsel %vm2725, %v3214, %v3195
        %v3330 = vsel %vm2727, %v3233, %v3329
        %v3331 = vsel %vm2729, %v3252, %v3330
        %v3332 = vsel %vm2731, %v3271, %v3331
        %v3333 = vsel %vm2733, %v3290, %v3332
        %v3334 = vsel %vm2735, %v3309, %v3333
        %v3335 = vsel %vm2737, %v3328, %v3334
        %v3337 = vsel %vm608, %v2738, %v2937
        %vm3338 = vcmask 523264
        %v3339 = vsel %vm3338, %v3337, %v3136
        %vm3340 = vcmask 785408
        %v3341 = vsel %vm3340, %v3339, %v3335
        %v3342 = vstv %s213
        %v3343 = vadd.f32 %v3341, %v3342
        %v3344 = vmul.f32 %v3343, 0.5
        %v3345 = vtanh.pop %v3344
        %v3346 = vadd.f32 %v3345, 1.0
        %v3347 = vmul.f32 %v3346, 0.5
        %s3348 = scalar_lea.vmem %s198, %s1373
        %3349 = vst [vmem:[%s3348] sm:$0xff] %v3347
      $region41: #{structural_learning_forward.1} parent=35 // loop_footer
        %s1372 = sadd.s32 1, %s1368
      $region42: #{structural_learning_forward.1} parent=35 // loop_footer_branch
        %1367 = sbr.rel target = $region38
      $region43: #{structural_learning_forward.1} parent=35 // loop_exit
        _
      %p3350 = scmp.lt.s32.totalorder %s16, 1
      %s3351 = scalar_select %p3350, %s16, 1
      %s3352 = smul.addr %s3351, 4
      %s3353 = smul.addr %s3352, 8
      %s3354 = scalar_lea.vmem %s4, %s3353
      // Predicated region
      $region44: #{structural_learning_forward.1} parent=35 // pred_check
        %p3355 = pneg %p123
      $region45: #{structural_learning_forward.1} parent=35 // pred_check_branch
        %3357 = sbr.rel (%p3355) target = $region47
      $region46: #{structural_learning_forward.1} parent=35 // pred_region
        _
      $region47: #{structural_learning_forward.1} parent=35 // pred_fallthru
        _
    $region36: #{structural_learning_forward.1} parent=5 // pred_fallthru
      _
    %p3358 = scmp.le.s32.totalorder 2, %s11
    // Predicated region
    $region48: #{structural_learning_forward.1} parent=5 // pred_check
      %p3359 = pneg %p3358
    $region49: #{structural_learning_forward.1} parent=5 // pred_check_branch
      %3361 = sbr.rel (%p3359) target = $region51
    $region50: #{structural_learning_forward.1} parent=5 // pred_region
      %s3362 = ssub.s32 %s11, 2
      // Predicated region
      $region52: #{structural_learning_forward.1} parent=50 // pred_check
        %p3363 = pneg %p129
      $region53: #{structural_learning_forward.1} parent=50 // pred_check_branch
        %3365 = sbr.rel (%p3363) target = $region55
      $region54: #{structural_learning_forward.1} parent=50 // pred_region
        %p3366 = scmp.lt.s32.totalorder %s17, 1
        %s3367 = scalar_select %p3366, %s17, 1
        %s3368 = smul.addr %s3367, 4
        %s3369 = smul.addr %s3368, 8
        %s3370 = scalar_lea.vmem %s4, %s3369
      $region55: #{structural_learning_forward.1} parent=50 // pred_fallthru
        _
    $region51: #{structural_learning_forward.1} parent=5 // pred_fallthru
      _
  $region6: #{structural_learning_forward.1} parent=0 // loop_footer
    %s15 = sadd.s32 1, %s11
  $region7: #{structural_learning_forward.1} parent=0 // loop_footer_branch
    %10 = sbr.rel target = $region3
  $region8: #{structural_learning_forward.1} parent=0 // loop_exit
    _

</llo_original>
